<compile_context>
chip_gen: v5e
topology: v5e:2x2
jax: 0.10.0
libtpu: 0.0.40
codegen_flags: <defaults>
</compile_context>

<pallas_src>
import functools

import jax
import jax.numpy as jnp
from jax.experimental import pallas as pl
from jax.experimental.pallas import tpu as pltpu


# ------------------------------------------------------------------ helpers

def _pick_tile(dim, candidates):
    """Largest candidate dividing dim, else the full dim (full-dim blocks always satisfy
    the (8,128) block rule)."""
    for c in candidates:
        if c <= dim and dim % c == 0:
            return c
    return dim


def _vmem_limit(*byte_terms):
    """Scoped-VMEM request derived from tile sizes (x1.5 margin), floored at the 32 MiB
    default so small problems never regress.  TODO(synk): cap/re-derive tiles for v7x's
    64 MiB physical VMEM when running huge shapes."""
    est = int(sum(byte_terms) * 1.5)
    return min(max(est, 32 * 1024 * 1024), 100 * 1024 * 1024)


# ------------------------------------------------------------------ kernels

def _flash_attn_kernel(q_ref, kT_ref, v_ref, bias_ref,
                       wq_ref, wkT_ref, wv_ref, wfc_ref, bfc_ref, g_ref, beta_ref,
                       o_ref,
                       qp_sc, m_sc, l_sc, acc_sc,
                       *, heads, head_dim, apply_ln, eps, cdtype):
    """One (batch, q-tile, k-tile) step of fused attention + fc_out + residual (+LN)."""
    ki = pl.program_id(2)
    D = head_dim

    @pl.when(ki == 0)
    def _():
        # Project Q once per (n, qi) and stash it; 1/sqrt(E) is baked into wq.
        qp_sc[...] = jnp.dot(q_ref[...].astype(cdtype), wq_ref[...],
                             preferred_element_type=jnp.float32).astype(cdtype)
        m_sc[...] = jnp.full_like(m_sc, -jnp.inf)
        l_sc[...] = jnp.zeros_like(l_sc)
        acc_sc[...] = jnp.zeros_like(acc_sc)

    # All-heads projections for this K/V tile (canonical contraction dims, no transposes).
    kTp = jnp.dot(wkT_ref[...], kT_ref[...],
                  preferred_element_type=jnp.float32).astype(cdtype)   # (E, tk)
    vp = jnp.dot(v_ref[...], wv_ref[...],
                 preferred_element_type=jnp.float32).astype(cdtype)    # (tk, E)
    bias = bias_ref[...]                                               # (tq, tk) f32
    qp = qp_sc[...]                                                    # (tq, E)

    # TODO(synk): if profiling shows vreg spills at large tq/E, slice qp/kTp/vp from
    # VMEM refs per head instead of holding the full values across the unrolled loop.
    for h in range(heads):                       # static, unrolled over heads
        sl = slice(h * D, (h + 1) * D)
        s = jnp.dot(qp[:, sl], kTp[sl, :],
                    preferred_element_type=jnp.float32) + bias         # (tq, tk)
        m_prev = m_sc[h]
        m_new = jnp.maximum(m_prev, jnp.max(s, axis=-1, keepdims=True))
        alpha = jnp.exp(m_prev - m_new)
        p = jnp.exp(s - m_new)
        l_sc[h] = alpha * l_sc[h] + jnp.sum(p, axis=-1, keepdims=True)
        acc_sc[h] = alpha * acc_sc[h] + jnp.dot(p.astype(cdtype), vp[:, sl],
                                                preferred_element_type=jnp.float32)
        m_sc[h] = m_new

    @pl.when(ki == pl.num_programs(2) - 1)
    def _():
        # fc bias + residual (the residual of this module is always the *query* input).
        out = q_ref[...] + bfc_ref[...]                                # (tq, E) f32
        wfc = wfc_ref[...]
        for h in range(heads):
            sl = slice(h * D, (h + 1) * D)
            ctx = acc_sc[h] * pl.reciprocal(l_sc[h], approx=True)      # deferred softmax norm
            out = out + jnp.dot(ctx.astype(cdtype), wfc[sl, :],
                                preferred_element_type=jnp.float32)
        if apply_ln:
            mean = jnp.mean(out, axis=-1, keepdims=True)
            var = jnp.mean(jnp.square(out - mean), axis=-1, keepdims=True)
            out = (out - mean) * jax.lax.rsqrt(var + eps) * g_ref[...] + beta_ref[...]
        o_ref[...] = out.astype(o_ref.dtype)


def _ffn_resident_kernel(h_ref, w1_ref, b1_ref, w2_ref, b2_ref, g_ref, beta_ref,
                         o_ref, acc_ref, *, eps, nchunks, tf, cdtype):
    """LayerNorm(relu(h@W1+b1)@W2 + b2 + h) with W1/W2 fully VMEM-resident; the F dim is
    chunked inside the kernel so the (tm, F) intermediate never exists."""
    h32 = h_ref[...]
    hc = h32.astype(cdtype)
    acc_ref[...] = jnp.zeros_like(acc_ref)
    for c in range(nchunks):                      # static, chunk boundaries lane-aligned
        sl = slice(c * tf, (c + 1) * tf)
        t = jnp.dot(hc, w1_ref[:, sl], preferred_element_type=jnp.float32) + b1_ref[:, sl]
        t = jnp.maximum(t, 0.0).astype(cdtype)
        acc_ref[...] += jnp.dot(t, w2_ref[sl, :], preferred_element_type=jnp.float32)
    x = acc_ref[...] + b2_ref[...] + h32          # + residual
    mean = jnp.mean(x, axis=-1, keepdims=True)
    var = jnp.mean(jnp.square(x - mean), axis=-1, keepdims=True)
    o_ref[...] = ((x - mean) * jax.lax.rsqrt(var + eps) * g_ref[...]
                  + beta_ref[...]).astype(o_ref.dtype)


def _ffn_streamed_kernel(h_ref, w1_ref, b1_ref, w2_ref, b2_ref, g_ref, beta_ref,
                         o_ref, acc_ref, *, eps, cdtype):
    """Fallback for W1/W2 too large for VMEM residency: F tiles streamed as an inner
    'arbitrary' grid axis with an f32 VMEM accumulator."""
    f = pl.program_id(1)

    @pl.when(f == 0)
    def _():
        acc_ref[...] = jnp.zeros_like(acc_ref)

    t = jnp.dot(h_ref[...].astype(cdtype), w1_ref[...],
                preferred_element_type=jnp.float32) + b1_ref[...]
    t = jnp.maximum(t, 0.0).astype(cdtype)
    acc_ref[...] += jnp.dot(t, w2_ref[...], preferred_element_type=jnp.float32)

    @pl.when(f == pl.num_programs(1) - 1)
    def _():
        x = acc_ref[...] + b2_ref[...] + h_ref[...]
        mean = jnp.mean(x, axis=-1, keepdims=True)
        var = jnp.mean(jnp.square(x - mean), axis=-1, keepdims=True)
        o_ref[...] = ((x - mean) * jax.lax.rsqrt(var + eps) * g_ref[...]
                      + beta_ref[...]).astype(o_ref.dtype)


# ------------------------------------------------------------------ wrappers

def fused_attention(q, k, v, mask, ap, embed_size, heads, ln=None,
                    compute_dtype=jnp.bfloat16):
    """SelfAttention(q, k, v, mask) + q  [+ LayerNorm]  — one flash-style pallas_call."""
    N, Lq, E = q.shape
    Lk = k.shape[1]
    D = E // heads
    cd = compute_dtype
    cb = jnp.finfo(cd).bits // 8

    # K consumed transposed + K/V cast to the compute dtype (halves their HBM/DMA traffic);
    # Q stays f32 because it also carries the residual / LayerNorm path.
    kT = jnp.swapaxes(k, 1, 2).astype(cd)          # (N, E, Lk)
    v = v.astype(cd)

    # Mask -> additive bias (0 / -1e20); head broadcast dropped, batch broadcast handled
    # purely by the index_map so a (1,1,Lq,Lk) causal mask stays a single VMEM tile.
    assert mask.ndim == 4 and mask.shape[1] == 1
    bias = jnp.where(mask[:, 0] == 0, jnp.float32(-1e20), jnp.float32(0.0))
    bias_batched = bias.shape[0] != 1

    tq = _pick_tile(Lq, (256, 128, 64, 32, 16, 8))
    tk = _pick_tile(Lk, (512, 256, 128))
    nq, nk = Lq // tq, Lk // tk

    apply_ln = ln is not None
    gamma, beta = ln if apply_ln else (jnp.ones((1, E), jnp.float32),
                                       jnp.zeros((1, E), jnp.float32))

    w_spec = pl.BlockSpec((E, E), lambda n, qi, ki: (0, 0))
    row_spec = pl.BlockSpec((1, E), lambda n, qi, ki: (0, 0))
    bias_map = ((lambda n, qi, ki: (n, qi, ki)) if bias_batched
                else (lambda n, qi, ki: (0, qi, ki)))

    vmem = _vmem_limit(
        2 * tq * E * 4,                 # q (f32, double-buffered)
        2 * E * tk * cb + 2 * tk * E * cb,  # kT + v
        2 * tq * tk * 4,                # bias
        2 * 4 * E * E * cb,             # four weight matrices
        2 * tq * E * 4,                 # output
        tq * E * cb + heads * tq * (D + 2) * 4,   # scratch
        4 * tq * tk * 4 + 2 * (E + tq) * tk * 4)  # in-flight intermediates

    # TODO(synk): for large E / many heads, replace block-diag projections (H x FLOPs) with
    # grouped per-head (L,D)x(D,D) matmuls; block-diag is kept here since it stays MXU-dense
    # for small/medium E.
    # TODO(synk): lane-pack rows when E < 128 so output stores are unmasked vst (v5e).
    return pl.pallas_call(
        functools.partial(_flash_attn_kernel, heads=heads, head_dim=D,
                          apply_ln=apply_ln, eps=1e-5, cdtype=cd),
        grid=(N, nq, nk),
        in_specs=[
            pl.BlockSpec((None, tq, E), lambda n, qi, ki: (n, qi, 0)),
            pl.BlockSpec((None, E, tk), lambda n, qi, ki: (n, 0, ki)),
            pl.BlockSpec((None, tk, E), lambda n, qi, ki: (n, ki, 0)),
            pl.BlockSpec((None, tq, tk), bias_map),
            w_spec, w_spec, w_spec, w_spec, row_spec, row_spec, row_spec,
        ],
        out_specs=pl.BlockSpec((None, tq, E), lambda n, qi, ki: (n, qi, 0)),
        out_shape=jax.ShapeDtypeStruct((N, Lq, E), jnp.float32),
        scratch_shapes=[
            pltpu.VMEM((tq, E), cd),                   # projected Q (per (n, qi))
            pltpu.VMEM((heads, tq, 1), jnp.float32),   # running max
            pltpu.VMEM((heads, tq, 1), jnp.float32),   # running denominator
            pltpu.VMEM((heads, tq, D), jnp.float32),   # unnormalized context
        ],
        compiler_params=pltpu.CompilerParams(
            dimension_semantics=("parallel", "parallel", "arbitrary"),
            vmem_limit_bytes=vmem),
    )(q, kT, v, bias, ap["wq_bd"], ap["wkT_bd"], ap["wv_bd"],
      ap["fc_wt"], ap["fc_b"], gamma, beta)


def fused_ffn(x, kp, compute_dtype=jnp.bfloat16):
    """LayerNorm2(ff2(relu(ff1(x))) + x) — one pallas_call."""
    N, L, E = x.shape
    M = N * L
    F = kp["ff1_wt"].shape[1]
    cd = compute_dtype
    cb = jnp.finfo(cd).bits // 8
    x2 = x.reshape(M, E)

    # TODO(synk): handle non-divisible M with pl.cdiv + masked remainder tiles (and allow
    # tm up to 1024 on v5e/v6e) instead of the full-M fallback.
    tm = _pick_tile(M, (512, 256, 128, 64, 32, 16, 8))
    tf = _pick_tile(F, (512, 256, 128))
    weight_bytes = 2 * E * F * cb

    common_row = pl.BlockSpec((1, E), lambda *a: (0,) * 2)

    if weight_bytes <= 20 * 1024 * 1024:
        # Resident-weight path: W1/W2 DMA'd once (constant index_map), never re-streamed
        # per row tile; F chunked inside the kernel.
        nchunks = F // tf
        vmem = _vmem_limit(2 * weight_bytes, 4 * tm * E * 4, tm * E * 4,
                           4 * tm * tf * 4, 4 * (E + F) * 4)
        out = pl.pallas_call(
            functools.partial(_ffn_resident_kernel, eps=1e-5, nchunks=nchunks,
                              tf=tf, cdtype=cd),
            grid=(M // tm,),
            in_specs=[pl.BlockSpec((tm, E), lambda i: (i, 0)),
                      pl.BlockSpec((E, F), lambda i: (0, 0)),
                      pl.BlockSpec((1, F), lambda i: (0, 0)),
                      pl.BlockSpec((F, E), lambda i: (0, 0)),
                      pl.BlockSpec((1, E), lambda i: (0, 0)),
                      pl.BlockSpec((1, E), lambda i: (0, 0)),
                      pl.BlockSpec((1, E), lambda i: (0, 0))],
            out_specs=pl.BlockSpec((tm, E), lambda i: (i, 0)),
            out_shape=jax.ShapeDtypeStruct((M, E), jnp.float32),
            scratch_shapes=[pltpu.VMEM((tm, E), jnp.float32)],
            compiler_params=pltpu.CompilerParams(
                dimension_semantics=("parallel",), vmem_limit_bytes=vmem),
        )(x2, kp["ff1_wt"], kp["ff1_b"], kp["ff2_wt"], kp["ff2_b"],
          kp["ln2_g"], kp["ln2_b"])
    else:
        vmem = _vmem_limit(4 * tm * E * 4, tm * E * 4, 4 * E * tf * cb,
                           4 * tm * tf * 4, 4 * (tf + E) * 4)
        out = pl.pallas_call(
            functools.partial(_ffn_streamed_kernel, eps=1e-5, cdtype=cd),
            grid=(M // tm, F // tf),
            in_specs=[pl.BlockSpec((tm, E), lambda i, f: (i, 0)),
                      pl.BlockSpec((E, tf), lambda i, f: (0, f)),
                      pl.BlockSpec((1, tf), lambda i, f: (0, f)),
                      pl.BlockSpec((tf, E), lambda i, f: (f, 0)),
                      pl.BlockSpec((1, E), lambda i, f: (0, 0)),
                      pl.BlockSpec((1, E), lambda i, f: (0, 0)),
                      pl.BlockSpec((1, E), lambda i, f: (0, 0))],
            out_specs=pl.BlockSpec((tm, E), lambda i, f: (i, 0)),
            out_shape=jax.ShapeDtypeStruct((M, E), jnp.float32),
            scratch_shapes=[pltpu.VMEM((tm, E), jnp.float32)],
            compiler_params=pltpu.CompilerParams(
                dimension_semantics=("parallel", "arbitrary"), vmem_limit_bytes=vmem),
        )(x2, kp["ff1_wt"], kp["ff1_b"], kp["ff2_wt"], kp["ff2_b"],
          kp["ln2_g"], kp["ln2_b"])
    return out.reshape(N, L, E)


def decoder_block(x, key, value, src_mask, trg_mask, kp, embed_size, heads,
                  compute_dtype=jnp.bfloat16):
    # TODO(synk): for small N*L*E the three pallas_calls could be fused into one kernel
    # body to avoid two activation HBM round-trips; kept separate for general shapes.
    norm = fused_attention(x, x, x, trg_mask, kp["masked_attn"], embed_size, heads,
                           ln=None, compute_dtype=compute_dtype)
    h = fused_attention(norm, key, value, src_mask, kp["attn"], embed_size, heads,
                        ln=(kp["ln1_g"], kp["ln1_b"]), compute_dtype=compute_dtype)
    return fused_ffn(h, kp, compute_dtype=compute_dtype)


# ------------------------------------------------------------------ parameters

def init_params(rng, embed_size, heads, forward_expansion):
    """PyTorch-layout parameters (used directly by the pure-JAX reference)."""
    D = embed_size // heads
    F = forward_expansion * embed_size
    keys = iter(jax.random.split(rng, 16))

    def dense_w(o, i):
        return 0.05 * jax.random.normal(next(keys), (o, i), jnp.float32)

    def dense_b(o):
        return 0.05 * jax.random.normal(next(keys), (o,), jnp.float32)

    def attn_p():
        return {"wq": dense_w(D, D), "wk": dense_w(D, D), "wv": dense_w(D, D),
                "fc_w": dense_w(embed_size, embed_size), "fc_b": dense_b(embed_size)}

    return {
        "masked_attn": attn_p(),
        "tb": {
            "attn": attn_p(),
            "ln1_g": jnp.ones((embed_size,), jnp.float32),
            "ln1_b": jnp.zeros((embed_size,), jnp.float32),
            "ln2_g": jnp.ones((embed_size,), jnp.float32),
            "ln2_b": jnp.zeros((embed_size,), jnp.float32),
            "ff1_w": dense_w(F, embed_size), "ff1_b": dense_b(F),
            "ff2_w": dense_w(embed_size, F), "ff2_b": dense_b(embed_size),
        },
    }


def _block_diag(blk, heads):
    """(E,E) block-diagonal matrix with `blk` (D,D) repeated on the diagonal."""
    D = blk.shape[0]
    E = D * heads
    bd = jnp.zeros((E, E), blk.dtype)
    for h in range(heads):
        bd = bd.at[h * D:(h + 1) * D, h * D:(h + 1) * D].set(blk)
    return bd


def prepare_params(p, embed_size, heads, compute_dtype=jnp.bfloat16):
    """One-time conversion to kernel layout: pre-transposed weights in the compute dtype,
    block-diag head projections with 1/sqrt(E) baked into Wq, Wk laid out for the
    transposed-K data path, f32 (1, .) biases / LN params."""
    E = embed_size
    scale = 1.0 / float(E) ** 0.5
    cd = compute_dtype

    def attn(ap):
        return {"wq_bd": (_block_diag(ap["wq"].T, heads) * scale).astype(cd),
                "wkT_bd": _block_diag(ap["wk"], heads).astype(cd),   # = block_diag(wk.T).T
                "wv_bd": _block_diag(ap["wv"].T, heads).astype(cd),
                "fc_wt": ap["fc_w"].T.astype(cd),
                "fc_b": ap["fc_b"].reshape(1, E).astype(jnp.float32)}

    tb = p["tb"]
    F = tb["ff1_w"].shape[0]
    return {
        "masked_attn": attn(p["masked_attn"]),
        "attn": attn(tb["attn"]),
        "ln1_g": tb["ln1_g"].reshape(1, E), "ln1_b": tb["ln1_b"].reshape(1, E),
        "ln2_g": tb["ln2_g"].reshape(1, E), "ln2_b": tb["ln2_b"].reshape(1, E),
        "ff1_wt": tb["ff1_w"].T.astype(cd),
        "ff1_b": tb["ff1_b"].reshape(1, F).astype(jnp.float32),
        "ff2_wt": tb["ff2_w"].T.astype(cd),
        "ff2_b": tb["ff2_b"].reshape(1, E).astype(jnp.float32),
    }


# ------------------------------------------------------------------ pure-JAX reference

def _ref_self_attention(q, k, v, mask, p, embed_size, heads):
    N, Lq, E = q.shape
    Lk = k.shape[1]
    D = E // heads
    q4 = q.reshape(N, Lq, heads, D) @ p["wq"].T
    k4 = k.reshape(N, Lk, heads, D) @ p["wk"].T
    v4 = v.reshape(N, Lk, heads, D) @ p["wv"].T
    energy = jnp.einsum("nqhd,nkhd->nhqk", q4, k4)
    energy = jnp.where(jnp.broadcast_to(mask, energy.shape) == 0, -1e20, energy)
    att = jax.nn.softmax(energy / embed_size ** 0.5, axis=3)
    out = jnp.einsum("nhql,nlhd->nqhd", att, v4).reshape(N, Lq, E)
    return out @ p["fc_w"].T + p["fc_b"]


def _ref_layernorm(x, g, b, eps=1e-5):
    mean = x.mean(-1, keepdims=True)
    var = ((x - mean) ** 2).mean(-1, keepdims=True)
    return (x - mean) / jnp.sqrt(var + eps) * g + b


def _ref_decoder_block(x, key, value, src_mask, trg_mask, p, E, H):
    masked = _ref_self_attention(x, x, x, trg_mask, p["masked_attn"], E, H)
    norm = masked + x
    tb = p["tb"]
    attn = _ref_self_attention(norm, key, value, src_mask, tb["attn"], E, H)
    h = _ref_layernorm(attn + norm, tb["ln1_g"], tb["ln1_b"])
    ff = jnp.maximum(h @ tb["ff1_w"].T + tb["ff1_b"], 0.0) @ tb["ff2_w"].T + tb["ff2_b"]
    return _ref_layernorm(ff + h, tb["ln2_g"], tb["ln2_b"])


# ------------------------------------------------------------------ main

if __name__ == "__main__":
    embed_size, heads, forward_expansion = 32, 4, 4
    N, Lq, Lk = 2, 8, 8

    root = jax.random.PRNGKey(0)
    kx, kk, kv, kp_ = jax.random.split(root, 4)
    x = jax.random.normal(kx, (N, Lq, embed_size), jnp.float32)
    key_in = jax.random.normal(kk, (N, Lk, embed_size), jnp.float32)
    value_in = jax.random.normal(kv, (N, Lk, embed_size), jnp.float32)
    src_mask = jnp.ones((N, 1, Lq, Lk), jnp.float32)
    trg_mask = jnp.tril(jnp.ones((Lq, Lq), jnp.float32))[None, None]   # causal mask

    params = init_params(kp_, embed_size, heads, forward_expansion)
    ref = _ref_decoder_block(x, key_in, value_in, src_mask, trg_mask,
                             params, embed_size, heads)

    # f32 compute path: strict check against the f32 reference.
    kp32 = prepare_params(params, embed_size, heads, compute_dtype=jnp.float32)
    run32 = jax.jit(functools.partial(decoder_block, embed_size=embed_size,
                                      heads=heads, compute_dtype=jnp.float32))
    out32 = jax.block_until_ready(run32(x, key_in, value_in, src_mask, trg_mask, kp32))
    assert out32.shape == (N, Lq, embed_size), out32.shape
    assert jnp.allclose(out32, ref, atol=1e-3, rtol=1e-3), "f32 mismatch vs reference"

    # bf16 compute path (native MXU width; f32 accumulation / softmax / LN): looser check.
    kp16 = prepare_params(params, embed_size, heads, compute_dtype=jnp.bfloat16)
    run16 = jax.jit(functools.partial(decoder_block, embed_size=embed_size,
                                      heads=heads, compute_dtype=jnp.bfloat16))
    out16 = jax.block_until_ready(run16(x, key_in, value_in, src_mask, trg_mask, kp16))
    assert out16.shape == (N, Lq, embed_size), out16.shape
    assert jnp.allclose(out16, ref, atol=2e-2, rtol=2e-2), "bf16 mismatch vs reference"

    print("KERNEL_OK")
</pallas_src>

<mosaic_0001>
module attributes {stable_mosaic.version = 11 : i64} {
  func.func @_flash_attn_kernel(%arg0: i32, %arg1: i32, %arg2: i32, %arg3: memref<1x8x32xf32, #tpu.memory_space<vmem>>, %arg4: memref<1x32x8xf32, #tpu.memory_space<vmem>>, %arg5: memref<1x8x32xf32, #tpu.memory_space<vmem>>, %arg6: memref<1x8x8xf32, #tpu.memory_space<vmem>>, %arg7: memref<32x32xf32, #tpu.memory_space<vmem>>, %arg8: memref<32x32xf32, #tpu.memory_space<vmem>>, %arg9: memref<32x32xf32, #tpu.memory_space<vmem>>, %arg10: memref<32x32xf32, #tpu.memory_space<vmem>>, %arg11: memref<1x32xf32, #tpu.memory_space<vmem>>, %arg12: memref<1x32xf32, #tpu.memory_space<vmem>>, %arg13: memref<1x32xf32, #tpu.memory_space<vmem>>, %arg14: memref<1x8x32xf32, #tpu.memory_space<vmem>>, %arg15: memref<8x32xf32, #tpu.memory_space<vmem>>, %arg16: memref<4x8x1xf32, #tpu.memory_space<vmem>>, %arg17: memref<4x8x1xf32, #tpu.memory_space<vmem>>, %arg18: memref<4x8x8xf32, #tpu.memory_space<vmem>>) attributes {dimension_semantics = [#tpu.dimension_semantics<parallel>, #tpu.dimension_semantics<parallel>, #tpu.dimension_semantics<arbitrary>], iteration_bounds = array<i64: 2, 1, 1>, scalar_prefetch = 0 : i64, scratch_operands = 4 : i64, tpu.core_type = #tpu.core_type<tc>, window_params = [{transform_indices = @transform_0, window_bounds = array<i64: 1, 8, 32>}, {transform_indices = @transform_1, window_bounds = array<i64: 1, 32, 8>}, {transform_indices = @transform_2, window_bounds = array<i64: 1, 8, 32>}, {transform_indices = @transform_3, window_bounds = array<i64: 1, 8, 8>}, {pipeline_mode = #tpu.pipeline_mode<synchronous>, transform_indices = @transform_4, window_bounds = array<i64: 32, 32>}, {pipeline_mode = #tpu.pipeline_mode<synchronous>, transform_indices = @transform_5, window_bounds = array<i64: 32, 32>}, {pipeline_mode = #tpu.pipeline_mode<synchronous>, transform_indices = @transform_6, window_bounds = array<i64: 32, 32>}, {pipeline_mode = #tpu.pipeline_mode<synchronous>, transform_indices = @transform_7, window_bounds = array<i64: 32, 32>}, {pipeline_mode = #tpu.pipeline_mode<synchronous>, transform_indices = @transform_8, window_bounds = array<i64: 1, 32>}, {pipeline_mode = #tpu.pipeline_mode<synchronous>, transform_indices = @transform_9, window_bounds = array<i64: 1, 32>}, {pipeline_mode = #tpu.pipeline_mode<synchronous>, transform_indices = @transform_10, window_bounds = array<i64: 1, 32>}, {transform_indices = @transform_11, window_bounds = array<i64: 1, 8, 32>}]} {
    %c0_i32 = arith.constant 0 : i32
    %0 = arith.cmpi eq, %arg2, %c0_i32 : i32
    %1 = arith.extui %0 : i1 to i32
    %c0_i32_0 = arith.constant 0 : i32
    %2 = arith.cmpi ne, %1, %c0_i32_0 : i32
    scf.if %2 {
      %c0_103 = arith.constant 0 : index
      %c0_104 = arith.constant 0 : index
      %c0_105 = arith.constant 0 : index
      %161 = vector.load %arg3[%c0_103, %c0_104, %c0_105] : memref<1x8x32xf32, #tpu.memory_space<vmem>>, vector<1x8x32xf32>
      %162 = vector.shape_cast %161 : vector<1x8x32xf32> to vector<8x32xf32>
      %c0_106 = arith.constant 0 : index
      %c0_107 = arith.constant 0 : index
      %163 = vector.load %arg7[%c0_106, %c0_107] : memref<32x32xf32, #tpu.memory_space<vmem>>, vector<32x32xf32>
      %cst_108 = arith.constant dense<0.000000e+00> : vector<8x32xf32>
      %164 = tpu.matmul %162, %163, %cst_108 {dimension_numbers = #tpu.dot_dimension_numbers<[1], [0], [0], [1], [0, 0, 1, 1], [], []>} : vector<8x32xf32>, vector<32x32xf32>, vector<8x32xf32> -> vector<8x32xf32>
      %c0_109 = arith.constant 0 : index
      %c0_110 = arith.constant 0 : index
      %165 = vector.load %arg15[%c0_109, %c0_110] : memref<8x32xf32, #tpu.memory_space<vmem>>, vector<8x32xf32>
      tpu.vector_store %arg15[%c0_109, %c0_110], %164 {strides = array<i32>} : memref<8x32xf32, #tpu.memory_space<vmem>>, vector<8x32xf32>,
      %cst_111 = arith.constant 0xFF800000 : f32
      %166 = vector.broadcast %cst_111 : f32 to vector<4x8x1xf32>
      %c0_112 = arith.constant 0 : index
      %c0_113 = arith.constant 0 : index
      %c0_114 = arith.constant 0 : index
      %167 = vector.load %arg16[%c0_112, %c0_113, %c0_114] : memref<4x8x1xf32, #tpu.memory_space<vmem>>, vector<4x8x1xf32>
      tpu.vector_store %arg16[%c0_112, %c0_113, %c0_114], %166 {strides = array<i32>} : memref<4x8x1xf32, #tpu.memory_space<vmem>>, vector<4x8x1xf32>,
      %cst_115 = arith.constant 0.000000e+00 : f32
      %168 = vector.broadcast %cst_115 : f32 to vector<4x8x1xf32>
      %c0_116 = arith.constant 0 : index
      %c0_117 = arith.constant 0 : index
      %c0_118 = arith.constant 0 : index
      %169 = vector.load %arg17[%c0_116, %c0_117, %c0_118] : memref<4x8x1xf32, #tpu.memory_space<vmem>>, vector<4x8x1xf32>
      tpu.vector_store %arg17[%c0_116, %c0_117, %c0_118], %168 {strides = array<i32>} : memref<4x8x1xf32, #tpu.memory_space<vmem>>, vector<4x8x1xf32>,
      %cst_119 = arith.constant 0.000000e+00 : f32
      %170 = vector.broadcast %cst_119 : f32 to vector<4x8x8xf32>
      %c0_120 = arith.constant 0 : index
      %c0_121 = arith.constant 0 : index
      %c0_122 = arith.constant 0 : index
      %171 = vector.load %arg18[%c0_120, %c0_121, %c0_122] : memref<4x8x8xf32, #tpu.memory_space<vmem>>, vector<4x8x8xf32>
      tpu.vector_store %arg18[%c0_120, %c0_121, %c0_122], %170 {strides = array<i32>} : memref<4x8x8xf32, #tpu.memory_space<vmem>>, vector<4x8x8xf32>,
    } else {
    }
    %c0 = arith.constant 0 : index
    %c0_1 = arith.constant 0 : index
    %3 = vector.load %arg8[%c0, %c0_1] : memref<32x32xf32, #tpu.memory_space<vmem>>, vector<32x32xf32>
    %c0_2 = arith.constant 0 : index
    %c0_3 = arith.constant 0 : index
    %c0_4 = arith.constant 0 : index
    %4 = vector.load %arg4[%c0_2, %c0_3, %c0_4] : memref<1x32x8xf32, #tpu.memory_space<vmem>>, vector<1x32x8xf32>
    %5 = vector.shape_cast %4 : vector<1x32x8xf32> to vector<32x8xf32>
    %cst = arith.constant dense<0.000000e+00> : vector<32x8xf32>
    %6 = tpu.matmul %3, %5, %cst {dimension_numbers = #tpu.dot_dimension_numbers<[1], [0], [0], [1], [0, 0, 1, 1], [], []>} : vector<32x32xf32>, vector<32x8xf32>, vector<32x8xf32> -> vector<32x8xf32>
    %c0_5 = arith.constant 0 : index
    %c0_6 = arith.constant 0 : index
    %c0_7 = arith.constant 0 : index
    %7 = vector.load %arg5[%c0_5, %c0_6, %c0_7] : memref<1x8x32xf32, #tpu.memory_space<vmem>>, vector<1x8x32xf32>
    %8 = vector.shape_cast %7 : vector<1x8x32xf32> to vector<8x32xf32>
    %c0_8 = arith.constant 0 : index
    %c0_9 = arith.constant 0 : index
    %9 = vector.load %arg9[%c0_8, %c0_9] : memref<32x32xf32, #tpu.memory_space<vmem>>, vector<32x32xf32>
    %cst_10 = arith.constant dense<0.000000e+00> : vector<8x32xf32>
    %10 = tpu.matmul %8, %9, %cst_10 {dimension_numbers = #tpu.dot_dimension_numbers<[1], [0], [0], [1], [0, 0, 1, 1], [], []>} : vector<8x32xf32>, vector<32x32xf32>, vector<8x32xf32> -> vector<8x32xf32>
    %c0_11 = arith.constant 0 : index
    %c0_12 = arith.constant 0 : index
    %c0_13 = arith.constant 0 : index
    %11 = vector.load %arg6[%c0_11, %c0_12, %c0_13] : memref<1x8x8xf32, #tpu.memory_space<vmem>>, vector<1x8x8xf32>
    %12 = vector.shape_cast %11 : vector<1x8x8xf32> to vector<8x8xf32>
    %c0_14 = arith.constant 0 : index
    %c0_15 = arith.constant 0 : index
    %13 = vector.load %arg15[%c0_14, %c0_15] : memref<8x32xf32, #tpu.memory_space<vmem>>, vector<8x32xf32>
    %14 = vector.extract_strided_slice %13 {offsets = [0, 0], sizes = [8, 8], strides = [1, 1]} : vector<8x32xf32> to vector<8x8xf32>
    %15 = vector.extract_strided_slice %6 {offsets = [0, 0], sizes = [8, 8], strides = [1, 1]} : vector<32x8xf32> to vector<8x8xf32>
    %cst_16 = arith.constant dense<0.000000e+00> : vector<8x8xf32>
    %16 = tpu.matmul %14, %15, %cst_16 {dimension_numbers = #tpu.dot_dimension_numbers<[1], [0], [0], [1], [0, 0, 1, 1], [], []>} : vector<8x8xf32>, vector<8x8xf32>, vector<8x8xf32> -> vector<8x8xf32>
    %17 = arith.addf %16, %12 : vector<8x8xf32>
    %c0_17 = arith.constant 0 : index
    %c0_18 = arith.constant 0 : index
    %c0_19 = arith.constant 0 : index
    %18 = vector.load %arg16[%c0_17, %c0_18, %c0_19] : memref<4x8x1xf32, #tpu.memory_space<vmem>>, vector<1x8x1xf32>
    %19 = vector.shape_cast %18 : vector<1x8x1xf32> to vector<8x1xf32>
    %cst_20 = arith.constant dense<0xFF800000> : vector<8xf32>
    %20 = vector.multi_reduction <maximumf>, %17, %cst_20 [1] : vector<8x8xf32> to vector<8xf32>
    %21 = vector.shape_cast %20 : vector<8xf32> to vector<8x1xf32>
    %22 = arith.maximumf %19, %21 : vector<8x1xf32>
    %23 = arith.subf %19, %22 : vector<8x1xf32>
    %24 = math.exp %23 : vector<8x1xf32>
    %25 = vector.broadcast %22 : vector<8x1xf32> to vector<8x8xf32>
    %26 = arith.subf %17, %25 : vector<8x8xf32>
    %27 = math.exp %26 : vector<8x8xf32>
    %c0_21 = arith.constant 0 : index
    %c0_22 = arith.constant 0 : index
    %c0_23 = arith.constant 0 : index
    %28 = vector.load %arg17[%c0_21, %c0_22, %c0_23] : memref<4x8x1xf32, #tpu.memory_space<vmem>>, vector<1x8x1xf32>
    %29 = vector.shape_cast %28 : vector<1x8x1xf32> to vector<8x1xf32>
    %30 = arith.mulf %24, %29 : vector<8x1xf32>
    %cst_24 = arith.constant dense<0.000000e+00> : vector<8xf32>
    %31 = vector.multi_reduction <add>, %27, %cst_24 [1] : vector<8x8xf32> to vector<8xf32>
    %32 = vector.shape_cast %31 : vector<8xf32> to vector<8x1xf32>
    %33 = arith.addf %30, %32 : vector<8x1xf32>
    %c0_25 = arith.constant 0 : index
    %c0_26 = arith.constant 0 : index
    %c0_27 = arith.constant 0 : index
    %34 = vector.load %arg17[%c0_25, %c0_26, %c0_27] : memref<4x8x1xf32, #tpu.memory_space<vmem>>, vector<1x8x1xf32>
    %35 = vector.shape_cast %34 : vector<1x8x1xf32> to vector<8x1xf32>
    %36 = vector.shape_cast %33 : vector<8x1xf32> to vector<1x8x1xf32>
    tpu.vector_store %arg17[%c0_25, %c0_26, %c0_27], %36 {strides = array<i32>} : memref<4x8x1xf32, #tpu.memory_space<vmem>>, vector<1x8x1xf32>,
    %c0_28 = arith.constant 0 : index
    %c0_29 = arith.constant 0 : index
    %c0_30 = arith.constant 0 : index
    %37 = vector.load %arg18[%c0_28, %c0_29, %c0_30] : memref<4x8x8xf32, #tpu.memory_space<vmem>>, vector<1x8x8xf32>
    %38 = vector.shape_cast %37 : vector<1x8x8xf32> to vector<8x8xf32>
    %39 = vector.broadcast %24 : vector<8x1xf32> to vector<8x8xf32>
    %40 = arith.mulf %39, %38 : vector<8x8xf32>
    %41 = vector.extract_strided_slice %10 {offsets = [0, 0], sizes = [8, 8], strides = [1, 1]} : vector<8x32xf32> to vector<8x8xf32>
    %cst_31 = arith.constant dense<0.000000e+00> : vector<8x8xf32>
    %42 = tpu.matmul %27, %41, %cst_31 {dimension_numbers = #tpu.dot_dimension_numbers<[1], [0], [0], [1], [0, 0, 1, 1], [], []>} : vector<8x8xf32>, vector<8x8xf32>, vector<8x8xf32> -> vector<8x8xf32>
    %43 = arith.addf %40, %42 : vector<8x8xf32>
    %c0_32 = arith.constant 0 : index
    %c0_33 = arith.constant 0 : index
    %c0_34 = arith.constant 0 : index
    %44 = vector.load %arg18[%c0_32, %c0_33, %c0_34] : memref<4x8x8xf32, #tpu.memory_space<vmem>>, vector<1x8x8xf32>
    %45 = vector.shape_cast %44 : vector<1x8x8xf32> to vector<8x8xf32>
    %46 = vector.shape_cast %43 : vector<8x8xf32> to vector<1x8x8xf32>
    tpu.vector_store %arg18[%c0_32, %c0_33, %c0_34], %46 {strides = array<i32>} : memref<4x8x8xf32, #tpu.memory_space<vmem>>, vector<1x8x8xf32>,
    %c0_35 = arith.constant 0 : index
    %c0_36 = arith.constant 0 : index
    %c0_37 = arith.constant 0 : index
    %47 = vector.load %arg16[%c0_35, %c0_36, %c0_37] : memref<4x8x1xf32, #tpu.memory_space<vmem>>, vector<1x8x1xf32>
    %48 = vector.shape_cast %47 : vector<1x8x1xf32> to vector<8x1xf32>
    %49 = vector.shape_cast %22 : vector<8x1xf32> to vector<1x8x1xf32>
    tpu.vector_store %arg16[%c0_35, %c0_36, %c0_37], %49 {strides = array<i32>} : memref<4x8x1xf32, #tpu.memory_space<vmem>>, vector<1x8x1xf32>,
    %50 = vector.extract_strided_slice %13 {offsets = [0, 8], sizes = [8, 8], strides = [1, 1]} : vector<8x32xf32> to vector<8x8xf32>
    %51 = vector.extract_strided_slice %6 {offsets = [8, 0], sizes = [8, 8], strides = [1, 1]} : vector<32x8xf32> to vector<8x8xf32>
    %cst_38 = arith.constant dense<0.000000e+00> : vector<8x8xf32>
    %52 = tpu.matmul %50, %51, %cst_38 {dimension_numbers = #tpu.dot_dimension_numbers<[1], [0], [0], [1], [0, 0, 1, 1], [], []>} : vector<8x8xf32>, vector<8x8xf32>, vector<8x8xf32> -> vector<8x8xf32>
    %53 = arith.addf %52, %12 : vector<8x8xf32>
    %c1 = arith.constant 1 : index
    %c0_39 = arith.constant 0 : index
    %c0_40 = arith.constant 0 : index
    %54 = vector.load %arg16[%c1, %c0_39, %c0_40] : memref<4x8x1xf32, #tpu.memory_space<vmem>>, vector<1x8x1xf32>
    %55 = vector.shape_cast %54 : vector<1x8x1xf32> to vector<8x1xf32>
    %cst_41 = arith.constant dense<0xFF800000> : vector<8xf32>
    %56 = vector.multi_reduction <maximumf>, %53, %cst_41 [1] : vector<8x8xf32> to vector<8xf32>
    %57 = vector.shape_cast %56 : vector<8xf32> to vector<8x1xf32>
    %58 = arith.maximumf %55, %57 : vector<8x1xf32>
    %59 = arith.subf %55, %58 : vector<8x1xf32>
    %60 = math.exp %59 : vector<8x1xf32>
    %61 = vector.broadcast %58 : vector<8x1xf32> to vector<8x8xf32>
    %62 = arith.subf %53, %61 : vector<8x8xf32>
    %63 = math.exp %62 : vector<8x8xf32>
    %c1_42 = arith.constant 1 : index
    %c0_43 = arith.constant 0 : index
    %c0_44 = arith.constant 0 : index
    %64 = vector.load %arg17[%c1_42, %c0_43, %c0_44] : memref<4x8x1xf32, #tpu.memory_space<vmem>>, vector<1x8x1xf32>
    %65 = vector.shape_cast %64 : vector<1x8x1xf32> to vector<8x1xf32>
    %66 = arith.mulf %60, %65 : vector<8x1xf32>
    %cst_45 = arith.constant dense<0.000000e+00> : vector<8xf32>
    %67 = vector.multi_reduction <add>, %63, %cst_45 [1] : vector<8x8xf32> to vector<8xf32>
    %68 = vector.shape_cast %67 : vector<8xf32> to vector<8x1xf32>
    %69 = arith.addf %66, %68 : vector<8x1xf32>
    %c1_46 = arith.constant 1 : index
    %c0_47 = arith.constant 0 : index
    %c0_48 = arith.constant 0 : index
    %70 = vector.load %arg17[%c1_46, %c0_47, %c0_48] : memref<4x8x1xf32, #tpu.memory_space<vmem>>, vector<1x8x1xf32>
    %71 = vector.shape_cast %70 : vector<1x8x1xf32> to vector<8x1xf32>
    %72 = vector.shape_cast %69 : vector<8x1xf32> to vector<1x8x1xf32>
    tpu.vector_store %arg17[%c1_46, %c0_47, %c0_48], %72 {strides = array<i32>} : memref<4x8x1xf32, #tpu.memory_space<vmem>>, vector<1x8x1xf32>,
    %c1_49 = arith.constant 1 : index
    %c0_50 = arith.constant 0 : index
    %c0_51 = arith.constant 0 : index
    %73 = vector.load %arg18[%c1_49, %c0_50, %c0_51] : memref<4x8x8xf32, #tpu.memory_space<vmem>>, vector<1x8x8xf32>
    %74 = vector.shape_cast %73 : vector<1x8x8xf32> to vector<8x8xf32>
    %75 = vector.broadcast %60 : vector<8x1xf32> to vector<8x8xf32>
    %76 = arith.mulf %75, %74 : vector<8x8xf32>
    %77 = vector.extract_strided_slice %10 {offsets = [0, 8], sizes = [8, 8], strides = [1, 1]} : vector<8x32xf32> to vector<8x8xf32>
    %cst_52 = arith.constant dense<0.000000e+00> : vector<8x8xf32>
    %78 = tpu.matmul %63, %77, %cst_52 {dimension_numbers = #tpu.dot_dimension_numbers<[1], [0], [0], [1], [0, 0, 1, 1], [], []>} : vector<8x8xf32>, vector<8x8xf32>, vector<8x8xf32> -> vector<8x8xf32>
    %79 = arith.addf %76, %78 : vector<8x8xf32>
    %c1_53 = arith.constant 1 : index
    %c0_54 = arith.constant 0 : index
    %c0_55 = arith.constant 0 : index
    %80 = vector.load %arg18[%c1_53, %c0_54, %c0_55] : memref<4x8x8xf32, #tpu.memory_space<vmem>>, vector<1x8x8xf32>
    %81 = vector.shape_cast %80 : vector<1x8x8xf32> to vector<8x8xf32>
    %82 = vector.shape_cast %79 : vector<8x8xf32> to vector<1x8x8xf32>
    tpu.vector_store %arg18[%c1_53, %c0_54, %c0_55], %82 {strides = array<i32>} : memref<4x8x8xf32, #tpu.memory_space<vmem>>, vector<1x8x8xf32>,
    %c1_56 = arith.constant 1 : index
    %c0_57 = arith.constant 0 : index
    %c0_58 = arith.constant 0 : index
    %83 = vector.load %arg16[%c1_56, %c0_57, %c0_58] : memref<4x8x1xf32, #tpu.memory_space<vmem>>, vector<1x8x1xf32>
    %84 = vector.shape_cast %83 : vector<1x8x1xf32> to vector<8x1xf32>
    %85 = vector.shape_cast %58 : vector<8x1xf32> to vector<1x8x1xf32>
    tpu.vector_store %arg16[%c1_56, %c0_57, %c0_58], %85 {strides = array<i32>} : memref<4x8x1xf32, #tpu.memory_space<vmem>>, vector<1x8x1xf32>,
    %86 = vector.extract_strided_slice %13 {offsets = [0, 16], sizes = [8, 8], strides = [1, 1]} : vector<8x32xf32> to vector<8x8xf32>
    %87 = vector.extract_strided_slice %6 {offsets = [16, 0], sizes = [8, 8], strides = [1, 1]} : vector<32x8xf32> to vector<8x8xf32>
    %cst_59 = arith.constant dense<0.000000e+00> : vector<8x8xf32>
    %88 = tpu.matmul %86, %87, %cst_59 {dimension_numbers = #tpu.dot_dimension_numbers<[1], [0], [0], [1], [0, 0, 1, 1], [], []>} : vector<8x8xf32>, vector<8x8xf32>, vector<8x8xf32> -> vector<8x8xf32>
    %89 = arith.addf %88, %12 : vector<8x8xf32>
    %c2 = arith.constant 2 : index
    %c0_60 = arith.constant 0 : index
    %c0_61 = arith.constant 0 : index
    %90 = vector.load %arg16[%c2, %c0_60, %c0_61] : memref<4x8x1xf32, #tpu.memory_space<vmem>>, vector<1x8x1xf32>
    %91 = vector.shape_cast %90 : vector<1x8x1xf32> to vector<8x1xf32>
    %cst_62 = arith.constant dense<0xFF800000> : vector<8xf32>
    %92 = vector.multi_reduction <maximumf>, %89, %cst_62 [1] : vector<8x8xf32> to vector<8xf32>
    %93 = vector.shape_cast %92 : vector<8xf32> to vector<8x1xf32>
    %94 = arith.maximumf %91, %93 : vector<8x1xf32>
    %95 = arith.subf %91, %94 : vector<8x1xf32>
    %96 = math.exp %95 : vector<8x1xf32>
    %97 = vector.broadcast %94 : vector<8x1xf32> to vector<8x8xf32>
    %98 = arith.subf %89, %97 : vector<8x8xf32>
    %99 = math.exp %98 : vector<8x8xf32>
    %c2_63 = arith.constant 2 : index
    %c0_64 = arith.constant 0 : index
    %c0_65 = arith.constant 0 : index
    %100 = vector.load %arg17[%c2_63, %c0_64, %c0_65] : memref<4x8x1xf32, #tpu.memory_space<vmem>>, vector<1x8x1xf32>
    %101 = vector.shape_cast %100 : vector<1x8x1xf32> to vector<8x1xf32>
    %102 = arith.mulf %96, %101 : vector<8x1xf32>
    %cst_66 = arith.constant dense<0.000000e+00> : vector<8xf32>
    %103 = vector.multi_reduction <add>, %99, %cst_66 [1] : vector<8x8xf32> to vector<8xf32>
    %104 = vector.shape_cast %103 : vector<8xf32> to vector<8x1xf32>
    %105 = arith.addf %102, %104 : vector<8x1xf32>
    %c2_67 = arith.constant 2 : index
    %c0_68 = arith.constant 0 : index
    %c0_69 = arith.constant 0 : index
    %106 = vector.load %arg17[%c2_67, %c0_68, %c0_69] : memref<4x8x1xf32, #tpu.memory_space<vmem>>, vector<1x8x1xf32>
    %107 = vector.shape_cast %106 : vector<1x8x1xf32> to vector<8x1xf32>
    %108 = vector.shape_cast %105 : vector<8x1xf32> to vector<1x8x1xf32>
    tpu.vector_store %arg17[%c2_67, %c0_68, %c0_69], %108 {strides = array<i32>} : memref<4x8x1xf32, #tpu.memory_space<vmem>>, vector<1x8x1xf32>,
    %c2_70 = arith.constant 2 : index
    %c0_71 = arith.constant 0 : index
    %c0_72 = arith.constant 0 : index
    %109 = vector.load %arg18[%c2_70, %c0_71, %c0_72] : memref<4x8x8xf32, #tpu.memory_space<vmem>>, vector<1x8x8xf32>
    %110 = vector.shape_cast %109 : vector<1x8x8xf32> to vector<8x8xf32>
    %111 = vector.broadcast %96 : vector<8x1xf32> to vector<8x8xf32>
    %112 = arith.mulf %111, %110 : vector<8x8xf32>
    %113 = vector.extract_strided_slice %10 {offsets = [0, 16], sizes = [8, 8], strides = [1, 1]} : vector<8x32xf32> to vector<8x8xf32>
    %cst_73 = arith.constant dense<0.000000e+00> : vector<8x8xf32>
    %114 = tpu.matmul %99, %113, %cst_73 {dimension_numbers = #tpu.dot_dimension_numbers<[1], [0], [0], [1], [0, 0, 1, 1], [], []>} : vector<8x8xf32>, vector<8x8xf32>, vector<8x8xf32> -> vector<8x8xf32>
    %115 = arith.addf %112, %114 : vector<8x8xf32>
    %c2_74 = arith.constant 2 : index
    %c0_75 = arith.constant 0 : index
    %c0_76 = arith.constant 0 : index
    %116 = vector.load %arg18[%c2_74, %c0_75, %c0_76] : memref<4x8x8xf32, #tpu.memory_space<vmem>>, vector<1x8x8xf32>
    %117 = vector.shape_cast %116 : vector<1x8x8xf32> to vector<8x8xf32>
    %118 = vector.shape_cast %115 : vector<8x8xf32> to vector<1x8x8xf32>
    tpu.vector_store %arg18[%c2_74, %c0_75, %c0_76], %118 {strides = array<i32>} : memref<4x8x8xf32, #tpu.memory_space<vmem>>, vector<1x8x8xf32>,
    %c2_77 = arith.constant 2 : index
    %c0_78 = arith.constant 0 : index
    %c0_79 = arith.constant 0 : index
    %119 = vector.load %arg16[%c2_77, %c0_78, %c0_79] : memref<4x8x1xf32, #tpu.memory_space<vmem>>, vector<1x8x1xf32>
    %120 = vector.shape_cast %119 : vector<1x8x1xf32> to vector<8x1xf32>
    %121 = vector.shape_cast %94 : vector<8x1xf32> to vector<1x8x1xf32>
    tpu.vector_store %arg16[%c2_77, %c0_78, %c0_79], %121 {strides = array<i32>} : memref<4x8x1xf32, #tpu.memory_space<vmem>>, vector<1x8x1xf32>,
    %122 = vector.extract_strided_slice %13 {offsets = [0, 24], sizes = [8, 8], strides = [1, 1]} : vector<8x32xf32> to vector<8x8xf32>
    %123 = vector.extract_strided_slice %6 {offsets = [24, 0], sizes = [8, 8], strides = [1, 1]} : vector<32x8xf32> to vector<8x8xf32>
    %cst_80 = arith.constant dense<0.000000e+00> : vector<8x8xf32>
    %124 = tpu.matmul %122, %123, %cst_80 {dimension_numbers = #tpu.dot_dimension_numbers<[1], [0], [0], [1], [0, 0, 1, 1], [], []>} : vector<8x8xf32>, vector<8x8xf32>, vector<8x8xf32> -> vector<8x8xf32>
    %125 = arith.addf %124, %12 : vector<8x8xf32>
    %c3 = arith.constant 3 : index
    %c0_81 = arith.constant 0 : index
    %c0_82 = arith.constant 0 : index
    %126 = vector.load %arg16[%c3, %c0_81, %c0_82] : memref<4x8x1xf32, #tpu.memory_space<vmem>>, vector<1x8x1xf32>
    %127 = vector.shape_cast %126 : vector<1x8x1xf32> to vector<8x1xf32>
    %cst_83 = arith.constant dense<0xFF800000> : vector<8xf32>
    %128 = vector.multi_reduction <maximumf>, %125, %cst_83 [1] : vector<8x8xf32> to vector<8xf32>
    %129 = vector.shape_cast %128 : vector<8xf32> to vector<8x1xf32>
    %130 = arith.maximumf %127, %129 : vector<8x1xf32>
    %131 = arith.subf %127, %130 : vector<8x1xf32>
    %132 = math.exp %131 : vector<8x1xf32>
    %133 = vector.broadcast %130 : vector<8x1xf32> to vector<8x8xf32>
    %134 = arith.subf %125, %133 : vector<8x8xf32>
    %135 = math.exp %134 : vector<8x8xf32>
    %c3_84 = arith.constant 3 : index
    %c0_85 = arith.constant 0 : index
    %c0_86 = arith.constant 0 : index
    %136 = vector.load %arg17[%c3_84, %c0_85, %c0_86] : memref<4x8x1xf32, #tpu.memory_space<vmem>>, vector<1x8x1xf32>
    %137 = vector.shape_cast %136 : vector<1x8x1xf32> to vector<8x1xf32>
    %138 = arith.mulf %132, %137 : vector<8x1xf32>
    %cst_87 = arith.constant dense<0.000000e+00> : vector<8xf32>
    %139 = vector.multi_reduction <add>, %135, %cst_87 [1] : vector<8x8xf32> to vector<8xf32>
    %140 = vector.shape_cast %139 : vector<8xf32> to vector<8x1xf32>
    %141 = arith.addf %138, %140 : vector<8x1xf32>
    %c3_88 = arith.constant 3 : index
    %c0_89 = arith.constant 0 : index
    %c0_90 = arith.constant 0 : index
    %142 = vector.load %arg17[%c3_88, %c0_89, %c0_90] : memref<4x8x1xf32, #tpu.memory_space<vmem>>, vector<1x8x1xf32>
    %143 = vector.shape_cast %142 : vector<1x8x1xf32> to vector<8x1xf32>
    %144 = vector.shape_cast %141 : vector<8x1xf32> to vector<1x8x1xf32>
    tpu.vector_store %arg17[%c3_88, %c0_89, %c0_90], %144 {strides = array<i32>} : memref<4x8x1xf32, #tpu.memory_space<vmem>>, vector<1x8x1xf32>,
    %c3_91 = arith.constant 3 : index
    %c0_92 = arith.constant 0 : index
    %c0_93 = arith.constant 0 : index
    %145 = vector.load %arg18[%c3_91, %c0_92, %c0_93] : memref<4x8x8xf32, #tpu.memory_space<vmem>>, vector<1x8x8xf32>
    %146 = vector.shape_cast %145 : vector<1x8x8xf32> to vector<8x8xf32>
    %147 = vector.broadcast %132 : vector<8x1xf32> to vector<8x8xf32>
    %148 = arith.mulf %147, %146 : vector<8x8xf32>
    %149 = vector.extract_strided_slice %10 {offsets = [0, 24], sizes = [8, 8], strides = [1, 1]} : vector<8x32xf32> to vector<8x8xf32>
    %cst_94 = arith.constant dense<0.000000e+00> : vector<8x8xf32>
    %150 = tpu.matmul %135, %149, %cst_94 {dimension_numbers = #tpu.dot_dimension_numbers<[1], [0], [0], [1], [0, 0, 1, 1], [], []>} : vector<8x8xf32>, vector<8x8xf32>, vector<8x8xf32> -> vector<8x8xf32>
    %151 = arith.addf %148, %150 : vector<8x8xf32>
    %c3_95 = arith.constant 3 : index
    %c0_96 = arith.constant 0 : index
    %c0_97 = arith.constant 0 : index
    %152 = vector.load %arg18[%c3_95, %c0_96, %c0_97] : memref<4x8x8xf32, #tpu.memory_space<vmem>>, vector<1x8x8xf32>
    %153 = vector.shape_cast %152 : vector<1x8x8xf32> to vector<8x8xf32>
    %154 = vector.shape_cast %151 : vector<8x8xf32> to vector<1x8x8xf32>
    tpu.vector_store %arg18[%c3_95, %c0_96, %c0_97], %154 {strides = array<i32>} : memref<4x8x8xf32, #tpu.memory_space<vmem>>, vector<1x8x8xf32>,
    %c3_98 = arith.constant 3 : index
    %c0_99 = arith.constant 0 : index
    %c0_100 = arith.constant 0 : index
    %155 = vector.load %arg16[%c3_98, %c0_99, %c0_100] : memref<4x8x1xf32, #tpu.memory_space<vmem>>, vector<1x8x1xf32>
    %156 = vector.shape_cast %155 : vector<1x8x1xf32> to vector<8x1xf32>
    %157 = vector.shape_cast %130 : vector<8x1xf32> to vector<1x8x1xf32>
    tpu.vector_store %arg16[%c3_98, %c0_99, %c0_100], %157 {strides = array<i32>} : memref<4x8x1xf32, #tpu.memory_space<vmem>>, vector<1x8x1xf32>,
    %c0_i32_101 = arith.constant 0 : i32
    %158 = arith.cmpi eq, %arg2, %c0_i32_101 : i32
    %159 = arith.extui %158 : i1 to i32
    %c0_i32_102 = arith.constant 0 : i32
    %160 = arith.cmpi ne, %159, %c0_i32_102 : i32
    scf.if %160 {
      %c0_103 = arith.constant 0 : index
      %c0_104 = arith.constant 0 : index
      %c0_105 = arith.constant 0 : index
      %161 = vector.load %arg3[%c0_103, %c0_104, %c0_105] : memref<1x8x32xf32, #tpu.memory_space<vmem>>, vector<1x8x32xf32>
      %162 = vector.shape_cast %161 : vector<1x8x32xf32> to vector<8x32xf32>
      %c0_106 = arith.constant 0 : index
      %c0_107 = arith.constant 0 : index
      %163 = vector.load %arg11[%c0_106, %c0_107] : memref<1x32xf32, #tpu.memory_space<vmem>>, vector<1x32xf32>
      %164 = vector.broadcast %163 : vector<1x32xf32> to vector<8x32xf32>
      %165 = arith.addf %162, %164 : vector<8x32xf32>
      %c0_108 = arith.constant 0 : index
      %c0_109 = arith.constant 0 : index
      %166 = vector.load %arg10[%c0_108, %c0_109] : memref<32x32xf32, #tpu.memory_space<vmem>>, vector<32x32xf32>
      %c0_110 = arith.constant 0 : index
      %c0_111 = arith.constant 0 : index
      %c0_112 = arith.constant 0 : index
      %167 = vector.load %arg18[%c0_110, %c0_111, %c0_112] : memref<4x8x8xf32, #tpu.memory_space<vmem>>, vector<1x8x8xf32>
      %168 = vector.shape_cast %167 : vector<1x8x8xf32> to vector<8x8xf32>
      %c0_113 = arith.constant 0 : index
      %c0_114 = arith.constant 0 : index
      %c0_115 = arith.constant 0 : index
      %169 = vector.load %arg17[%c0_113, %c0_114, %c0_115] : memref<4x8x1xf32, #tpu.memory_space<vmem>>, vector<1x8x1xf32>
      %170 = vector.shape_cast %169 : vector<1x8x1xf32> to vector<8x1xf32>
      %171 = tpu.reciprocal %170 {approx = true} : vector<8x1xf32> -> vector<8x1xf32>
      %172 = vector.broadcast %171 : vector<8x1xf32> to vector<8x8xf32>
      %173 = arith.mulf %168, %172 : vector<8x8xf32>
      %174 = vector.extract_strided_slice %166 {offsets = [0, 0], sizes = [8, 32], strides = [1, 1]} : vector<32x32xf32> to vector<8x32xf32>
      %cst_116 = arith.constant dense<0.000000e+00> : vector<8x32xf32>
      %175 = tpu.matmul %173, %174, %cst_116 {dimension_numbers = #tpu.dot_dimension_numbers<[1], [0], [0], [1], [0, 0, 1, 1], [], []>} : vector<8x8xf32>, vector<8x32xf32>, vector<8x32xf32> -> vector<8x32xf32>
      %176 = arith.addf %165, %175 : vector<8x32xf32>
      %c1_117 = arith.constant 1 : index
      %c0_118 = arith.constant 0 : index
      %c0_119 = arith.constant 0 : index
      %177 = vector.load %arg18[%c1_117, %c0_118, %c0_119] : memref<4x8x8xf32, #tpu.memory_space<vmem>>, vector<1x8x8xf32>
      %178 = vector.shape_cast %177 : vector<1x8x8xf32> to vector<8x8xf32>
      %c1_120 = arith.constant 1 : index
      %c0_121 = arith.constant 0 : index
      %c0_122 = arith.constant 0 : index
      %179 = vector.load %arg17[%c1_120, %c0_121, %c0_122] : memref<4x8x1xf32, #tpu.memory_space<vmem>>, vector<1x8x1xf32>
      %180 = vector.shape_cast %179 : vector<1x8x1xf32> to vector<8x1xf32>
      %181 = tpu.reciprocal %180 {approx = true} : vector<8x1xf32> -> vector<8x1xf32>
      %182 = vector.broadcast %181 : vector<8x1xf32> to vector<8x8xf32>
      %183 = arith.mulf %178, %182 : vector<8x8xf32>
      %184 = vector.extract_strided_slice %166 {offsets = [8, 0], sizes = [8, 32], strides = [1, 1]} : vector<32x32xf32> to vector<8x32xf32>
      %cst_123 = arith.constant dense<0.000000e+00> : vector<8x32xf32>
      %185 = tpu.matmul %183, %184, %cst_123 {dimension_numbers = #tpu.dot_dimension_numbers<[1], [0], [0], [1], [0, 0, 1, 1], [], []>} : vector<8x8xf32>, vector<8x32xf32>, vector<8x32xf32> -> vector<8x32xf32>
      %186 = arith.addf %176, %185 : vector<8x32xf32>
      %c2_124 = arith.constant 2 : index
      %c0_125 = arith.constant 0 : index
      %c0_126 = arith.constant 0 : index
      %187 = vector.load %arg18[%c2_124, %c0_125, %c0_126] : memref<4x8x8xf32, #tpu.memory_space<vmem>>, vector<1x8x8xf32>
      %188 = vector.shape_cast %187 : vector<1x8x8xf32> to vector<8x8xf32>
      %c2_127 = arith.constant 2 : index
      %c0_128 = arith.constant 0 : index
      %c0_129 = arith.constant 0 : index
      %189 = vector.load %arg17[%c2_127, %c0_128, %c0_129] : memref<4x8x1xf32, #tpu.memory_space<vmem>>, vector<1x8x1xf32>
      %190 = vector.shape_cast %189 : vector<1x8x1xf32> to vector<8x1xf32>
      %191 = tpu.reciprocal %190 {approx = true} : vector<8x1xf32> -> vector<8x1xf32>
      %192 = vector.broadcast %191 : vector<8x1xf32> to vector<8x8xf32>
      %193 = arith.mulf %188, %192 : vector<8x8xf32>
      %194 = vector.extract_strided_slice %166 {offsets = [16, 0], sizes = [8, 32], strides = [1, 1]} : vector<32x32xf32> to vector<8x32xf32>
      %cst_130 = arith.constant dense<0.000000e+00> : vector<8x32xf32>
      %195 = tpu.matmul %193, %194, %cst_130 {dimension_numbers = #tpu.dot_dimension_numbers<[1], [0], [0], [1], [0, 0, 1, 1], [], []>} : vector<8x8xf32>, vector<8x32xf32>, vector<8x32xf32> -> vector<8x32xf32>
      %196 = arith.addf %186, %195 : vector<8x32xf32>
      %c3_131 = arith.constant 3 : index
      %c0_132 = arith.constant 0 : index
      %c0_133 = arith.constant 0 : index
      %197 = vector.load %arg18[%c3_131, %c0_132, %c0_133] : memref<4x8x8xf32, #tpu.memory_space<vmem>>, vector<1x8x8xf32>
      %198 = vector.shape_cast %197 : vector<1x8x8xf32> to vector<8x8xf32>
      %c3_134 = arith.constant 3 : index
      %c0_135 = arith.constant 0 : index
      %c0_136 = arith.constant 0 : index
      %199 = vector.load %arg17[%c3_134, %c0_135, %c0_136] : memref<4x8x1xf32, #tpu.memory_space<vmem>>, vector<1x8x1xf32>
      %200 = vector.shape_cast %199 : vector<1x8x1xf32> to vector<8x1xf32>
      %201 = tpu.reciprocal %200 {approx = true} : vector<8x1xf32> -> vector<8x1xf32>
      %202 = vector.broadcast %201 : vector<8x1xf32> to vector<8x8xf32>
      %203 = arith.mulf %198, %202 : vector<8x8xf32>
      %204 = vector.extract_strided_slice %166 {offsets = [24, 0], sizes = [8, 32], strides = [1, 1]} : vector<32x32xf32> to vector<8x32xf32>
      %cst_137 = arith.constant dense<0.000000e+00> : vector<8x32xf32>
      %205 = tpu.matmul %203, %204, %cst_137 {dimension_numbers = #tpu.dot_dimension_numbers<[1], [0], [0], [1], [0, 0, 1, 1], [], []>} : vector<8x8xf32>, vector<8x32xf32>, vector<8x32xf32> -> vector<8x32xf32>
      %206 = arith.addf %196, %205 : vector<8x32xf32>
      %c0_138 = arith.constant 0 : index
      %c0_139 = arith.constant 0 : index
      %c0_140 = arith.constant 0 : index
      %207 = vector.load %arg14[%c0_138, %c0_139, %c0_140] : memref<1x8x32xf32, #tpu.memory_space<vmem>>, vector<1x8x32xf32>
      %208 = vector.shape_cast %207 : vector<1x8x32xf32> to vector<8x32xf32>
      %209 = vector.shape_cast %206 : vector<8x32xf32> to vector<1x8x32xf32>
      tpu.vector_store %arg14[%c0_138, %c0_139, %c0_140], %209 {strides = array<i32>} : memref<1x8x32xf32, #tpu.memory_space<vmem>>, vector<1x8x32xf32>,
    } else {
    }
    return
  }
  func.func @transform_0(%arg0: i32, %arg1: i32, %arg2: i32) -> (i32, i32, i32) {
    %c0_i32 = arith.constant 0 : i32
    %c0_i32_0 = arith.constant 0 : i32
    return %arg0, %arg1, %c0_i32 : i32, i32, i32
  }
  func.func @transform_1(%arg0: i32, %arg1: i32, %arg2: i32) -> (i32, i32, i32) {
    %c0_i32 = arith.constant 0 : i32
    %c0_i32_0 = arith.constant 0 : i32
    return %arg0, %c0_i32, %arg2 : i32, i32, i32
  }
  func.func @transform_2(%arg0: i32, %arg1: i32, %arg2: i32) -> (i32, i32, i32) {
    %c0_i32 = arith.constant 0 : i32
    %c0_i32_0 = arith.constant 0 : i32
    return %arg0, %arg2, %c0_i32 : i32, i32, i32
  }
  func.func @transform_3(%arg0: i32, %arg1: i32, %arg2: i32) -> (i32, i32, i32) {
    %c0_i32 = arith.constant 0 : i32
    %c0_i32_0 = arith.constant 0 : i32
    return %c0_i32, %arg1, %arg2 : i32, i32, i32
  }
  func.func @transform_4(%arg0: i32, %arg1: i32, %arg2: i32) -> (i32, i32) {
    %c0_i32 = arith.constant 0 : i32
    %c0_i32_0 = arith.constant 0 : i32
    %c0_i32_1 = arith.constant 0 : i32
    return %c0_i32, %c0_i32_0 : i32, i32
  }
  func.func @transform_5(%arg0: i32, %arg1: i32, %arg2: i32) -> (i32, i32) {
    %c0_i32 = arith.constant 0 : i32
    %c0_i32_0 = arith.constant 0 : i32
    %c0_i32_1 = arith.constant 0 : i32
    return %c0_i32, %c0_i32_0 : i32, i32
  }
  func.func @transform_6(%arg0: i32, %arg1: i32, %arg2: i32) -> (i32, i32) {
    %c0_i32 = arith.constant 0 : i32
    %c0_i32_0 = arith.constant 0 : i32
    %c0_i32_1 = arith.constant 0 : i32
    return %c0_i32, %c0_i32_0 : i32, i32
  }
  func.func @transform_7(%arg0: i32, %arg1: i32, %arg2: i32) -> (i32, i32) {
    %c0_i32 = arith.constant 0 : i32
    %c0_i32_0 = arith.constant 0 : i32
    %c0_i32_1 = arith.constant 0 : i32
    return %c0_i32, %c0_i32_0 : i32, i32
  }
  func.func @transform_8(%arg0: i32, %arg1: i32, %arg2: i32) -> (i32, i32) {
    %c0_i32 = arith.constant 0 : i32
    %c0_i32_0 = arith.constant 0 : i32
    %c0_i32_1 = arith.constant 0 : i32
    return %c0_i32, %c0_i32_0 : i32, i32
  }
  func.func @transform_9(%arg0: i32, %arg1: i32, %arg2: i32) -> (i32, i32) {
    %c0_i32 = arith.constant 0 : i32
    %c0_i32_0 = arith.constant 0 : i32
    %c0_i32_1 = arith.constant 0 : i32
    return %c0_i32, %c0_i32_0 : i32, i32
  }
  func.func @transform_10(%arg0: i32, %arg1: i32, %arg2: i32) -> (i32, i32) {
    %c0_i32 = arith.constant 0 : i32
    %c0_i32_0 = arith.constant 0 : i32
    %c0_i32_1 = arith.constant 0 : i32
    return %c0_i32, %c0_i32_0 : i32, i32
  }
  func.func @transform_11(%arg0: i32, %arg1: i32, %arg2: i32) -> (i32, i32, i32) {
    %c0_i32 = arith.constant 0 : i32
    %c0_i32_0 = arith.constant 0 : i32
    return %arg0, %arg1, %c0_i32 : i32, i32, i32
  }
}

module attributes {stable_mosaic.version = 11 : i64} {
  func.func @_ffn_resident_kernel(%arg0: i32, %arg1: memref<16x32xf32, #tpu.memory_space<vmem>>, %arg2: memref<32x128xf32, #tpu.memory_space<vmem>>, %arg3: memref<1x128xf32, #tpu.memory_space<vmem>>, %arg4: memref<128x32xf32, #tpu.memory_space<vmem>>, %arg5: memref<1x32xf32, #tpu.memory_space<vmem>>, %arg6: memref<1x32xf32, #tpu.memory_space<vmem>>, %arg7: memref<1x32xf32, #tpu.memory_space<vmem>>, %arg8: memref<16x32xf32, #tpu.memory_space<vmem>>, %arg9: memref<16x32xf32, #tpu.memory_space<vmem>>) attributes {dimension_semantics = [#tpu.dimension_semantics<parallel>], iteration_bounds = array<i64: 1>, scalar_prefetch = 0 : i64, scratch_operands = 1 : i64, tpu.core_type = #tpu.core_type<tc>, window_params = [{transform_indices = @transform_0, window_bounds = array<i64: 16, 32>}, {pipeline_mode = #tpu.pipeline_mode<synchronous>, transform_indices = @transform_1, window_bounds = array<i64: 32, 128>}, {pipeline_mode = #tpu.pipeline_mode<synchronous>, transform_indices = @transform_2, window_bounds = array<i64: 1, 128>}, {pipeline_mode = #tpu.pipeline_mode<synchronous>, transform_indices = @transform_3, window_bounds = array<i64: 128, 32>}, {pipeline_mode = #tpu.pipeline_mode<synchronous>, transform_indices = @transform_4, window_bounds = array<i64: 1, 32>}, {pipeline_mode = #tpu.pipeline_mode<synchronous>, transform_indices = @transform_5, window_bounds = array<i64: 1, 32>}, {pipeline_mode = #tpu.pipeline_mode<synchronous>, transform_indices = @transform_6, window_bounds = array<i64: 1, 32>}, {transform_indices = @transform_7, window_bounds = array<i64: 16, 32>}]} {
    %c0 = arith.constant 0 : index
    %c0_0 = arith.constant 0 : index
    %0 = vector.load %arg1[%c0, %c0_0] : memref<16x32xf32, #tpu.memory_space<vmem>>, vector<16x32xf32>
    %cst = arith.constant 0.000000e+00 : f32
    %1 = vector.broadcast %cst : f32 to vector<16x32xf32>
    %c0_1 = arith.constant 0 : index
    %c0_2 = arith.constant 0 : index
    %2 = vector.load %arg9[%c0_1, %c0_2] : memref<16x32xf32, #tpu.memory_space<vmem>>, vector<16x32xf32>
    tpu.vector_store %arg9[%c0_1, %c0_2], %1 {strides = array<i32>} : memref<16x32xf32, #tpu.memory_space<vmem>>, vector<16x32xf32>,
    %c0_3 = arith.constant 0 : index
    %c0_4 = arith.constant 0 : index
    %3 = vector.load %arg2[%c0_3, %c0_4] : memref<32x128xf32, #tpu.memory_space<vmem>>, vector<32x128xf32>
    %cst_5 = arith.constant dense<0.000000e+00> : vector<16x128xf32>
    %4 = tpu.matmul %0, %3, %cst_5 {dimension_numbers = #tpu.dot_dimension_numbers<[1], [0], [0], [1], [0, 0, 1, 1], [], []>} : vector<16x32xf32>, vector<32x128xf32>, vector<16x128xf32> -> vector<16x128xf32>
    %c0_6 = arith.constant 0 : index
    %c0_7 = arith.constant 0 : index
    %5 = vector.load %arg3[%c0_6, %c0_7] : memref<1x128xf32, #tpu.memory_space<vmem>>, vector<1x128xf32>
    %6 = vector.broadcast %5 : vector<1x128xf32> to vector<16x128xf32>
    %7 = arith.addf %4, %6 : vector<16x128xf32>
    %cst_8 = arith.constant 0.000000e+00 : f32
    %8 = vector.broadcast %cst_8 : f32 to vector<16x128xf32>
    %9 = arith.maximumf %7, %8 : vector<16x128xf32>
    %c0_9 = arith.constant 0 : index
    %c0_10 = arith.constant 0 : index
    %10 = vector.load %arg9[%c0_9, %c0_10] : memref<16x32xf32, #tpu.memory_space<vmem>>, vector<16x32xf32>
    %c0_11 = arith.constant 0 : index
    %c0_12 = arith.constant 0 : index
    %11 = vector.load %arg4[%c0_11, %c0_12] : memref<128x32xf32, #tpu.memory_space<vmem>>, vector<128x32xf32>
    %cst_13 = arith.constant dense<0.000000e+00> : vector<16x32xf32>
    %12 = tpu.matmul %9, %11, %cst_13 {dimension_numbers = #tpu.dot_dimension_numbers<[1], [0], [0], [1], [0, 0, 1, 1], [], []>} : vector<16x128xf32>, vector<128x32xf32>, vector<16x32xf32> -> vector<16x32xf32>
    %13 = arith.addf %10, %12 : vector<16x32xf32>
    %c0_14 = arith.constant 0 : index
    %c0_15 = arith.constant 0 : index
    %14 = vector.load %arg9[%c0_14, %c0_15] : memref<16x32xf32, #tpu.memory_space<vmem>>, vector<16x32xf32>
    tpu.vector_store %arg9[%c0_14, %c0_15], %13 {strides = array<i32>} : memref<16x32xf32, #tpu.memory_space<vmem>>, vector<16x32xf32>,
    %c0_16 = arith.constant 0 : index
    %c0_17 = arith.constant 0 : index
    %15 = vector.load %arg9[%c0_16, %c0_17] : memref<16x32xf32, #tpu.memory_space<vmem>>, vector<16x32xf32>
    %c0_18 = arith.constant 0 : index
    %c0_19 = arith.constant 0 : index
    %16 = vector.load %arg5[%c0_18, %c0_19] : memref<1x32xf32, #tpu.memory_space<vmem>>, vector<1x32xf32>
    %17 = vector.broadcast %16 : vector<1x32xf32> to vector<16x32xf32>
    %18 = arith.addf %15, %17 : vector<16x32xf32>
    %19 = arith.addf %18, %0 : vector<16x32xf32>
    %cst_20 = arith.constant dense<0.000000e+00> : vector<16xf32>
    %20 = vector.multi_reduction <add>, %19, %cst_20 [1] : vector<16x32xf32> to vector<16xf32>
    %21 = vector.shape_cast %20 : vector<16xf32> to vector<16x1xf32>
    %cst_21 = arith.constant 3.200000e+01 : f32
    %22 = vector.broadcast %cst_21 : f32 to vector<16x1xf32>
    %23 = arith.divf %21, %22 : vector<16x1xf32>
    %24 = vector.broadcast %23 : vector<16x1xf32> to vector<16x32xf32>
    %25 = arith.subf %19, %24 : vector<16x32xf32>
    %26 = arith.mulf %25, %25 : vector<16x32xf32>
    %cst_22 = arith.constant dense<0.000000e+00> : vector<16xf32>
    %27 = vector.multi_reduction <add>, %26, %cst_22 [1] : vector<16x32xf32> to vector<16xf32>
    %28 = vector.shape_cast %27 : vector<16xf32> to vector<16x1xf32>
    %cst_23 = arith.constant 3.200000e+01 : f32
    %29 = vector.broadcast %cst_23 : f32 to vector<16x1xf32>
    %30 = arith.divf %28, %29 : vector<16x1xf32>
    %31 = vector.broadcast %23 : vector<16x1xf32> to vector<16x32xf32>
    %32 = arith.subf %19, %31 : vector<16x32xf32>
    %cst_24 = arith.constant 9.99999974E-6 : f32
    %33 = vector.broadcast %cst_24 : f32 to vector<16x1xf32>
    %34 = arith.addf %30, %33 : vector<16x1xf32>
    %35 = math.rsqrt %34 : vector<16x1xf32>
    %36 = vector.broadcast %35 : vector<16x1xf32> to vector<16x32xf32>
    %37 = arith.mulf %32, %36 : vector<16x32xf32>
    %c0_25 = arith.constant 0 : index
    %c0_26 = arith.constant 0 : index
    %38 = vector.load %arg6[%c0_25, %c0_26] : memref<1x32xf32, #tpu.memory_space<vmem>>, vector<1x32xf32>
    %39 = vector.broadcast %38 : vector<1x32xf32> to vector<16x32xf32>
    %40 = arith.mulf %37, %39 : vector<16x32xf32>
    %c0_27 = arith.constant 0 : index
    %c0_28 = arith.constant 0 : index
    %41 = vector.load %arg7[%c0_27, %c0_28] : memref<1x32xf32, #tpu.memory_space<vmem>>, vector<1x32xf32>
    %42 = vector.broadcast %41 : vector<1x32xf32> to vector<16x32xf32>
    %43 = arith.addf %40, %42 : vector<16x32xf32>
    %c0_29 = arith.constant 0 : index
    %c0_30 = arith.constant 0 : index
    %44 = vector.load %arg8[%c0_29, %c0_30] : memref<16x32xf32, #tpu.memory_space<vmem>>, vector<16x32xf32>
    tpu.vector_store %arg8[%c0_29, %c0_30], %43 {strides = array<i32>} : memref<16x32xf32, #tpu.memory_space<vmem>>, vector<16x32xf32>,
    return
  }
  func.func @transform_0(%arg0: i32) -> (i32, i32) {
    %c0_i32 = arith.constant 0 : i32
    %c0_i32_0 = arith.constant 0 : i32
    return %arg0, %c0_i32 : i32, i32
  }
  func.func @transform_1(%arg0: i32) -> (i32, i32) {
    %c0_i32 = arith.constant 0 : i32
    %c0_i32_0 = arith.constant 0 : i32
    %c0_i32_1 = arith.constant 0 : i32
    return %c0_i32, %c0_i32_0 : i32, i32
  }
  func.func @transform_2(%arg0: i32) -> (i32, i32) {
    %c0_i32 = arith.constant 0 : i32
    %c0_i32_0 = arith.constant 0 : i32
    %c0_i32_1 = arith.constant 0 : i32
    return %c0_i32, %c0_i32_0 : i32, i32
  }
  func.func @transform_3(%arg0: i32) -> (i32, i32) {
    %c0_i32 = arith.constant 0 : i32
    %c0_i32_0 = arith.constant 0 : i32
    %c0_i32_1 = arith.constant 0 : i32
    return %c0_i32, %c0_i32_0 : i32, i32
  }
  func.func @transform_4(%arg0: i32) -> (i32, i32) {
    %c0_i32 = arith.constant 0 : i32
    %c0_i32_0 = arith.constant 0 : i32
    %c0_i32_1 = arith.constant 0 : i32
    return %c0_i32, %c0_i32_0 : i32, i32
  }
  func.func @transform_5(%arg0: i32) -> (i32, i32) {
    %c0_i32 = arith.constant 0 : i32
    %c0_i32_0 = arith.constant 0 : i32
    %c0_i32_1 = arith.constant 0 : i32
    return %c0_i32, %c0_i32_0 : i32, i32
  }
  func.func @transform_6(%arg0: i32) -> (i32, i32) {
    %c0_i32 = arith.constant 0 : i32
    %c0_i32_0 = arith.constant 0 : i32
    %c0_i32_1 = arith.constant 0 : i32
    return %c0_i32, %c0_i32_0 : i32, i32
  }
  func.func @transform_7(%arg0: i32) -> (i32, i32) {
    %c0_i32 = arith.constant 0 : i32
    %c0_i32_0 = arith.constant 0 : i32
    return %arg0, %c0_i32 : i32, i32
  }
}

module attributes {stable_mosaic.version = 11 : i64} {
  func.func @_flash_attn_kernel(%arg0: i32, %arg1: i32, %arg2: i32, %arg3: memref<1x8x32xf32, #tpu.memory_space<vmem>>, %arg4: memref<1x32x8xf32, #tpu.memory_space<vmem>>, %arg5: memref<1x8x32xf32, #tpu.memory_space<vmem>>, %arg6: memref<1x8x8xf32, #tpu.memory_space<vmem>>, %arg7: memref<32x32xf32, #tpu.memory_space<vmem>>, %arg8: memref<32x32xf32, #tpu.memory_space<vmem>>, %arg9: memref<32x32xf32, #tpu.memory_space<vmem>>, %arg10: memref<32x32xf32, #tpu.memory_space<vmem>>, %arg11: memref<1x32xf32, #tpu.memory_space<vmem>>, %arg12: memref<1x32xf32, #tpu.memory_space<vmem>>, %arg13: memref<1x32xf32, #tpu.memory_space<vmem>>, %arg14: memref<1x8x32xf32, #tpu.memory_space<vmem>>, %arg15: memref<8x32xf32, #tpu.memory_space<vmem>>, %arg16: memref<4x8x1xf32, #tpu.memory_space<vmem>>, %arg17: memref<4x8x1xf32, #tpu.memory_space<vmem>>, %arg18: memref<4x8x8xf32, #tpu.memory_space<vmem>>) attributes {dimension_semantics = [#tpu.dimension_semantics<parallel>, #tpu.dimension_semantics<parallel>, #tpu.dimension_semantics<arbitrary>], iteration_bounds = array<i64: 2, 1, 1>, scalar_prefetch = 0 : i64, scratch_operands = 4 : i64, tpu.core_type = #tpu.core_type<tc>, window_params = [{transform_indices = @transform_0, window_bounds = array<i64: 1, 8, 32>}, {transform_indices = @transform_1, window_bounds = array<i64: 1, 32, 8>}, {transform_indices = @transform_2, window_bounds = array<i64: 1, 8, 32>}, {transform_indices = @transform_3, window_bounds = array<i64: 1, 8, 8>}, {pipeline_mode = #tpu.pipeline_mode<synchronous>, transform_indices = @transform_4, window_bounds = array<i64: 32, 32>}, {pipeline_mode = #tpu.pipeline_mode<synchronous>, transform_indices = @transform_5, window_bounds = array<i64: 32, 32>}, {pipeline_mode = #tpu.pipeline_mode<synchronous>, transform_indices = @transform_6, window_bounds = array<i64: 32, 32>}, {pipeline_mode = #tpu.pipeline_mode<synchronous>, transform_indices = @transform_7, window_bounds = array<i64: 32, 32>}, {pipeline_mode = #tpu.pipeline_mode<synchronous>, transform_indices = @transform_8, window_bounds = array<i64: 1, 32>}, {pipeline_mode = #tpu.pipeline_mode<synchronous>, transform_indices = @transform_9, window_bounds = array<i64: 1, 32>}, {pipeline_mode = #tpu.pipeline_mode<synchronous>, transform_indices = @transform_10, window_bounds = array<i64: 1, 32>}, {transform_indices = @transform_11, window_bounds = array<i64: 1, 8, 32>}]} {
    %c0_i32 = arith.constant 0 : i32
    %0 = arith.cmpi eq, %arg2, %c0_i32 : i32
    %1 = arith.extui %0 : i1 to i32
    %c0_i32_0 = arith.constant 0 : i32
    %2 = arith.cmpi ne, %1, %c0_i32_0 : i32
    scf.if %2 {
      %c0_103 = arith.constant 0 : index
      %c0_104 = arith.constant 0 : index
      %c0_105 = arith.constant 0 : index
      %161 = vector.load %arg3[%c0_103, %c0_104, %c0_105] : memref<1x8x32xf32, #tpu.memory_space<vmem>>, vector<1x8x32xf32>
      %162 = vector.shape_cast %161 : vector<1x8x32xf32> to vector<8x32xf32>
      %c0_106 = arith.constant 0 : index
      %c0_107 = arith.constant 0 : index
      %163 = vector.load %arg7[%c0_106, %c0_107] : memref<32x32xf32, #tpu.memory_space<vmem>>, vector<32x32xf32>
      %cst_108 = arith.constant dense<0.000000e+00> : vector<8x32xf32>
      %164 = tpu.matmul %162, %163, %cst_108 {dimension_numbers = #tpu.dot_dimension_numbers<[1], [0], [0], [1], [0, 0, 1, 1], [], []>} : vector<8x32xf32>, vector<32x32xf32>, vector<8x32xf32> -> vector<8x32xf32>
      %c0_109 = arith.constant 0 : index
      %c0_110 = arith.constant 0 : index
      %165 = vector.load %arg15[%c0_109, %c0_110] : memref<8x32xf32, #tpu.memory_space<vmem>>, vector<8x32xf32>
      tpu.vector_store %arg15[%c0_109, %c0_110], %164 {strides = array<i32>} : memref<8x32xf32, #tpu.memory_space<vmem>>, vector<8x32xf32>,
      %cst_111 = arith.constant 0xFF800000 : f32
      %166 = vector.broadcast %cst_111 : f32 to vector<4x8x1xf32>
      %c0_112 = arith.constant 0 : index
      %c0_113 = arith.constant 0 : index
      %c0_114 = arith.constant 0 : index
      %167 = vector.load %arg16[%c0_112, %c0_113, %c0_114] : memref<4x8x1xf32, #tpu.memory_space<vmem>>, vector<4x8x1xf32>
      tpu.vector_store %arg16[%c0_112, %c0_113, %c0_114], %166 {strides = array<i32>} : memref<4x8x1xf32, #tpu.memory_space<vmem>>, vector<4x8x1xf32>,
      %cst_115 = arith.constant 0.000000e+00 : f32
      %168 = vector.broadcast %cst_115 : f32 to vector<4x8x1xf32>
      %c0_116 = arith.constant 0 : index
      %c0_117 = arith.constant 0 : index
      %c0_118 = arith.constant 0 : index
      %169 = vector.load %arg17[%c0_116, %c0_117, %c0_118] : memref<4x8x1xf32, #tpu.memory_space<vmem>>, vector<4x8x1xf32>
      tpu.vector_store %arg17[%c0_116, %c0_117, %c0_118], %168 {strides = array<i32>} : memref<4x8x1xf32, #tpu.memory_space<vmem>>, vector<4x8x1xf32>,
      %cst_119 = arith.constant 0.000000e+00 : f32
      %170 = vector.broadcast %cst_119 : f32 to vector<4x8x8xf32>
      %c0_120 = arith.constant 0 : index
      %c0_121 = arith.constant 0 : index
      %c0_122 = arith.constant 0 : index
      %171 = vector.load %arg18[%c0_120, %c0_121, %c0_122] : memref<4x8x8xf32, #tpu.memory_space<vmem>>, vector<4x8x8xf32>
      tpu.vector_store %arg18[%c0_120, %c0_121, %c0_122], %170 {strides = array<i32>} : memref<4x8x8xf32, #tpu.memory_space<vmem>>, vector<4x8x8xf32>,
    } else {
    }
    %c0 = arith.constant 0 : index
    %c0_1 = arith.constant 0 : index
    %3 = vector.load %arg8[%c0, %c0_1] : memref<32x32xf32, #tpu.memory_space<vmem>>, vector<32x32xf32>
    %c0_2 = arith.constant 0 : index
    %c0_3 = arith.constant 0 : index
    %c0_4 = arith.constant 0 : index
    %4 = vector.load %arg4[%c0_2, %c0_3, %c0_4] : memref<1x32x8xf32, #tpu.memory_space<vmem>>, vector<1x32x8xf32>
    %5 = vector.shape_cast %4 : vector<1x32x8xf32> to vector<32x8xf32>
    %cst = arith.constant dense<0.000000e+00> : vector<32x8xf32>
    %6 = tpu.matmul %3, %5, %cst {dimension_numbers = #tpu.dot_dimension_numbers<[1], [0], [0], [1], [0, 0, 1, 1], [], []>} : vector<32x32xf32>, vector<32x8xf32>, vector<32x8xf32> -> vector<32x8xf32>
    %c0_5 = arith.constant 0 : index
    %c0_6 = arith.constant 0 : index
    %c0_7 = arith.constant 0 : index
    %7 = vector.load %arg5[%c0_5, %c0_6, %c0_7] : memref<1x8x32xf32, #tpu.memory_space<vmem>>, vector<1x8x32xf32>
    %8 = vector.shape_cast %7 : vector<1x8x32xf32> to vector<8x32xf32>
    %c0_8 = arith.constant 0 : index
    %c0_9 = arith.constant 0 : index
    %9 = vector.load %arg9[%c0_8, %c0_9] : memref<32x32xf32, #tpu.memory_space<vmem>>, vector<32x32xf32>
    %cst_10 = arith.constant dense<0.000000e+00> : vector<8x32xf32>
    %10 = tpu.matmul %8, %9, %cst_10 {dimension_numbers = #tpu.dot_dimension_numbers<[1], [0], [0], [1], [0, 0, 1, 1], [], []>} : vector<8x32xf32>, vector<32x32xf32>, vector<8x32xf32> -> vector<8x32xf32>
    %c0_11 = arith.constant 0 : index
    %c0_12 = arith.constant 0 : index
    %c0_13 = arith.constant 0 : index
    %11 = vector.load %arg6[%c0_11, %c0_12, %c0_13] : memref<1x8x8xf32, #tpu.memory_space<vmem>>, vector<1x8x8xf32>
    %12 = vector.shape_cast %11 : vector<1x8x8xf32> to vector<8x8xf32>
    %c0_14 = arith.constant 0 : index
    %c0_15 = arith.constant 0 : index
    %13 = vector.load %arg15[%c0_14, %c0_15] : memref<8x32xf32, #tpu.memory_space<vmem>>, vector<8x32xf32>
    %14 = vector.extract_strided_slice %13 {offsets = [0, 0], sizes = [8, 8], strides = [1, 1]} : vector<8x32xf32> to vector<8x8xf32>
    %15 = vector.extract_strided_slice %6 {offsets = [0, 0], sizes = [8, 8], strides = [1, 1]} : vector<32x8xf32> to vector<8x8xf32>
    %cst_16 = arith.constant dense<0.000000e+00> : vector<8x8xf32>
    %16 = tpu.matmul %14, %15, %cst_16 {dimension_numbers = #tpu.dot_dimension_numbers<[1], [0], [0], [1], [0, 0, 1, 1], [], []>} : vector<8x8xf32>, vector<8x8xf32>, vector<8x8xf32> -> vector<8x8xf32>
    %17 = arith.addf %16, %12 : vector<8x8xf32>
    %c0_17 = arith.constant 0 : index
    %c0_18 = arith.constant 0 : index
    %c0_19 = arith.constant 0 : index
    %18 = vector.load %arg16[%c0_17, %c0_18, %c0_19] : memref<4x8x1xf32, #tpu.memory_space<vmem>>, vector<1x8x1xf32>
    %19 = vector.shape_cast %18 : vector<1x8x1xf32> to vector<8x1xf32>
    %cst_20 = arith.constant dense<0xFF800000> : vector<8xf32>
    %20 = vector.multi_reduction <maximumf>, %17, %cst_20 [1] : vector<8x8xf32> to vector<8xf32>
    %21 = vector.shape_cast %20 : vector<8xf32> to vector<8x1xf32>
    %22 = arith.maximumf %19, %21 : vector<8x1xf32>
    %23 = arith.subf %19, %22 : vector<8x1xf32>
    %24 = math.exp %23 : vector<8x1xf32>
    %25 = vector.broadcast %22 : vector<8x1xf32> to vector<8x8xf32>
    %26 = arith.subf %17, %25 : vector<8x8xf32>
    %27 = math.exp %26 : vector<8x8xf32>
    %c0_21 = arith.constant 0 : index
    %c0_22 = arith.constant 0 : index
    %c0_23 = arith.constant 0 : index
    %28 = vector.load %arg17[%c0_21, %c0_22, %c0_23] : memref<4x8x1xf32, #tpu.memory_space<vmem>>, vector<1x8x1xf32>
    %29 = vector.shape_cast %28 : vector<1x8x1xf32> to vector<8x1xf32>
    %30 = arith.mulf %24, %29 : vector<8x1xf32>
    %cst_24 = arith.constant dense<0.000000e+00> : vector<8xf32>
    %31 = vector.multi_reduction <add>, %27, %cst_24 [1] : vector<8x8xf32> to vector<8xf32>
    %32 = vector.shape_cast %31 : vector<8xf32> to vector<8x1xf32>
    %33 = arith.addf %30, %32 : vector<8x1xf32>
    %c0_25 = arith.constant 0 : index
    %c0_26 = arith.constant 0 : index
    %c0_27 = arith.constant 0 : index
    %34 = vector.load %arg17[%c0_25, %c0_26, %c0_27] : memref<4x8x1xf32, #tpu.memory_space<vmem>>, vector<1x8x1xf32>
    %35 = vector.shape_cast %34 : vector<1x8x1xf32> to vector<8x1xf32>
    %36 = vector.shape_cast %33 : vector<8x1xf32> to vector<1x8x1xf32>
    tpu.vector_store %arg17[%c0_25, %c0_26, %c0_27], %36 {strides = array<i32>} : memref<4x8x1xf32, #tpu.memory_space<vmem>>, vector<1x8x1xf32>,
    %c0_28 = arith.constant 0 : index
    %c0_29 = arith.constant 0 : index
    %c0_30 = arith.constant 0 : index
    %37 = vector.load %arg18[%c0_28, %c0_29, %c0_30] : memref<4x8x8xf32, #tpu.memory_space<vmem>>, vector<1x8x8xf32>
    %38 = vector.shape_cast %37 : vector<1x8x8xf32> to vector<8x8xf32>
    %39 = vector.broadcast %24 : vector<8x1xf32> to vector<8x8xf32>
    %40 = arith.mulf %39, %38 : vector<8x8xf32>
    %41 = vector.extract_strided_slice %10 {offsets = [0, 0], sizes = [8, 8], strides = [1, 1]} : vector<8x32xf32> to vector<8x8xf32>
    %cst_31 = arith.constant dense<0.000000e+00> : vector<8x8xf32>
    %42 = tpu.matmul %27, %41, %cst_31 {dimension_numbers = #tpu.dot_dimension_numbers<[1], [0], [0], [1], [0, 0, 1, 1], [], []>} : vector<8x8xf32>, vector<8x8xf32>, vector<8x8xf32> -> vector<8x8xf32>
    %43 = arith.addf %40, %42 : vector<8x8xf32>
    %c0_32 = arith.constant 0 : index
    %c0_33 = arith.constant 0 : index
    %c0_34 = arith.constant 0 : index
    %44 = vector.load %arg18[%c0_32, %c0_33, %c0_34] : memref<4x8x8xf32, #tpu.memory_space<vmem>>, vector<1x8x8xf32>
    %45 = vector.shape_cast %44 : vector<1x8x8xf32> to vector<8x8xf32>
    %46 = vector.shape_cast %43 : vector<8x8xf32> to vector<1x8x8xf32>
    tpu.vector_store %arg18[%c0_32, %c0_33, %c0_34], %46 {strides = array<i32>} : memref<4x8x8xf32, #tpu.memory_space<vmem>>, vector<1x8x8xf32>,
    %c0_35 = arith.constant 0 : index
    %c0_36 = arith.constant 0 : index
    %c0_37 = arith.constant 0 : index
    %47 = vector.load %arg16[%c0_35, %c0_36, %c0_37] : memref<4x8x1xf32, #tpu.memory_space<vmem>>, vector<1x8x1xf32>
    %48 = vector.shape_cast %47 : vector<1x8x1xf32> to vector<8x1xf32>
    %49 = vector.shape_cast %22 : vector<8x1xf32> to vector<1x8x1xf32>
    tpu.vector_store %arg16[%c0_35, %c0_36, %c0_37], %49 {strides = array<i32>} : memref<4x8x1xf32, #tpu.memory_space<vmem>>, vector<1x8x1xf32>,
    %50 = vector.extract_strided_slice %13 {offsets = [0, 8], sizes = [8, 8], strides = [1, 1]} : vector<8x32xf32> to vector<8x8xf32>
    %51 = vector.extract_strided_slice %6 {offsets = [8, 0], sizes = [8, 8], strides = [1, 1]} : vector<32x8xf32> to vector<8x8xf32>
    %cst_38 = arith.constant dense<0.000000e+00> : vector<8x8xf32>
    %52 = tpu.matmul %50, %51, %cst_38 {dimension_numbers = #tpu.dot_dimension_numbers<[1], [0], [0], [1], [0, 0, 1, 1], [], []>} : vector<8x8xf32>, vector<8x8xf32>, vector<8x8xf32> -> vector<8x8xf32>
    %53 = arith.addf %52, %12 : vector<8x8xf32>
    %c1 = arith.constant 1 : index
    %c0_39 = arith.constant 0 : index
    %c0_40 = arith.constant 0 : index
    %54 = vector.load %arg16[%c1, %c0_39, %c0_40] : memref<4x8x1xf32, #tpu.memory_space<vmem>>, vector<1x8x1xf32>
    %55 = vector.shape_cast %54 : vector<1x8x1xf32> to vector<8x1xf32>
    %cst_41 = arith.constant dense<0xFF800000> : vector<8xf32>
    %56 = vector.multi_reduction <maximumf>, %53, %cst_41 [1] : vector<8x8xf32> to vector<8xf32>
    %57 = vector.shape_cast %56 : vector<8xf32> to vector<8x1xf32>
    %58 = arith.maximumf %55, %57 : vector<8x1xf32>
    %59 = arith.subf %55, %58 : vector<8x1xf32>
    %60 = math.exp %59 : vector<8x1xf32>
    %61 = vector.broadcast %58 : vector<8x1xf32> to vector<8x8xf32>
    %62 = arith.subf %53, %61 : vector<8x8xf32>
    %63 = math.exp %62 : vector<8x8xf32>
    %c1_42 = arith.constant 1 : index
    %c0_43 = arith.constant 0 : index
    %c0_44 = arith.constant 0 : index
    %64 = vector.load %arg17[%c1_42, %c0_43, %c0_44] : memref<4x8x1xf32, #tpu.memory_space<vmem>>, vector<1x8x1xf32>
    %65 = vector.shape_cast %64 : vector<1x8x1xf32> to vector<8x1xf32>
    %66 = arith.mulf %60, %65 : vector<8x1xf32>
    %cst_45 = arith.constant dense<0.000000e+00> : vector<8xf32>
    %67 = vector.multi_reduction <add>, %63, %cst_45 [1] : vector<8x8xf32> to vector<8xf32>
    %68 = vector.shape_cast %67 : vector<8xf32> to vector<8x1xf32>
    %69 = arith.addf %66, %68 : vector<8x1xf32>
    %c1_46 = arith.constant 1 : index
    %c0_47 = arith.constant 0 : index
    %c0_48 = arith.constant 0 : index
    %70 = vector.load %arg17[%c1_46, %c0_47, %c0_48] : memref<4x8x1xf32, #tpu.memory_space<vmem>>, vector<1x8x1xf32>
    %71 = vector.shape_cast %70 : vector<1x8x1xf32> to vector<8x1xf32>
    %72 = vector.shape_cast %69 : vector<8x1xf32> to vector<1x8x1xf32>
    tpu.vector_store %arg17[%c1_46, %c0_47, %c0_48], %72 {strides = array<i32>} : memref<4x8x1xf32, #tpu.memory_space<vmem>>, vector<1x8x1xf32>,
    %c1_49 = arith.constant 1 : index
    %c0_50 = arith.constant 0 : index
    %c0_51 = arith.constant 0 : index
    %73 = vector.load %arg18[%c1_49, %c0_50, %c0_51] : memref<4x8x8xf32, #tpu.memory_space<vmem>>, vector<1x8x8xf32>
    %74 = vector.shape_cast %73 : vector<1x8x8xf32> to vector<8x8xf32>
    %75 = vector.broadcast %60 : vector<8x1xf32> to vector<8x8xf32>
    %76 = arith.mulf %75, %74 : vector<8x8xf32>
    %77 = vector.extract_strided_slice %10 {offsets = [0, 8], sizes = [8, 8], strides = [1, 1]} : vector<8x32xf32> to vector<8x8xf32>
    %cst_52 = arith.constant dense<0.000000e+00> : vector<8x8xf32>
    %78 = tpu.matmul %63, %77, %cst_52 {dimension_numbers = #tpu.dot_dimension_numbers<[1], [0], [0], [1], [0, 0, 1, 1], [], []>} : vector<8x8xf32>, vector<8x8xf32>, vector<8x8xf32> -> vector<8x8xf32>
    %79 = arith.addf %76, %78 : vector<8x8xf32>
    %c1_53 = arith.constant 1 : index
    %c0_54 = arith.constant 0 : index
    %c0_55 = arith.constant 0 : index
    %80 = vector.load %arg18[%c1_53, %c0_54, %c0_55] : memref<4x8x8xf32, #tpu.memory_space<vmem>>, vector<1x8x8xf32>
    %81 = vector.shape_cast %80 : vector<1x8x8xf32> to vector<8x8xf32>
    %82 = vector.shape_cast %79 : vector<8x8xf32> to vector<1x8x8xf32>
    tpu.vector_store %arg18[%c1_53, %c0_54, %c0_55], %82 {strides = array<i32>} : memref<4x8x8xf32, #tpu.memory_space<vmem>>, vector<1x8x8xf32>,
    %c1_56 = arith.constant 1 : index
    %c0_57 = arith.constant 0 : index
    %c0_58 = arith.constant 0 : index
    %83 = vector.load %arg16[%c1_56, %c0_57, %c0_58] : memref<4x8x1xf32, #tpu.memory_space<vmem>>, vector<1x8x1xf32>
    %84 = vector.shape_cast %83 : vector<1x8x1xf32> to vector<8x1xf32>
    %85 = vector.shape_cast %58 : vector<8x1xf32> to vector<1x8x1xf32>
    tpu.vector_store %arg16[%c1_56, %c0_57, %c0_58], %85 {strides = array<i32>} : memref<4x8x1xf32, #tpu.memory_space<vmem>>, vector<1x8x1xf32>,
    %86 = vector.extract_strided_slice %13 {offsets = [0, 16], sizes = [8, 8], strides = [1, 1]} : vector<8x32xf32> to vector<8x8xf32>
    %87 = vector.extract_strided_slice %6 {offsets = [16, 0], sizes = [8, 8], strides = [1, 1]} : vector<32x8xf32> to vector<8x8xf32>
    %cst_59 = arith.constant dense<0.000000e+00> : vector<8x8xf32>
    %88 = tpu.matmul %86, %87, %cst_59 {dimension_numbers = #tpu.dot_dimension_numbers<[1], [0], [0], [1], [0, 0, 1, 1], [], []>} : vector<8x8xf32>, vector<8x8xf32>, vector<8x8xf32> -> vector<8x8xf32>
    %89 = arith.addf %88, %12 : vector<8x8xf32>
    %c2 = arith.constant 2 : index
    %c0_60 = arith.constant 0 : index
    %c0_61 = arith.constant 0 : index
    %90 = vector.load %arg16[%c2, %c0_60, %c0_61] : memref<4x8x1xf32, #tpu.memory_space<vmem>>, vector<1x8x1xf32>
    %91 = vector.shape_cast %90 : vector<1x8x1xf32> to vector<8x1xf32>
    %cst_62 = arith.constant dense<0xFF800000> : vector<8xf32>
    %92 = vector.multi_reduction <maximumf>, %89, %cst_62 [1] : vector<8x8xf32> to vector<8xf32>
    %93 = vector.shape_cast %92 : vector<8xf32> to vector<8x1xf32>
    %94 = arith.maximumf %91, %93 : vector<8x1xf32>
    %95 = arith.subf %91, %94 : vector<8x1xf32>
    %96 = math.exp %95 : vector<8x1xf32>
    %97 = vector.broadcast %94 : vector<8x1xf32> to vector<8x8xf32>
    %98 = arith.subf %89, %97 : vector<8x8xf32>
    %99 = math.exp %98 : vector<8x8xf32>
    %c2_63 = arith.constant 2 : index
    %c0_64 = arith.constant 0 : index
    %c0_65 = arith.constant 0 : index
    %100 = vector.load %arg17[%c2_63, %c0_64, %c0_65] : memref<4x8x1xf32, #tpu.memory_space<vmem>>, vector<1x8x1xf32>
    %101 = vector.shape_cast %100 : vector<1x8x1xf32> to vector<8x1xf32>
    %102 = arith.mulf %96, %101 : vector<8x1xf32>
    %cst_66 = arith.constant dense<0.000000e+00> : vector<8xf32>
    %103 = vector.multi_reduction <add>, %99, %cst_66 [1] : vector<8x8xf32> to vector<8xf32>
    %104 = vector.shape_cast %103 : vector<8xf32> to vector<8x1xf32>
    %105 = arith.addf %102, %104 : vector<8x1xf32>
    %c2_67 = arith.constant 2 : index
    %c0_68 = arith.constant 0 : index
    %c0_69 = arith.constant 0 : index
    %106 = vector.load %arg17[%c2_67, %c0_68, %c0_69] : memref<4x8x1xf32, #tpu.memory_space<vmem>>, vector<1x8x1xf32>
    %107 = vector.shape_cast %106 : vector<1x8x1xf32> to vector<8x1xf32>
    %108 = vector.shape_cast %105 : vector<8x1xf32> to vector<1x8x1xf32>
    tpu.vector_store %arg17[%c2_67, %c0_68, %c0_69], %108 {strides = array<i32>} : memref<4x8x1xf32, #tpu.memory_space<vmem>>, vector<1x8x1xf32>,
    %c2_70 = arith.constant 2 : index
    %c0_71 = arith.constant 0 : index
    %c0_72 = arith.constant 0 : index
    %109 = vector.load %arg18[%c2_70, %c0_71, %c0_72] : memref<4x8x8xf32, #tpu.memory_space<vmem>>, vector<1x8x8xf32>
    %110 = vector.shape_cast %109 : vector<1x8x8xf32> to vector<8x8xf32>
    %111 = vector.broadcast %96 : vector<8x1xf32> to vector<8x8xf32>
    %112 = arith.mulf %111, %110 : vector<8x8xf32>
    %113 = vector.extract_strided_slice %10 {offsets = [0, 16], sizes = [8, 8], strides = [1, 1]} : vector<8x32xf32> to vector<8x8xf32>
    %cst_73 = arith.constant dense<0.000000e+00> : vector<8x8xf32>
    %114 = tpu.matmul %99, %113, %cst_73 {dimension_numbers = #tpu.dot_dimension_numbers<[1], [0], [0], [1], [0, 0, 1, 1], [], []>} : vector<8x8xf32>, vector<8x8xf32>, vector<8x8xf32> -> vector<8x8xf32>
    %115 = arith.addf %112, %114 : vector<8x8xf32>
    %c2_74 = arith.constant 2 : index
    %c0_75 = arith.constant 0 : index
    %c0_76 = arith.constant 0 : index
    %116 = vector.load %arg18[%c2_74, %c0_75, %c0_76] : memref<4x8x8xf32, #tpu.memory_space<vmem>>, vector<1x8x8xf32>
    %117 = vector.shape_cast %116 : vector<1x8x8xf32> to vector<8x8xf32>
    %118 = vector.shape_cast %115 : vector<8x8xf32> to vector<1x8x8xf32>
    tpu.vector_store %arg18[%c2_74, %c0_75, %c0_76], %118 {strides = array<i32>} : memref<4x8x8xf32, #tpu.memory_space<vmem>>, vector<1x8x8xf32>,
    %c2_77 = arith.constant 2 : index
    %c0_78 = arith.constant 0 : index
    %c0_79 = arith.constant 0 : index
    %119 = vector.load %arg16[%c2_77, %c0_78, %c0_79] : memref<4x8x1xf32, #tpu.memory_space<vmem>>, vector<1x8x1xf32>
    %120 = vector.shape_cast %119 : vector<1x8x1xf32> to vector<8x1xf32>
    %121 = vector.shape_cast %94 : vector<8x1xf32> to vector<1x8x1xf32>
    tpu.vector_store %arg16[%c2_77, %c0_78, %c0_79], %121 {strides = array<i32>} : memref<4x8x1xf32, #tpu.memory_space<vmem>>, vector<1x8x1xf32>,
    %122 = vector.extract_strided_slice %13 {offsets = [0, 24], sizes = [8, 8], strides = [1, 1]} : vector<8x32xf32> to vector<8x8xf32>
    %123 = vector.extract_strided_slice %6 {offsets = [24, 0], sizes = [8, 8], strides = [1, 1]} : vector<32x8xf32> to vector<8x8xf32>
    %cst_80 = arith.constant dense<0.000000e+00> : vector<8x8xf32>
    %124 = tpu.matmul %122, %123, %cst_80 {dimension_numbers = #tpu.dot_dimension_numbers<[1], [0], [0], [1], [0, 0, 1, 1], [], []>} : vector<8x8xf32>, vector<8x8xf32>, vector<8x8xf32> -> vector<8x8xf32>
    %125 = arith.addf %124, %12 : vector<8x8xf32>
    %c3 = arith.constant 3 : index
    %c0_81 = arith.constant 0 : index
    %c0_82 = arith.constant 0 : index
    %126 = vector.load %arg16[%c3, %c0_81, %c0_82] : memref<4x8x1xf32, #tpu.memory_space<vmem>>, vector<1x8x1xf32>
    %127 = vector.shape_cast %126 : vector<1x8x1xf32> to vector<8x1xf32>
    %cst_83 = arith.constant dense<0xFF800000> : vector<8xf32>
    %128 = vector.multi_reduction <maximumf>, %125, %cst_83 [1] : vector<8x8xf32> to vector<8xf32>
    %129 = vector.shape_cast %128 : vector<8xf32> to vector<8x1xf32>
    %130 = arith.maximumf %127, %129 : vector<8x1xf32>
    %131 = arith.subf %127, %130 : vector<8x1xf32>
    %132 = math.exp %131 : vector<8x1xf32>
    %133 = vector.broadcast %130 : vector<8x1xf32> to vector<8x8xf32>
    %134 = arith.subf %125, %133 : vector<8x8xf32>
    %135 = math.exp %134 : vector<8x8xf32>
    %c3_84 = arith.constant 3 : index
    %c0_85 = arith.constant 0 : index
    %c0_86 = arith.constant 0 : index
    %136 = vector.load %arg17[%c3_84, %c0_85, %c0_86] : memref<4x8x1xf32, #tpu.memory_space<vmem>>, vector<1x8x1xf32>
    %137 = vector.shape_cast %136 : vector<1x8x1xf32> to vector<8x1xf32>
    %138 = arith.mulf %132, %137 : vector<8x1xf32>
    %cst_87 = arith.constant dense<0.000000e+00> : vector<8xf32>
    %139 = vector.multi_reduction <add>, %135, %cst_87 [1] : vector<8x8xf32> to vector<8xf32>
    %140 = vector.shape_cast %139 : vector<8xf32> to vector<8x1xf32>
    %141 = arith.addf %138, %140 : vector<8x1xf32>
    %c3_88 = arith.constant 3 : index
    %c0_89 = arith.constant 0 : index
    %c0_90 = arith.constant 0 : index
    %142 = vector.load %arg17[%c3_88, %c0_89, %c0_90] : memref<4x8x1xf32, #tpu.memory_space<vmem>>, vector<1x8x1xf32>
    %143 = vector.shape_cast %142 : vector<1x8x1xf32> to vector<8x1xf32>
    %144 = vector.shape_cast %141 : vector<8x1xf32> to vector<1x8x1xf32>
    tpu.vector_store %arg17[%c3_88, %c0_89, %c0_90], %144 {strides = array<i32>} : memref<4x8x1xf32, #tpu.memory_space<vmem>>, vector<1x8x1xf32>,
    %c3_91 = arith.constant 3 : index
    %c0_92 = arith.constant 0 : index
    %c0_93 = arith.constant 0 : index
    %145 = vector.load %arg18[%c3_91, %c0_92, %c0_93] : memref<4x8x8xf32, #tpu.memory_space<vmem>>, vector<1x8x8xf32>
    %146 = vector.shape_cast %145 : vector<1x8x8xf32> to vector<8x8xf32>
    %147 = vector.broadcast %132 : vector<8x1xf32> to vector<8x8xf32>
    %148 = arith.mulf %147, %146 : vector<8x8xf32>
    %149 = vector.extract_strided_slice %10 {offsets = [0, 24], sizes = [8, 8], strides = [1, 1]} : vector<8x32xf32> to vector<8x8xf32>
    %cst_94 = arith.constant dense<0.000000e+00> : vector<8x8xf32>
    %150 = tpu.matmul %135, %149, %cst_94 {dimension_numbers = #tpu.dot_dimension_numbers<[1], [0], [0], [1], [0, 0, 1, 1], [], []>} : vector<8x8xf32>, vector<8x8xf32>, vector<8x8xf32> -> vector<8x8xf32>
    %151 = arith.addf %148, %150 : vector<8x8xf32>
    %c3_95 = arith.constant 3 : index
    %c0_96 = arith.constant 0 : index
    %c0_97 = arith.constant 0 : index
    %152 = vector.load %arg18[%c3_95, %c0_96, %c0_97] : memref<4x8x8xf32, #tpu.memory_space<vmem>>, vector<1x8x8xf32>
    %153 = vector.shape_cast %152 : vector<1x8x8xf32> to vector<8x8xf32>
    %154 = vector.shape_cast %151 : vector<8x8xf32> to vector<1x8x8xf32>
    tpu.vector_store %arg18[%c3_95, %c0_96, %c0_97], %154 {strides = array<i32>} : memref<4x8x8xf32, #tpu.memory_space<vmem>>, vector<1x8x8xf32>,
    %c3_98 = arith.constant 3 : index
    %c0_99 = arith.constant 0 : index
    %c0_100 = arith.constant 0 : index
    %155 = vector.load %arg16[%c3_98, %c0_99, %c0_100] : memref<4x8x1xf32, #tpu.memory_space<vmem>>, vector<1x8x1xf32>
    %156 = vector.shape_cast %155 : vector<1x8x1xf32> to vector<8x1xf32>
    %157 = vector.shape_cast %130 : vector<8x1xf32> to vector<1x8x1xf32>
    tpu.vector_store %arg16[%c3_98, %c0_99, %c0_100], %157 {strides = array<i32>} : memref<4x8x1xf32, #tpu.memory_space<vmem>>, vector<1x8x1xf32>,
    %c0_i32_101 = arith.constant 0 : i32
    %158 = arith.cmpi eq, %arg2, %c0_i32_101 : i32
    %159 = arith.extui %158 : i1 to i32
    %c0_i32_102 = arith.constant 0 : i32
    %160 = arith.cmpi ne, %159, %c0_i32_102 : i32
    scf.if %160 {
      %c0_103 = arith.constant 0 : index
      %c0_104 = arith.constant 0 : index
      %c0_105 = arith.constant 0 : index
      %161 = vector.load %arg3[%c0_103, %c0_104, %c0_105] : memref<1x8x32xf32, #tpu.memory_space<vmem>>, vector<1x8x32xf32>
      %162 = vector.shape_cast %161 : vector<1x8x32xf32> to vector<8x32xf32>
      %c0_106 = arith.constant 0 : index
      %c0_107 = arith.constant 0 : index
      %163 = vector.load %arg11[%c0_106, %c0_107] : memref<1x32xf32, #tpu.memory_space<vmem>>, vector<1x32xf32>
      %164 = vector.broadcast %163 : vector<1x32xf32> to vector<8x32xf32>
      %165 = arith.addf %162, %164 : vector<8x32xf32>
      %c0_108 = arith.constant 0 : index
      %c0_109 = arith.constant 0 : index
      %166 = vector.load %arg10[%c0_108, %c0_109] : memref<32x32xf32, #tpu.memory_space<vmem>>, vector<32x32xf32>
      %c0_110 = arith.constant 0 : index
      %c0_111 = arith.constant 0 : index
      %c0_112 = arith.constant 0 : index
      %167 = vector.load %arg18[%c0_110, %c0_111, %c0_112] : memref<4x8x8xf32, #tpu.memory_space<vmem>>, vector<1x8x8xf32>
      %168 = vector.shape_cast %167 : vector<1x8x8xf32> to vector<8x8xf32>
      %c0_113 = arith.constant 0 : index
      %c0_114 = arith.constant 0 : index
      %c0_115 = arith.constant 0 : index
      %169 = vector.load %arg17[%c0_113, %c0_114, %c0_115] : memref<4x8x1xf32, #tpu.memory_space<vmem>>, vector<1x8x1xf32>
      %170 = vector.shape_cast %169 : vector<1x8x1xf32> to vector<8x1xf32>
      %171 = tpu.reciprocal %170 {approx = true} : vector<8x1xf32> -> vector<8x1xf32>
      %172 = vector.broadcast %171 : vector<8x1xf32> to vector<8x8xf32>
      %173 = arith.mulf %168, %172 : vector<8x8xf32>
      %174 = vector.extract_strided_slice %166 {offsets = [0, 0], sizes = [8, 32], strides = [1, 1]} : vector<32x32xf32> to vector<8x32xf32>
      %cst_116 = arith.constant dense<0.000000e+00> : vector<8x32xf32>
      %175 = tpu.matmul %173, %174, %cst_116 {dimension_numbers = #tpu.dot_dimension_numbers<[1], [0], [0], [1], [0, 0, 1, 1], [], []>} : vector<8x8xf32>, vector<8x32xf32>, vector<8x32xf32> -> vector<8x32xf32>
      %176 = arith.addf %165, %175 : vector<8x32xf32>
      %c1_117 = arith.constant 1 : index
      %c0_118 = arith.constant 0 : index
      %c0_119 = arith.constant 0 : index
      %177 = vector.load %arg18[%c1_117, %c0_118, %c0_119] : memref<4x8x8xf32, #tpu.memory_space<vmem>>, vector<1x8x8xf32>
      %178 = vector.shape_cast %177 : vector<1x8x8xf32> to vector<8x8xf32>
      %c1_120 = arith.constant 1 : index
      %c0_121 = arith.constant 0 : index
      %c0_122 = arith.constant 0 : index
      %179 = vector.load %arg17[%c1_120, %c0_121, %c0_122] : memref<4x8x1xf32, #tpu.memory_space<vmem>>, vector<1x8x1xf32>
      %180 = vector.shape_cast %179 : vector<1x8x1xf32> to vector<8x1xf32>
      %181 = tpu.reciprocal %180 {approx = true} : vector<8x1xf32> -> vector<8x1xf32>
      %182 = vector.broadcast %181 : vector<8x1xf32> to vector<8x8xf32>
      %183 = arith.mulf %178, %182 : vector<8x8xf32>
      %184 = vector.extract_strided_slice %166 {offsets = [8, 0], sizes = [8, 32], strides = [1, 1]} : vector<32x32xf32> to vector<8x32xf32>
      %cst_123 = arith.constant dense<0.000000e+00> : vector<8x32xf32>
      %185 = tpu.matmul %183, %184, %cst_123 {dimension_numbers = #tpu.dot_dimension_numbers<[1], [0], [0], [1], [0, 0, 1, 1], [], []>} : vector<8x8xf32>, vector<8x32xf32>, vector<8x32xf32> -> vector<8x32xf32>
      %186 = arith.addf %176, %185 : vector<8x32xf32>
      %c2_124 = arith.constant 2 : index
      %c0_125 = arith.constant 0 : index
      %c0_126 = arith.constant 0 : index
      %187 = vector.load %arg18[%c2_124, %c0_125, %c0_126] : memref<4x8x8xf32, #tpu.memory_space<vmem>>, vector<1x8x8xf32>
      %188 = vector.shape_cast %187 : vector<1x8x8xf32> to vector<8x8xf32>
      %c2_127 = arith.constant 2 : index
      %c0_128 = arith.constant 0 : index
      %c0_129 = arith.constant 0 : index
      %189 = vector.load %arg17[%c2_127, %c0_128, %c0_129] : memref<4x8x1xf32, #tpu.memory_space<vmem>>, vector<1x8x1xf32>
      %190 = vector.shape_cast %189 : vector<1x8x1xf32> to vector<8x1xf32>
      %191 = tpu.reciprocal %190 {approx = true} : vector<8x1xf32> -> vector<8x1xf32>
      %192 = vector.broadcast %191 : vector<8x1xf32> to vector<8x8xf32>
      %193 = arith.mulf %188, %192 : vector<8x8xf32>
      %194 = vector.extract_strided_slice %166 {offsets = [16, 0], sizes = [8, 32], strides = [1, 1]} : vector<32x32xf32> to vector<8x32xf32>
      %cst_130 = arith.constant dense<0.000000e+00> : vector<8x32xf32>
      %195 = tpu.matmul %193, %194, %cst_130 {dimension_numbers = #tpu.dot_dimension_numbers<[1], [0], [0], [1], [0, 0, 1, 1], [], []>} : vector<8x8xf32>, vector<8x32xf32>, vector<8x32xf32> -> vector<8x32xf32>
      %196 = arith.addf %186, %195 : vector<8x32xf32>
      %c3_131 = arith.constant 3 : index
      %c0_132 = arith.constant 0 : index
      %c0_133 = arith.constant 0 : index
      %197 = vector.load %arg18[%c3_131, %c0_132, %c0_133] : memref<4x8x8xf32, #tpu.memory_space<vmem>>, vector<1x8x8xf32>
      %198 = vector.shape_cast %197 : vector<1x8x8xf32> to vector<8x8xf32>
      %c3_134 = arith.constant 3 : index
      %c0_135 = arith.constant 0 : index
      %c0_136 = arith.constant 0 : index
      %199 = vector.load %arg17[%c3_134, %c0_135, %c0_136] : memref<4x8x1xf32, #tpu.memory_space<vmem>>, vector<1x8x1xf32>
      %200 = vector.shape_cast %199 : vector<1x8x1xf32> to vector<8x1xf32>
      %201 = tpu.reciprocal %200 {approx = true} : vector<8x1xf32> -> vector<8x1xf32>
      %202 = vector.broadcast %201 : vector<8x1xf32> to vector<8x8xf32>
      %203 = arith.mulf %198, %202 : vector<8x8xf32>
      %204 = vector.extract_strided_slice %166 {offsets = [24, 0], sizes = [8, 32], strides = [1, 1]} : vector<32x32xf32> to vector<8x32xf32>
      %cst_137 = arith.constant dense<0.000000e+00> : vector<8x32xf32>
      %205 = tpu.matmul %203, %204, %cst_137 {dimension_numbers = #tpu.dot_dimension_numbers<[1], [0], [0], [1], [0, 0, 1, 1], [], []>} : vector<8x8xf32>, vector<8x32xf32>, vector<8x32xf32> -> vector<8x32xf32>
      %206 = arith.addf %196, %205 : vector<8x32xf32>
      %cst_138 = arith.constant dense<0.000000e+00> : vector<8xf32>
      %207 = vector.multi_reduction <add>, %206, %cst_138 [1] : vector<8x32xf32> to vector<8xf32>
      %208 = vector.shape_cast %207 : vector<8xf32> to vector<8x1xf32>
      %cst_139 = arith.constant 3.200000e+01 : f32
      %209 = vector.broadcast %cst_139 : f32 to vector<8x1xf32>
      %210 = arith.divf %208, %209 : vector<8x1xf32>
      %211 = vector.broadcast %210 : vector<8x1xf32> to vector<8x32xf32>
      %212 = arith.subf %206, %211 : vector<8x32xf32>
      %213 = arith.mulf %212, %212 : vector<8x32xf32>
      %cst_140 = arith.constant dense<0.000000e+00> : vector<8xf32>
      %214 = vector.multi_reduction <add>, %213, %cst_140 [1] : vector<8x32xf32> to vector<8xf32>
      %215 = vector.shape_cast %214 : vector<8xf32> to vector<8x1xf32>
      %cst_141 = arith.constant 3.200000e+01 : f32
      %216 = vector.broadcast %cst_141 : f32 to vector<8x1xf32>
      %217 = arith.divf %215, %216 : vector<8x1xf32>
      %218 = vector.broadcast %210 : vector<8x1xf32> to vector<8x32xf32>
      %219 = arith.subf %206, %218 : vector<8x32xf32>
      %cst_142 = arith.constant 9.99999974E-6 : f32
      %220 = vector.broadcast %cst_142 : f32 to vector<8x1xf32>
      %221 = arith.addf %217, %220 : vector<8x1xf32>
      %222 = math.rsqrt %221 : vector<8x1xf32>
      %223 = vector.broadcast %222 : vector<8x1xf32> to vector<8x32xf32>
      %224 = arith.mulf %219, %223 : vector<8x32xf32>
      %c0_143 = arith.constant 0 : index
      %c0_144 = arith.constant 0 : index
      %225 = vector.load %arg12[%c0_143, %c0_144] : memref<1x32xf32, #tpu.memory_space<vmem>>, vector<1x32xf32>
      %226 = vector.broadcast %225 : vector<1x32xf32> to vector<8x32xf32>
      %227 = arith.mulf %224, %226 : vector<8x32xf32>
      %c0_145 = arith.constant 0 : index
      %c0_146 = arith.constant 0 : index
      %228 = vector.load %arg13[%c0_145, %c0_146] : memref<1x32xf32, #tpu.memory_space<vmem>>, vector<1x32xf32>
      %229 = vector.broadcast %228 : vector<1x32xf32> to vector<8x32xf32>
      %230 = arith.addf %227, %229 : vector<8x32xf32>
      %c0_147 = arith.constant 0 : index
      %c0_148 = arith.constant 0 : index
      %c0_149 = arith.constant 0 : index
      %231 = vector.load %arg14[%c0_147, %c0_148, %c0_149] : memref<1x8x32xf32, #tpu.memory_space<vmem>>, vector<1x8x32xf32>
      %232 = vector.shape_cast %231 : vector<1x8x32xf32> to vector<8x32xf32>
      %233 = vector.shape_cast %230 : vector<8x32xf32> to vector<1x8x32xf32>
      tpu.vector_store %arg14[%c0_147, %c0_148, %c0_149], %233 {strides = array<i32>} : memref<1x8x32xf32, #tpu.memory_space<vmem>>, vector<1x8x32xf32>,
    } else {
    }
    return
  }
  func.func @transform_0(%arg0: i32, %arg1: i32, %arg2: i32) -> (i32, i32, i32) {
    %c0_i32 = arith.constant 0 : i32
    %c0_i32_0 = arith.constant 0 : i32
    return %arg0, %arg1, %c0_i32 : i32, i32, i32
  }
  func.func @transform_1(%arg0: i32, %arg1: i32, %arg2: i32) -> (i32, i32, i32) {
    %c0_i32 = arith.constant 0 : i32
    %c0_i32_0 = arith.constant 0 : i32
    return %arg0, %c0_i32, %arg2 : i32, i32, i32
  }
  func.func @transform_2(%arg0: i32, %arg1: i32, %arg2: i32) -> (i32, i32, i32) {
    %c0_i32 = arith.constant 0 : i32
    %c0_i32_0 = arith.constant 0 : i32
    return %arg0, %arg2, %c0_i32 : i32, i32, i32
  }
  func.func @transform_3(%arg0: i32, %arg1: i32, %arg2: i32) -> (i32, i32, i32) {
    %c0_i32 = arith.constant 0 : i32
    return %arg0, %arg1, %arg2 : i32, i32, i32
  }
  func.func @transform_4(%arg0: i32, %arg1: i32, %arg2: i32) -> (i32, i32) {
    %c0_i32 = arith.constant 0 : i32
    %c0_i32_0 = arith.constant 0 : i32
    %c0_i32_1 = arith.constant 0 : i32
    return %c0_i32, %c0_i32_0 : i32, i32
  }
  func.func @transform_5(%arg0: i32, %arg1: i32, %arg2: i32) -> (i32, i32) {
    %c0_i32 = arith.constant 0 : i32
    %c0_i32_0 = arith.constant 0 : i32
    %c0_i32_1 = arith.constant 0 : i32
    return %c0_i32, %c0_i32_0 : i32, i32
  }
  func.func @transform_6(%arg0: i32, %arg1: i32, %arg2: i32) -> (i32, i32) {
    %c0_i32 = arith.constant 0 : i32
    %c0_i32_0 = arith.constant 0 : i32
    %c0_i32_1 = arith.constant 0 : i32
    return %c0_i32, %c0_i32_0 : i32, i32
  }
  func.func @transform_7(%arg0: i32, %arg1: i32, %arg2: i32) -> (i32, i32) {
    %c0_i32 = arith.constant 0 : i32
    %c0_i32_0 = arith.constant 0 : i32
    %c0_i32_1 = arith.constant 0 : i32
    return %c0_i32, %c0_i32_0 : i32, i32
  }
  func.func @transform_8(%arg0: i32, %arg1: i32, %arg2: i32) -> (i32, i32) {
    %c0_i32 = arith.constant 0 : i32
    %c0_i32_0 = arith.constant 0 : i32
    %c0_i32_1 = arith.constant 0 : i32
    return %c0_i32, %c0_i32_0 : i32, i32
  }
  func.func @transform_9(%arg0: i32, %arg1: i32, %arg2: i32) -> (i32, i32) {
    %c0_i32 = arith.constant 0 : i32
    %c0_i32_0 = arith.constant 0 : i32
    %c0_i32_1 = arith.constant 0 : i32
    return %c0_i32, %c0_i32_0 : i32, i32
  }
  func.func @transform_10(%arg0: i32, %arg1: i32, %arg2: i32) -> (i32, i32) {
    %c0_i32 = arith.constant 0 : i32
    %c0_i32_0 = arith.constant 0 : i32
    %c0_i32_1 = arith.constant 0 : i32
    return %c0_i32, %c0_i32_0 : i32, i32
  }
  func.func @transform_11(%arg0: i32, %arg1: i32, %arg2: i32) -> (i32, i32, i32) {
    %c0_i32 = arith.constant 0 : i32
    %c0_i32_0 = arith.constant 0 : i32
    return %arg0, %arg1, %c0_i32 : i32, i32, i32
  }
}

</mosaic_0001>

<llo_original>
// kernel: decoder_block.5
$region0: #{decoder_block.5}
  #allocation0 [shape = 'u32[]', space=smem, size = 0x4, offset = 0x4, fixed_abs, tag = 'smem constant byte address 0x4 - core index']
  #allocation1 [shape = 'u32[72,128]{1,0:T(1,128)}', space=vmem, size = 0x9000, scoped, tag = 'internal scratch']
  #allocation2 [shape = 'f32[16,32]{1,0:T(8,128)}', space=vmem, size = 0x2000, scoped, tag = 'scratch operand']
  %s0 = inlined_call_operand.vmem [shape: f32[16,32], index: 0, kind: input, shape index: {}]
  %s1 = inlined_call_operand.vmem [shape: f32[32,128], index: 1, kind: input, shape index: {}]
  %s2 = inlined_call_operand.vmem [shape: f32[1,128], index: 2, kind: input, shape index: {}]
  %s3 = inlined_call_operand.vmem [shape: f32[128,32], index: 3, kind: input, shape index: {}]
  %s4 = inlined_call_operand.vmem [shape: f32[1,32], index: 4, kind: input, shape index: {}]
  %s5 = inlined_call_operand.vmem [shape: f32[1,32], index: 5, kind: input, shape index: {}]
  %s6 = inlined_call_operand.vmem [shape: f32[1,32], index: 6, kind: input, shape index: {}]
  %s7 = inlined_call_operand.hbm [shape: f32[16,32], index: 7, kind: output, shape index: {}]
  %s8 = sld [smem:[#allocation0]]
  $region38: #{decoder_block.5} parent=0
    _
  %s10 = ssub.s32 1, %s8
  %s11 = scalar_select 0, %s10, %s8
  $region1: #{decoder_block.5} parent=0
    #allocation3 [shape = 'u8[8192]{0}', space=vmem, size = 0x2000, scoped, tag = 'output window, operand 0, single buffered']
    #allocation4 [shape = 's32[1]{0}', space=sflag, size = 0x4, scoped, tag = 'scoped memory for decoder_block.5']
    %12 = vsyncpa [#allocation4], 0
    // Predicated region
    $region2: #{decoder_block.5} parent=1 // pred_check
      _
    $region3: #{decoder_block.5} parent=1 // pred_check_branch
      %14 = sbr.rel (0) target = $region5
    $region4: #{decoder_block.5} parent=1 // pred_region
      _
    $region5: #{decoder_block.5} parent=1 // pred_fallthru
      _
    // Predicated region
    $region6: #{decoder_block.5} parent=1 // pred_check
      _
    $region7: #{decoder_block.5} parent=1 // pred_check_branch
      %16 = sbr.rel (0) target = $region9
    $region8: #{decoder_block.5} parent=1 // pred_region
      _
    $region9: #{decoder_block.5} parent=1 // pred_fallthru
      _
    // Predicated region
    $region10: #{decoder_block.5} parent=1 // pred_check
      _
    $region11: #{decoder_block.5} parent=1 // pred_check_branch
      %18 = sbr.rel (0) target = $region13
    $region12: #{decoder_block.5} parent=1 // pred_region
      _
    $region13: #{decoder_block.5} parent=1 // pred_fallthru
      _
    // Predicated region
    $region14: #{decoder_block.5} parent=1 // pred_check
      _
    $region15: #{decoder_block.5} parent=1 // pred_check_branch
      %20 = sbr.rel (0) target = $region17
    $region16: #{decoder_block.5} parent=1 // pred_region
      _
    $region17: #{decoder_block.5} parent=1 // pred_fallthru
      _
    // Predicated region
    $region18: #{decoder_block.5} parent=1 // pred_check
      _
    $region19: #{decoder_block.5} parent=1 // pred_check_branch
      %22 = sbr.rel (0) target = $region21
    $region20: #{decoder_block.5} parent=1 // pred_region
      _
    $region21: #{decoder_block.5} parent=1 // pred_fallthru
      _
    // Predicated region
    $region22: #{decoder_block.5} parent=1 // pred_check
      _
    $region23: #{decoder_block.5} parent=1 // pred_check_branch
      %24 = sbr.rel (0) target = $region25
    $region24: #{decoder_block.5} parent=1 // pred_region
      _
    $region25: #{decoder_block.5} parent=1 // pred_fallthru
      _
    // Predicated region
    $region26: #{decoder_block.5} parent=1 // pred_check
      _
    $region27: #{decoder_block.5} parent=1 // pred_check_branch
      %26 = sbr.rel (0) target = $region29
    $region28: #{decoder_block.5} parent=1 // pred_region
      _
    $region29: #{decoder_block.5} parent=1 // pred_fallthru
      _
    %v27 = vld [vmem:[%s0] sm:$0xff]
    %v28 = vld [vmem:[%s0 + $0x8] sm:$0xff]
    %vm29 = vcmask 261120
    %30 = vst.msk [vmem:[#allocation2] sm:$0xff] %vm29, 0.0
    %31 = vst.msk [vmem:[#allocation2 + $0x8] sm:$0xff] %vm29, 0.0
    %v32 = vld [vmem:[%s1] sm:$0xff]
    %v33 = vld [vmem:[%s1 + $0x8] sm:$0xff]
    %v34 = vld [vmem:[%s1 + $0x10] sm:$0xff]
    %v35 = vld [vmem:[%s1 + $0x18] sm:$0xff]
    %v36 = vld [vmem:[%s2] sm:$0x1]
    %v38 = vperm.slane %v36, 0
    %v41 = vsel %vm29, %v27, 0
    %v44 = vsel %vm29, %v28, 0
    %46 = vmatpush.msra.mxu0 0.0
    %47 = vmatpush.msra.mxu0 0.0
    %48 = vmatpush.msra.mxu0 0.0
    %49 = vmatpush.msra.mxu0 0.0
    %50 = vmatpush.msra.mxu0 0.0
    %51 = vmatpush.msra.mxu0 0.0
    %52 = vmatpush.msra.mxu0 0.0
    %53 = vmatpush.msra.mxu0 0.0
    %54 = vmatpush.msra.mxu0 0.0
    %55 = vmatpush.msra.mxu0 0.0
    %56 = vmatpush.msra.mxu0 0.0
    %57 = vmatpush.msra.mxu0 0.0
    %58 = vmatpush.msra.mxu0 %v35
    %59 = vmatpush.msra.mxu0 %v34
    %60 = vmatpush.msra.mxu0 %v33
    %61 = vmatpush.msra.mxu0 %v32
    %62 = vmatmul.f32.gmra.mxu0 %v41
    %v63 = vpop.f32.mrf.mxu0
    %v64 = vadd.f32 %v38, %v63
    %65 = vmatmul.f32.gmra.mxu0 %v44
    %v66 = vpop.f32.mrf.mxu0
    %v67 = vadd.f32 %v38, %v66
    %68 = vdwg.mxu0
    %v69 = vmax.f32 %v64, 0.0
    %v70 = vmax.f32 %v67, 0.0
    %v71 = vld [vmem:[#allocation2] sm:$0xff]
    %v72 = vld [vmem:[#allocation2 + $0x8] sm:$0xff]
    %v73 = vld [vmem:[%s3] sm:$0xff]
    %v74 = vld [vmem:[%s3 + $0x8] sm:$0xff]
    %v75 = vld [vmem:[%s3 + $0x10] sm:$0xff]
    %v76 = vld [vmem:[%s3 + $0x18] sm:$0xff]
    %v77 = vld [vmem:[%s3 + $0x20] sm:$0xff]
    %v78 = vld [vmem:[%s3 + $0x28] sm:$0xff]
    %v79 = vld [vmem:[%s3 + $0x30] sm:$0xff]
    %v80 = vld [vmem:[%s3 + $0x38] sm:$0xff]
    %v81 = vld [vmem:[%s3 + $0x40] sm:$0xff]
    %v82 = vld [vmem:[%s3 + $0x48] sm:$0xff]
    %v83 = vld [vmem:[%s3 + $0x50] sm:$0xff]
    %v84 = vld [vmem:[%s3 + $0x58] sm:$0xff]
    %v85 = vld [vmem:[%s3 + $0x60] sm:$0xff]
    %v86 = vld [vmem:[%s3 + $0x68] sm:$0xff]
    %v87 = vld [vmem:[%s3 + $0x70] sm:$0xff]
    %v88 = vld [vmem:[%s3 + $0x78] sm:$0xff]
    %89 = vmatpush.msra.mxu0 %v88
    %90 = vmatpush.msra.mxu0 %v87
    %91 = vmatpush.msra.mxu0 %v86
    %92 = vmatpush.msra.mxu0 %v85
    %93 = vmatpush.msra.mxu0 %v84
    %94 = vmatpush.msra.mxu0 %v83
    %95 = vmatpush.msra.mxu0 %v82
    %96 = vmatpush.msra.mxu0 %v81
    %97 = vmatpush.msra.mxu0 %v80
    %98 = vmatpush.msra.mxu0 %v79
    %99 = vmatpush.msra.mxu0 %v78
    %100 = vmatpush.msra.mxu0 %v77
    %101 = vmatpush.msra.mxu0 %v76
    %102 = vmatpush.msra.mxu0 %v75
    %103 = vmatpush.msra.mxu0 %v74
    %104 = vmatpush.msra.mxu0 %v73
    %105 = vmatmul.f32.gmra.mxu0 %v69
    %v106 = vpop.f32.mrf.mxu0
    %v107 = vadd.f32 0.0, %v106
    %108 = vmatmul.f32.gmra.mxu0 %v70
    %v109 = vpop.f32.mrf.mxu0
    %v110 = vadd.f32 0.0, %v109
    %111 = vdwg.mxu0
    %v112 = vadd.f32 %v71, %v107
    %v113 = vadd.f32 %v72, %v110
    %114 = vst.msk [vmem:[#allocation2] sm:$0xff] %vm29, %v112
    %115 = vst.msk [vmem:[#allocation2 + $0x8] sm:$0xff] %vm29, %v113
    %v116 = vld [vmem:[#allocation2] sm:$0xff]
    %v117 = vld [vmem:[#allocation2 + $0x8] sm:$0xff]
    %v118 = vld [vmem:[%s4] sm:$0x1]
    %v120 = vperm.slane %v118, 0
    %v122 = vadd.f32 %v116, %v120
    %v123 = vadd.f32 %v117, %v120
    %v124 = vadd.f32 %v122, %v27
    %v125 = vadd.f32 %v123, %v28
    %v126 = vsel %vm29, %v124, 0.0
    %127 = vadd.xlane.f32.xlu0 %v126
    %v128 = vpop.xlane.xlu0 %127
    %v129 = vsel %vm29, %v125, 0.0
    %130 = vadd.xlane.f32.xlu0 %v129
    %v131 = vpop.xlane.xlu0 %130
    %v132 = vrcp.pop 32.0
    %v133 = vmul.f32 32.0, %v132
    %v134 = vsub.f32 1.0, %v133
    %v135 = vmul.f32 %v132, %v134
    %v136 = vadd.f32 %v132, %v135
    %vm137 = vweird.f32 %v132
    %v138 = vsel %vm137, %v132, %v136
    %v139 = vmul.f32 %v128, %v138
    %v140 = vmul.f32 %v131, %v138
    %v141 = vsub.f32 %v124, %v139
    %v142 = vsub.f32 %v125, %v140
    %v143 = vmul.f32 %v141, %v141
    %v144 = vmul.f32 %v142, %v142
    %v145 = vsel %vm29, %v143, 0.0
    %146 = vadd.xlane.f32.xlu0 %v145
    %v147 = vpop.xlane.xlu0 %146
    %v148 = vsel %vm29, %v144, 0.0
    %149 = vadd.xlane.f32.xlu0 %v148
    %v150 = vpop.xlane.xlu0 %149
    %v151 = vmul.f32 %v147, %v138
    %v152 = vmul.f32 %v150, %v138
    %v153 = vadd.f32 %v151, 1e-05
    %v154 = vadd.f32 %v152, 1e-05
    %v155 = vrsqrt.pop %v153
    %v156 = vmul.f32 %v155, %v153
    %v157 = vmul.f32 %v156, %v155
    %v158 = vmul.f32 0.5, %v157
    %v159 = vsub.f32 1.5, %v158
    %v160 = vmul.f32 %v155, %v159
    %vm161 = vweird.f32 %v153
    %vm162 = vweird.f32 %v155
    %vm163 = vmor %vm161, %vm162
    %v164 = vsel %vm163, %v155, %v160
    %v165 = vrsqrt.pop %v154
    %v166 = vmul.f32 %v165, %v154
    %v167 = vmul.f32 %v166, %v165
    %v168 = vmul.f32 0.5, %v167
    %v169 = vsub.f32 1.5, %v168
    %v170 = vmul.f32 %v165, %v169
    %vm171 = vweird.f32 %v154
    %vm172 = vweird.f32 %v165
    %vm173 = vmor %vm171, %vm172
    %v174 = vsel %vm173, %v165, %v170
    %v175 = vmul.f32 %v141, %v164
    %v176 = vmul.f32 %v142, %v174
    %v177 = vld [vmem:[%s5] sm:$0x1]
    %v179 = vperm.slane %v177, 0
    %v181 = vmul.f32 %v175, %v179
    %v182 = vmul.f32 %v176, %v179
    %v183 = vld [vmem:[%s6] sm:$0x1]
    %v185 = vperm.slane %v183, 0
    %v187 = vadd.f32 %v181, %v185
    %v188 = vadd.f32 %v182, %v185
    %189 = vst.msk [vmem:[#allocation3] sm:$0xff] %vm29, %v187
    %190 = vst.msk [vmem:[#allocation3 + $0x8] sm:$0xff] %vm29, %v188
    // Predicated region
    $region30: #{decoder_block.5} parent=1 // pred_check
      _
    $region31: #{decoder_block.5} parent=1 // pred_check_branch
      %192 = sbr.rel (0) target = $region33
    $region32: #{decoder_block.5} parent=1 // pred_region
      %194 = vsyncadd [#allocation4], 0
      %s195 = sshll.u32 [#allocation3], 4
      %s196 = int_to_ptr.vmem [resolvable:$true] %s195
      %s197 = sshll.u32 %s7, 4
      %s198 = int_to_ptr.hbm [resolvable:$true] %s197
      %203 = dma.vmem_to_hbm [thread:$0]  %s196, 256, %s198, [#allocation4], 128, 128, 8
    $region33: #{decoder_block.5} parent=1 // pred_fallthru
      _
    // Predicated region
    $region34: #{decoder_block.5} parent=1 // pred_check
      _
    $region35: #{decoder_block.5} parent=1 // pred_check_branch
      %205 = sbr.rel (0) target = $region37
    $region36: #{decoder_block.5} parent=1 // pred_region
      %207 = dma.done [#allocation4], 256
    $region37: #{decoder_block.5} parent=1 // pred_fallthru
      _
    %208 = vsyncpa [#allocation4], 1

// kernel: decoder_block.3
$region0: #{decoder_block.3}
  #allocation0 [shape = 'u32[]', space=smem, size = 0x4, offset = 0x4, fixed_abs, tag = 'smem constant byte address 0x4 - core index']
  #allocation1 [shape = 'u32[72,128]{1,0:T(1,128)}', space=vmem, size = 0x9000, scoped, tag = 'internal scratch']
  #allocation2 [shape = 'f32[8,32]{1,0:T(8,128)}', space=vmem, size = 0x1000, scoped, tag = 'scratch operand']
  #allocation3 [shape = 'f32[4,8,1]{2,1,0:T(8,128)}', space=vmem, size = 0x4000, scoped, tag = 'scratch operand']
  #allocation4 [shape = 'f32[4,8,1]{2,1,0:T(8,128)}', space=vmem, size = 0x4000, scoped, tag = 'scratch operand']
  #allocation5 [shape = 'f32[4,8,8]{2,1,0:T(8,128)}', space=vmem, size = 0x4000, scoped, tag = 'scratch operand']
  %s0 = inlined_call_operand.vmem [shape: f32[2,8,32], index: 0, kind: input, shape index: {}, may-alias: {0,2}]
  %s1 = inlined_call_operand.vmem [shape: f32[2,32,8], index: 1, kind: input, shape index: {}]
  %s2 = inlined_call_operand.vmem [shape: f32[2,8,32], index: 2, kind: input, shape index: {}, may-alias: {0,2}]
  %s3 = inlined_call_operand.vmem [shape: f32[1,8,8], index: 3, kind: input, shape index: {}]
  %s4 = inlined_call_operand.vmem [shape: f32[32,32], index: 4, kind: input, shape index: {}]
  %s5 = inlined_call_operand.vmem [shape: f32[32,32], index: 5, kind: input, shape index: {}]
  %s6 = inlined_call_operand.hbm [shape: f32[32,32], index: 6, kind: input, shape index: {}]
  %s7 = inlined_call_operand.hbm [shape: f32[32,32], index: 7, kind: input, shape index: {}]
  %s8 = inlined_call_operand.vmem [shape: f32[1,32], index: 8, kind: input, shape index: {}]
  %s9 = inlined_call_operand.vmem [shape: f32[1,32], index: 9, kind: input, shape index: {}]
  %s10 = inlined_call_operand.vmem [shape: f32[1,32], index: 10, kind: input, shape index: {}]
  %s11 = inlined_call_operand.vmem [shape: f32[2,8,32], index: 11, kind: output, shape index: {}]
  %s12 = sld [smem:[#allocation0]]
  $region93: #{decoder_block.3} parent=0
    _
  %s14 = ssub.s32 1, %s12
  %s15 = scalar_select 0, %s14, %s12
  $region1: #{decoder_block.3} parent=0
    #allocation6 [shape = 'u8[16384]{0}', space=vmem, size = 0x4000, scoped, tag = 'input window, operand 6, single buffered']
    #allocation7 [shape = 's32[2]{0}', space=sflag, size = 0x8, scoped, tag = 'scoped memory for decoder_block.3']
    #allocation8 [shape = 'u8[16384]{0}', space=vmem, size = 0x4000, scoped, tag = 'input window, operand 7, single buffered']
    #allocation9 [shape = 's32[1]{0}', space=sflag, size = 0x4, scoped, tag = 'scoped memory for decoder_block.3']
    %16 = vsyncpa [#allocation7], 0
    %17 = vsyncpa [#allocation9], 0
    loop: start=0, step=1, limit=4
    $region2: #{decoder_block.3} parent=1 // loop_pre_header
      _
    $region3: #{decoder_block.3} parent=1 // loop_header
      %s19 = sphi 0, %s23
      %p20 = scmp.ge.s32.totalorder %s19, 4
      %s26 = sphi 0, %s45
      %s27 = sphi 0, %s41
      %s28 = sphi 0, %s37
      %s29 = sphi 0, %s26
      %s30 = sphi 0, %s27
      %s31 = sphi 0, %s28
      %s32 = sphi 0, %s29
      %s33 = sphi 0, %s30
      %s34 = sphi 0, %s31
      %s50 = sphi 0, %s52
      %s53 = sphi 0, %s50
      %s54 = sphi 0, %s53
      %s70 = sphi 0, %s54
      %s78 = sphi 0, %s80
      %s81 = sphi 0, %s78
      %s82 = sphi 0, %s81
      %s98 = sphi 0, %s82
      %s106 = sphi 0, %s108
      %s109 = sphi 0, %s106
      %s110 = sphi 0, %s109
      %s126 = sphi 0, %s110
      %s134 = sphi 0, %s136
      %s137 = sphi 0, %s134
      %s138 = sphi 0, %s137
      %s154 = sphi 0, %s138
      %s158 = sphi 0, %s158
      %s160 = sphi 0, %s158
      %s161 = sphi 0, %s160
      %s175 = sphi 0, %s161
      %s179 = sphi 0, %s179
      %s181 = sphi 0, %s179
      %s182 = sphi 0, %s181
      %s196 = sphi 0, %s182
      %s200 = sphi 0, %s200
      %s202 = sphi 0, %s200
      %s203 = sphi 0, %s202
      %s217 = sphi 0, %s203
      %s221 = sphi 0, %s221
      %s223 = sphi 0, %s221
      %s224 = sphi 0, %s223
      %s238 = sphi 0, %s224
      %s242 = sphi 0, %s242
      %s244 = sphi 0, %s242
      %s245 = sphi 0, %s244
      %s259 = sphi 0, %s245
      %s263 = sphi 0, %s263
      %s265 = sphi 0, %s263
      %s266 = sphi 0, %s265
      %s280 = sphi 0, %s266
      %s284 = sphi 0, %s284
      %s286 = sphi 0, %s284
      %s287 = sphi 0, %s286
      %s301 = sphi 0, %s287
      %s309 = sphi 0, %s311
      %s312 = sphi 0, %s309
      %s313 = sphi 0, %s312
      %s329 = sphi 0, %s313
    $region4: #{decoder_block.3} parent=1 // loop_header_branch
      %22 = sbr.rel (%p20) target = $region8
    $region5: #{decoder_block.3} parent=1 // loop_body
      %s24 = ssub.s32 %s19, 1
      %s25 = ssub.s32 %s19, 2
      %s35 = sadd.s32 1, %s28
      %p36 = scmp.ge.s32.totalorder %s35, 1
      %s37 = scalar_select %p36, 0, %s35
      %s38 = sadd.s32 1, %s27
      %s39 = scalar_select %p36, %s38, %s27
      %p40 = scmp.ge.s32.totalorder %s39, 1
      %s41 = scalar_select %p40, 0, %s39
      %s42 = sadd.s32 1, %s26
      %s43 = scalar_select %p40, %s42, %s26
      %p44 = scmp.ge.s32.totalorder %s43, 2
      %s45 = scalar_select %p44, 0, %s43
      %s46 = ssub.s32 %s26, %s45
      %s47 = ssub.s32 %s27, %s41
      %s48 = sor.u32 %s46, %s47
      %p49 = scmp.eq.s32.totalorder %s48, 0
      %s51 = sadd.s32 %s50, 1
      %s52 = scalar_select %p49, %s50, %s51
      %p55 = pneg %p49
      %p56 = scmp.eq.s32.totalorder %s19, 1
      %p57 = por %p55, %p56
      %p58 = scmp.ne.s32.totalorder %s50, %s53
      %p59 = scmp.eq.s32.totalorder %s19, 0
      %p60 = por %p58, %p59
      %p61 = scmp.ne.s32.totalorder %s50, %s53
      %p62 = scmp.eq.s32.totalorder %s24, 1
      %p63 = por %p61, %p62
      %p64 = scmp.ne.s32.totalorder %s53, %s54
      %p65 = scmp.eq.s32.totalorder %s24, 0
      %p66 = por %p64, %p65
      %p67 = scmp.ne.s32.totalorder %s53, %s54
      %p68 = scmp.eq.s32.totalorder %s25, 1
      %p69 = por %p67, %p68
      %p71 = scmp.ne.s32.totalorder %s54, %s70
      %p72 = scmp.eq.s32.totalorder %s25, 0
      %p73 = por %p71, %p72
      %s74 = ssub.s32 %s26, %s45
      %s75 = ssub.s32 %s28, %s37
      %s76 = sor.u32 %s74, %s75
      %p77 = scmp.eq.s32.totalorder %s76, 0
      %s79 = sadd.s32 %s78, 1
      %s80 = scalar_select %p77, %s78, %s79
      %p83 = pneg %p77
      %p84 = scmp.eq.s32.totalorder %s19, 1
      %p85 = por %p83, %p84
      %p86 = scmp.ne.s32.totalorder %s78, %s81
      %p87 = scmp.eq.s32.totalorder %s19, 0
      %p88 = por %p86, %p87
      %p89 = scmp.ne.s32.totalorder %s78, %s81
      %p90 = scmp.eq.s32.totalorder %s24, 1
      %p91 = por %p89, %p90
      %p92 = scmp.ne.s32.totalorder %s81, %s82
      %p93 = scmp.eq.s32.totalorder %s24, 0
      %p94 = por %p92, %p93
      %p95 = scmp.ne.s32.totalorder %s81, %s82
      %p96 = scmp.eq.s32.totalorder %s25, 1
      %p97 = por %p95, %p96
      %p99 = scmp.ne.s32.totalorder %s82, %s98
      %p100 = scmp.eq.s32.totalorder %s25, 0
      %p101 = por %p99, %p100
      %s102 = ssub.s32 %s26, %s45
      %s103 = ssub.s32 %s28, %s37
      %s104 = sor.u32 %s102, %s103
      %p105 = scmp.eq.s32.totalorder %s104, 0
      %s107 = sadd.s32 %s106, 1
      %s108 = scalar_select %p105, %s106, %s107
      %p111 = pneg %p105
      %p112 = scmp.eq.s32.totalorder %s19, 1
      %p113 = por %p111, %p112
      %p114 = scmp.ne.s32.totalorder %s106, %s109
      %p115 = scmp.eq.s32.totalorder %s19, 0
      %p116 = por %p114, %p115
      %p117 = scmp.ne.s32.totalorder %s106, %s109
      %p118 = scmp.eq.s32.totalorder %s24, 1
      %p119 = por %p117, %p118
      %p120 = scmp.ne.s32.totalorder %s109, %s110
      %p121 = scmp.eq.s32.totalorder %s24, 0
      %p122 = por %p120, %p121
      %p123 = scmp.ne.s32.totalorder %s109, %s110
      %p124 = scmp.eq.s32.totalorder %s25, 1
      %p125 = por %p123, %p124
      %p127 = scmp.ne.s32.totalorder %s110, %s126
      %p128 = scmp.eq.s32.totalorder %s25, 0
      %p129 = por %p127, %p128
      %s130 = ssub.s32 %s27, %s41
      %s131 = ssub.s32 %s28, %s37
      %s132 = sor.u32 %s130, %s131
      %p133 = scmp.eq.s32.totalorder %s132, 0
      %s135 = sadd.s32 %s134, 1
      %s136 = scalar_select %p133, %s134, %s135
      %p139 = pneg %p133
      %p140 = scmp.eq.s32.totalorder %s19, 1
      %p141 = por %p139, %p140
      %p142 = scmp.ne.s32.totalorder %s134, %s137
      %p143 = scmp.eq.s32.totalorder %s19, 0
      %p144 = por %p142, %p143
      %p145 = scmp.ne.s32.totalorder %s134, %s137
      %p146 = scmp.eq.s32.totalorder %s24, 1
      %p147 = por %p145, %p146
      %p148 = scmp.ne.s32.totalorder %s137, %s138
      %p149 = scmp.eq.s32.totalorder %s24, 0
      %p150 = por %p148, %p149
      %p151 = scmp.ne.s32.totalorder %s137, %s138
      %p152 = scmp.eq.s32.totalorder %s25, 1
      %p153 = por %p151, %p152
      %p155 = scmp.ne.s32.totalorder %s138, %s154
      %p156 = scmp.eq.s32.totalorder %s25, 0
      %p157 = por %p155, %p156
      %s159 = sadd.s32 %s158, 1
      %p162 = scmp.eq.s32.totalorder %s19, 1
      %p163 = scmp.ne.s32.totalorder %s158, %s160
      %p164 = scmp.eq.s32.totalorder %s19, 0
      %p165 = por %p163, %p164
      %p166 = scmp.ne.s32.totalorder %s158, %s160
      %p167 = scmp.eq.s32.totalorder %s24, 1
      %p168 = por %p166, %p167
      %p169 = scmp.ne.s32.totalorder %s160, %s161
      %p170 = scmp.eq.s32.totalorder %s24, 0
      %p171 = por %p169, %p170
      %p172 = scmp.ne.s32.totalorder %s160, %s161
      %p173 = scmp.eq.s32.totalorder %s25, 1
      %p174 = por %p172, %p173
      %p176 = scmp.ne.s32.totalorder %s161, %s175
      %p177 = scmp.eq.s32.totalorder %s25, 0
      %p178 = por %p176, %p177
      %s180 = sadd.s32 %s179, 1
      %p183 = scmp.eq.s32.totalorder %s19, 1
      %p184 = scmp.ne.s32.totalorder %s179, %s181
      %p185 = scmp.eq.s32.totalorder %s19, 0
      %p186 = por %p184, %p185
      %p187 = scmp.ne.s32.totalorder %s179, %s181
      %p188 = scmp.eq.s32.totalorder %s24, 1
      %p189 = por %p187, %p188
      %p190 = scmp.ne.s32.totalorder %s181, %s182
      %p191 = scmp.eq.s32.totalorder %s24, 0
      %p192 = por %p190, %p191
      %p193 = scmp.ne.s32.totalorder %s181, %s182
      %p194 = scmp.eq.s32.totalorder %s25, 1
      %p195 = por %p193, %p194
      %p197 = scmp.ne.s32.totalorder %s182, %s196
      %p198 = scmp.eq.s32.totalorder %s25, 0
      %p199 = por %p197, %p198
      %s201 = sadd.s32 %s200, 1
      %p204 = scmp.eq.s32.totalorder %s19, 1
      %p205 = scmp.ne.s32.totalorder %s200, %s202
      %p206 = scmp.eq.s32.totalorder %s19, 0
      %p207 = por %p205, %p206
      %p208 = scmp.ne.s32.totalorder %s200, %s202
      %p209 = scmp.eq.s32.totalorder %s24, 1
      %p210 = por %p208, %p209
      %p211 = scmp.ne.s32.totalorder %s202, %s203
      %p212 = scmp.eq.s32.totalorder %s24, 0
      %p213 = por %p211, %p212
      %p214 = scmp.ne.s32.totalorder %s202, %s203
      %p215 = scmp.eq.s32.totalorder %s25, 1
      %p216 = por %p214, %p215
      %p218 = scmp.ne.s32.totalorder %s203, %s217
      %p219 = scmp.eq.s32.totalorder %s25, 0
      %p220 = por %p218, %p219
      %s222 = sadd.s32 %s221, 1
      %p225 = scmp.eq.s32.totalorder %s19, 1
      %p226 = scmp.ne.s32.totalorder %s221, %s223
      %p227 = scmp.eq.s32.totalorder %s19, 0
      %p228 = por %p226, %p227
      %p229 = scmp.ne.s32.totalorder %s221, %s223
      %p230 = scmp.eq.s32.totalorder %s24, 1
      %p231 = por %p229, %p230
      %p232 = scmp.ne.s32.totalorder %s223, %s224
      %p233 = scmp.eq.s32.totalorder %s24, 0
      %p234 = por %p232, %p233
      %p235 = scmp.ne.s32.totalorder %s223, %s224
      %p236 = scmp.eq.s32.totalorder %s25, 1
      %p237 = por %p235, %p236
      %p239 = scmp.ne.s32.totalorder %s224, %s238
      %p240 = scmp.eq.s32.totalorder %s25, 0
      %p241 = por %p239, %p240
      %s243 = sadd.s32 %s242, 1
      %p246 = scmp.eq.s32.totalorder %s19, 1
      %p247 = scmp.ne.s32.totalorder %s242, %s244
      %p248 = scmp.eq.s32.totalorder %s19, 0
      %p249 = por %p247, %p248
      %p250 = scmp.ne.s32.totalorder %s242, %s244
      %p251 = scmp.eq.s32.totalorder %s24, 1
      %p252 = por %p250, %p251
      %p253 = scmp.ne.s32.totalorder %s244, %s245
      %p254 = scmp.eq.s32.totalorder %s24, 0
      %p255 = por %p253, %p254
      %p256 = scmp.ne.s32.totalorder %s244, %s245
      %p257 = scmp.eq.s32.totalorder %s25, 1
      %p258 = por %p256, %p257
      %p260 = scmp.ne.s32.totalorder %s245, %s259
      %p261 = scmp.eq.s32.totalorder %s25, 0
      %p262 = por %p260, %p261
      %s264 = sadd.s32 %s263, 1
      %p267 = scmp.eq.s32.totalorder %s19, 1
      %p268 = scmp.ne.s32.totalorder %s263, %s265
      %p269 = scmp.eq.s32.totalorder %s19, 0
      %p270 = por %p268, %p269
      %p271 = scmp.ne.s32.totalorder %s263, %s265
      %p272 = scmp.eq.s32.totalorder %s24, 1
      %p273 = por %p271, %p272
      %p274 = scmp.ne.s32.totalorder %s265, %s266
      %p275 = scmp.eq.s32.totalorder %s24, 0
      %p276 = por %p274, %p275
      %p277 = scmp.ne.s32.totalorder %s265, %s266
      %p278 = scmp.eq.s32.totalorder %s25, 1
      %p279 = por %p277, %p278
      %p281 = scmp.ne.s32.totalorder %s266, %s280
      %p282 = scmp.eq.s32.totalorder %s25, 0
      %p283 = por %p281, %p282
      %s285 = sadd.s32 %s284, 1
      %p288 = scmp.eq.s32.totalorder %s19, 1
      %p289 = scmp.ne.s32.totalorder %s284, %s286
      %p290 = scmp.eq.s32.totalorder %s19, 0
      %p291 = por %p289, %p290
      %p292 = scmp.ne.s32.totalorder %s284, %s286
      %p293 = scmp.eq.s32.totalorder %s24, 1
      %p294 = por %p292, %p293
      %p295 = scmp.ne.s32.totalorder %s286, %s287
      %p296 = scmp.eq.s32.totalorder %s24, 0
      %p297 = por %p295, %p296
      %p298 = scmp.ne.s32.totalorder %s286, %s287
      %p299 = scmp.eq.s32.totalorder %s25, 1
      %p300 = por %p298, %p299
      %p302 = scmp.ne.s32.totalorder %s287, %s301
      %p303 = scmp.eq.s32.totalorder %s25, 0
      %p304 = por %p302, %p303
      %s305 = ssub.s32 %s26, %s45
      %s306 = ssub.s32 %s27, %s41
      %s307 = sor.u32 %s305, %s306
      %p308 = scmp.eq.s32.totalorder %s307, 0
      %s310 = sadd.s32 %s309, 1
      %s311 = scalar_select %p308, %s309, %s310
      %p314 = pneg %p308
      %p315 = scmp.eq.s32.totalorder %s19, 1
      %p316 = por %p314, %p315
      %p317 = scmp.ne.s32.totalorder %s309, %s312
      %p318 = scmp.eq.s32.totalorder %s19, 0
      %p319 = por %p317, %p318
      %p320 = scmp.ne.s32.totalorder %s309, %s312
      %p321 = scmp.eq.s32.totalorder %s24, 1
      %p322 = por %p320, %p321
      %p323 = scmp.ne.s32.totalorder %s312, %s313
      %p324 = scmp.eq.s32.totalorder %s24, 0
      %p325 = por %p323, %p324
      %p326 = scmp.ne.s32.totalorder %s312, %s313
      %p327 = scmp.eq.s32.totalorder %s25, 1
      %p328 = por %p326, %p327
      %p330 = scmp.ne.s32.totalorder %s313, %s329
      %p331 = scmp.eq.s32.totalorder %s25, 0
      %p332 = por %p330, %p331
      %p333 = scmp.le.s32.totalorder 1, %s19
      %p334 = scmp.lt.s32.totalorder %s19, 3
      %p335 = pnand %p333, %p334
      %p336 = pneg %p335
      // Predicated region
      $region9: #{decoder_block.3} parent=5 // pred_check
        _
      $region10: #{decoder_block.3} parent=5 // pred_check_branch
        %338 = sbr.rel (%p335) target = $region12
      $region11: #{decoder_block.3} parent=5 // pred_region
        %s339 = ssub.s32 %s19, 1
        // Predicated region
        $region13: #{decoder_block.3} parent=11 // pred_check
          %p340 = pneg %p150
        $region14: #{decoder_block.3} parent=11 // pred_check_branch
          %342 = sbr.rel (%p340) target = $region16
        $region15: #{decoder_block.3} parent=11 // pred_region
          %p343 = scmp.lt.s32.totalorder %s30, 0
          %s344 = scalar_select %p343, %s30, 0
          %p345 = scmp.lt.s32.totalorder %s31, 0
          %s346 = scalar_select %p345, %s31, 0
          %s347 = sadd.s32 %s346, %s344
          %s348 = smul.addr %s347, 8
          %s349 = scalar_lea.vmem %s3, %s348
        $region16: #{decoder_block.3} parent=11 // pred_fallthru
          _
        // Predicated region
        $region17: #{decoder_block.3} parent=11 // pred_check
          %p350 = pneg %p171
        $region18: #{decoder_block.3} parent=11 // pred_check_branch
          %352 = sbr.rel (%p350) target = $region20
        $region19: #{decoder_block.3} parent=11 // pred_region
          _
        $region20: #{decoder_block.3} parent=11 // pred_fallthru
          _
        // Predicated region
        $region21: #{decoder_block.3} parent=11 // pred_check
          %p353 = pneg %p192
        $region22: #{decoder_block.3} parent=11 // pred_check_branch
          %355 = sbr.rel (%p353) target = $region24
        $region23: #{decoder_block.3} parent=11 // pred_region
          _
        $region24: #{decoder_block.3} parent=11 // pred_fallthru
          _
        // Predicated region
        $region25: #{decoder_block.3} parent=11 // pred_check
          %p356 = pneg %p213
        $region26: #{decoder_block.3} parent=11 // pred_check_branch
          %358 = sbr.rel (%p356) target = $region28
        $region27: #{decoder_block.3} parent=11 // pred_region
          %360 = vsyncadd [#allocation7], 0
          %s361 = sshll.u32 %s6, 4
          %s362 = int_to_ptr.hbm [resolvable:$true] %s361
          %s363 = sshll.u32 [#allocation6], 4
          %s364 = int_to_ptr.vmem [resolvable:$true] %s363
          %369 = dma.hbm_to_vmem [thread:$0]  %s362, 512, %s364, [#allocation7], 128, 128, 8
        $region28: #{decoder_block.3} parent=11 // pred_fallthru
          _
        // Predicated region
        $region29: #{decoder_block.3} parent=11 // pred_check
          %p370 = pneg %p234
        $region30: #{decoder_block.3} parent=11 // pred_check_branch
          %372 = sbr.rel (%p370) target = $region32
        $region31: #{decoder_block.3} parent=11 // pred_region
          %374 = vsyncadd [#allocation9], 0
          %s375 = sshll.u32 %s7, 4
          %s376 = int_to_ptr.hbm [resolvable:$true] %s375
          %s377 = sshll.u32 [#allocation8], 4
          %s378 = int_to_ptr.vmem [resolvable:$true] %s377
          %383 = dma.hbm_to_vmem [thread:$0]  %s376, 512, %s378, [#allocation9], 128, 128, 8
        $region32: #{decoder_block.3} parent=11 // pred_fallthru
          _
        // Predicated region
        $region33: #{decoder_block.3} parent=11 // pred_check
          %p384 = pneg %p255
        $region34: #{decoder_block.3} parent=11 // pred_check_branch
          %386 = sbr.rel (%p384) target = $region36
        $region35: #{decoder_block.3} parent=11 // pred_region
          _
        $region36: #{decoder_block.3} parent=11 // pred_fallthru
          _
        // Predicated region
        $region37: #{decoder_block.3} parent=11 // pred_check
          %p387 = pneg %p276
        $region38: #{decoder_block.3} parent=11 // pred_check_branch
          %389 = sbr.rel (%p387) target = $region40
        $region39: #{decoder_block.3} parent=11 // pred_region
          _
        $region40: #{decoder_block.3} parent=11 // pred_fallthru
          _
        // Predicated region
        $region41: #{decoder_block.3} parent=11 // pred_check
          %p390 = pneg %p297
        $region42: #{decoder_block.3} parent=11 // pred_check_branch
          %392 = sbr.rel (%p390) target = $region44
        $region43: #{decoder_block.3} parent=11 // pred_region
          _
        $region44: #{decoder_block.3} parent=11 // pred_fallthru
          _
      $region12: #{decoder_block.3} parent=5 // pred_fallthru
        _
      %p393 = scmp.lt.s32.totalorder %s19, 2
      // Predicated region
      $region45: #{decoder_block.3} parent=5 // pred_check
        %p394 = pneg %p393
      $region46: #{decoder_block.3} parent=5 // pred_check_branch
        %396 = sbr.rel (%p394) target = $region48
      $region47: #{decoder_block.3} parent=5 // pred_region
        // Predicated region
        $region49: #{decoder_block.3} parent=47 // pred_check
          %p397 = pneg %p60
        $region50: #{decoder_block.3} parent=47 // pred_check_branch
          %399 = sbr.rel (%p397) target = $region52
        $region51: #{decoder_block.3} parent=47 // pred_region
          %p400 = scmp.lt.s32.totalorder %s26, 1
          %s401 = scalar_select %p400, %s26, 1
          %p402 = scmp.lt.s32.totalorder %s27, 0
          %s403 = scalar_select %p402, %s27, 0
          %s404 = sadd.s32 %s403, %s401
          %s405 = smul.addr %s404, 8
          %s406 = scalar_lea.vmem %s0, %s405
        $region52: #{decoder_block.3} parent=47 // pred_fallthru
          _
        // Predicated region
        $region53: #{decoder_block.3} parent=47 // pred_check
          %p407 = pneg %p88
        $region54: #{decoder_block.3} parent=47 // pred_check_branch
          %409 = sbr.rel (%p407) target = $region56
        $region55: #{decoder_block.3} parent=47 // pred_region
          %p410 = scmp.lt.s32.totalorder %s26, 1
          %s411 = scalar_select %p410, %s26, 1
          %p412 = scmp.lt.s32.totalorder %s28, 0
          %s413 = scalar_select %p412, %s28, 0
          %s414 = smul.addr %s411, 4
          %s415 = sadd.s32 %s413, %s414
          %s416 = smul.addr %s415, 8
          %s417 = scalar_lea.vmem %s1, %s416
        $region56: #{decoder_block.3} parent=47 // pred_fallthru
          _
        // Predicated region
        $region57: #{decoder_block.3} parent=47 // pred_check
          %p418 = pneg %p116
        $region58: #{decoder_block.3} parent=47 // pred_check_branch
          %420 = sbr.rel (%p418) target = $region60
        $region59: #{decoder_block.3} parent=47 // pred_region
          %p421 = scmp.lt.s32.totalorder %s26, 1
          %s422 = scalar_select %p421, %s26, 1
          %p423 = scmp.lt.s32.totalorder %s28, 0
          %s424 = scalar_select %p423, %s28, 0
          %s425 = sadd.s32 %s424, %s422
          %s426 = smul.addr %s425, 8
          %s427 = scalar_lea.vmem %s2, %s426
        $region60: #{decoder_block.3} parent=47 // pred_fallthru
          _
      $region48: #{decoder_block.3} parent=5 // pred_fallthru
        _
      %p428 = scmp.le.s32.totalorder 1, %s19
      %p429 = scmp.lt.s32.totalorder %s19, 3
      %p430 = pnand %p428, %p429
      %p431 = pneg %p430
      // Predicated region
      $region61: #{decoder_block.3} parent=5 // pred_check
        _
      $region62: #{decoder_block.3} parent=5 // pred_check_branch
        %433 = sbr.rel (%p430) target = $region64
      $region63: #{decoder_block.3} parent=5 // pred_region
        %s434 = ssub.s32 %s19, 1
        // Predicated region
        $region65: #{decoder_block.3} parent=63 // pred_check
          %p435 = pneg %p213
        $region66: #{decoder_block.3} parent=63 // pred_check_branch
          %437 = sbr.rel (%p435) target = $region68
        $region67: #{decoder_block.3} parent=63 // pred_region
          %439 = dma.done [#allocation7], 512
        $region68: #{decoder_block.3} parent=63 // pred_fallthru
          _
        // Predicated region
        $region69: #{decoder_block.3} parent=63 // pred_check
          %p440 = pneg %p234
        $region70: #{decoder_block.3} parent=63 // pred_check_branch
          %442 = sbr.rel (%p440) target = $region72
        $region71: #{decoder_block.3} parent=63 // pred_region
          %444 = dma.done [#allocation9], 512
        $region72: #{decoder_block.3} parent=63 // pred_fallthru
          _
        %p445 = scmp.lt.s32.totalorder %s29, 1
        %s446 = scalar_select %p445, %s29, 1
        %p447 = scmp.lt.s32.totalorder %s30, 0
        %s448 = scalar_select %p447, %s30, 0
        %s449 = sadd.s32 %s448, %s446
        %s450 = smul.addr %s449, 8
        %s451 = scalar_lea.vmem %s0, %s450
        %p452 = pneg %p66
        %p453 = pneg %p63
        %p454 = scmp.lt.s32.totalorder %s29, 1
        %s455 = scalar_select %p454, %s29, 1
        %p456 = scmp.lt.s32.totalorder %s31, 0
        %s457 = scalar_select %p456, %s31, 0
        %s458 = smul.addr %s455, 4
        %s459 = sadd.s32 %s457, %s458
        %s460 = smul.addr %s459, 8
        %s461 = scalar_lea.vmem %s1, %s460
        %p462 = pneg %p94
        %p463 = pneg %p91
        %p464 = scmp.lt.s32.totalorder %s29, 1
        %s465 = scalar_select %p464, %s29, 1
        %p466 = scmp.lt.s32.totalorder %s31, 0
        %s467 = scalar_select %p466, %s31, 0
        %s468 = sadd.s32 %s467, %s465
        %s469 = smul.addr %s468, 8
        %s470 = scalar_lea.vmem %s2, %s469
        %p471 = pneg %p122
        %p472 = pneg %p119
        %p473 = scmp.lt.s32.totalorder %s30, 0
        %s474 = scalar_select %p473, %s30, 0
        %p475 = scmp.lt.s32.totalorder %s31, 0
        %s476 = scalar_select %p475, %s31, 0
        %s477 = sadd.s32 %s476, %s474
        %s478 = smul.addr %s477, 8
        %s479 = scalar_lea.vmem %s3, %s478
        %p480 = pneg %p150
        %p481 = pneg %p147
        %p482 = pneg %p171
        %p483 = pneg %p168
        %p484 = pneg %p192
        %p485 = pneg %p189
        %p486 = pneg %p213
        %p487 = pneg %p210
        %p488 = pneg %p234
        %p489 = pneg %p231
        %p490 = pneg %p255
        %p491 = pneg %p252
        %p492 = pneg %p276
        %p493 = pneg %p273
        %p494 = pneg %p297
        %p495 = pneg %p294
        %p496 = pneg %p325
        %p497 = pneg %p322
        %p498 = scmp.lt.s32.totalorder %s29, 1
        %s499 = scalar_select %p498, %s29, 1
        %p500 = scmp.lt.s32.totalorder %s30, 0
        %s501 = scalar_select %p500, %s30, 0
        %s502 = sadd.s32 %s501, %s499
        %s503 = smul.addr %s502, 8
        %s504 = scalar_lea.vmem %s11, %s503
        %p505 = scmp.lt.s32.totalorder %s29, 1
        %s506 = scalar_select %p505, %s29, 1
        %p507 = scmp.lt.s32.totalorder %s30, 0
        %s508 = scalar_select %p507, %s30, 0
        %s509 = sadd.s32 %s508, %s506
        %s510 = smul.addr %s509, 8
        %s511 = scalar_lea.vmem %s0, %s510
        %p512 = scmp.lt.s32.totalorder %s29, 1
        %s513 = scalar_select %p512, %s29, 1
        %p514 = scmp.lt.s32.totalorder %s31, 0
        %s515 = scalar_select %p514, %s31, 0
        %s516 = smul.addr %s513, 4
        %s517 = sadd.s32 %s515, %s516
        %s518 = smul.addr %s517, 8
        %s519 = scalar_lea.vmem %s1, %s518
        %p520 = scmp.lt.s32.totalorder %s29, 1
        %s521 = scalar_select %p520, %s29, 1
        %p522 = scmp.lt.s32.totalorder %s31, 0
        %s523 = scalar_select %p522, %s31, 0
        %s524 = sadd.s32 %s523, %s521
        %s525 = smul.addr %s524, 8
        %s526 = scalar_lea.vmem %s2, %s525
        %p527 = scmp.lt.s32.totalorder %s30, 0
        %s528 = scalar_select %p527, %s30, 0
        %p529 = scmp.lt.s32.totalorder %s31, 0
        %s530 = scalar_select %p529, %s31, 0
        %s531 = sadd.s32 %s530, %s528
        %s532 = smul.addr %s531, 8
        %s533 = scalar_lea.vmem %s3, %s532
        %p534 = scmp.lt.s32.totalorder %s29, 1
        %s535 = scalar_select %p534, %s29, 1
        %p536 = scmp.lt.s32.totalorder %s30, 0
        %s537 = scalar_select %p536, %s30, 0
        %s538 = sadd.s32 %s537, %s535
        %s539 = smul.addr %s538, 8
        %s540 = scalar_lea.vmem %s11, %s539
        %p541 = scmp.eq.s32.totalorder %s31, 0
        // Predicated region
        $region73: #{decoder_block.3} parent=63 // pred_check
          %p542 = pneg %p541
        $region74: #{decoder_block.3} parent=63 // pred_check_branch
          %544 = sbr.rel (%p542) target = $region76
        $region75: #{decoder_block.3} parent=63 // pred_region
          %v545 = vld [vmem:[%s511] sm:$0xff]
          %v546 = vld [vmem:[%s4] sm:$0xff]
          %v547 = vld [vmem:[%s4 + $0x8] sm:$0xff]
          %v548 = vld [vmem:[%s4 + $0x10] sm:$0xff]
          %v549 = vld [vmem:[%s4 + $0x18] sm:$0xff]
          %vm550 = vcmask 261120
          %v552 = vsel %vm550, %v545, 0
          %554 = vmatpush.msra.mxu0 0.0
          %555 = vmatpush.msra.mxu0 0.0
          %556 = vmatpush.msra.mxu0 0.0
          %557 = vmatpush.msra.mxu0 0.0
          %558 = vmatpush.msra.mxu0 0.0
          %559 = vmatpush.msra.mxu0 0.0
          %560 = vmatpush.msra.mxu0 0.0
          %561 = vmatpush.msra.mxu0 0.0
          %562 = vmatpush.msra.mxu0 0.0
          %563 = vmatpush.msra.mxu0 0.0
          %564 = vmatpush.msra.mxu0 0.0
          %565 = vmatpush.msra.mxu0 0.0
          %566 = vmatpush.msra.mxu0 %v549
          %567 = vmatpush.msra.mxu0 %v548
          %568 = vmatpush.msra.mxu0 %v547
          %569 = vmatpush.msra.mxu0 %v546
          %570 = vmatmul.f32.gmra.mxu0 %v552
          %v571 = vpop.f32.mrf.mxu0
          %v572 = vadd.f32 0.0, %v571
          %573 = vdwg.mxu0
          %574 = vst.msk [vmem:[#allocation2] sm:$0xff] %vm550, %v572
          %vm575 = vcmask 7168
          %576 = vst.msk [vmem:[#allocation3] sm:$0xff] %vm575, -inf
          %577 = vst.msk [vmem:[#allocation3 + $0x8] sm:$0xff] %vm575, -inf
          %578 = vst.msk [vmem:[#allocation3 + $0x10] sm:$0xff] %vm575, -inf
          %579 = vst.msk [vmem:[#allocation3 + $0x18] sm:$0xff] %vm575, -inf
          %580 = vst.msk [vmem:[#allocation4] sm:$0xff] %vm575, 0.0
          %581 = vst.msk [vmem:[#allocation4 + $0x8] sm:$0xff] %vm575, 0.0
          %582 = vst.msk [vmem:[#allocation4 + $0x10] sm:$0xff] %vm575, 0.0
          %583 = vst.msk [vmem:[#allocation4 + $0x18] sm:$0xff] %vm575, 0.0
          %vm584 = vcmask 64512
          %585 = vst.msk [vmem:[#allocation5] sm:$0xff] %vm584, 0.0
          %586 = vst.msk [vmem:[#allocation5 + $0x8] sm:$0xff] %vm584, 0.0
          %587 = vst.msk [vmem:[#allocation5 + $0x10] sm:$0xff] %vm584, 0.0
          %588 = vst.msk [vmem:[#allocation5 + $0x18] sm:$0xff] %vm584, 0.0
        $region76: #{decoder_block.3} parent=63 // pred_fallthru
          _
        %v589 = vld [vmem:[%s5] sm:$0xff]
        %v590 = vld [vmem:[%s5 + $0x8] sm:$0xff]
        %v591 = vld [vmem:[%s5 + $0x10] sm:$0xff]
        %v592 = vld [vmem:[%s5 + $0x18] sm:$0xff]
        %v593 = vld [vmem:[%s519] sm:$0xff]
        %v594 = vld [vmem:[%s519 + $0x8] sm:$0xff]
        %v595 = vld [vmem:[%s519 + $0x10] sm:$0xff]
        %v596 = vld [vmem:[%s519 + $0x18] sm:$0xff]
        %vm597 = vcmask 261120
        %v599 = vsel %vm597, %v589, 0
        %v602 = vsel %vm597, %v590, 0
        %v605 = vsel %vm597, %v591, 0
        %v608 = vsel %vm597, %v592, 0
        %610 = vmatpush.msra.mxu0 0.0
        %611 = vmatpush.msra.mxu0 0.0
        %612 = vmatpush.msra.mxu0 0.0
        %613 = vmatpush.msra.mxu0 0.0
        %614 = vmatpush.msra.mxu0 0.0
        %615 = vmatpush.msra.mxu0 0.0
        %616 = vmatpush.msra.mxu0 0.0
        %617 = vmatpush.msra.mxu0 0.0
        %618 = vmatpush.msra.mxu0 0.0
        %619 = vmatpush.msra.mxu0 0.0
        %620 = vmatpush.msra.mxu0 0.0
        %621 = vmatpush.msra.mxu0 0.0
        %622 = vmatpush.msra.mxu0 %v596
        %623 = vmatpush.msra.mxu0 %v595
        %624 = vmatpush.msra.mxu0 %v594
        %625 = vmatpush.msra.mxu0 %v593
        %626 = vmatmul.f32.gmra.mxu0 %v599
        %v627 = vpop.f32.mrf.mxu0
        %v628 = vadd.f32 0.0, %v627
        %629 = vmatmul.f32.gmra.mxu0 %v602
        %v630 = vpop.f32.mrf.mxu0
        %v631 = vadd.f32 0.0, %v630
        %632 = vmatmul.f32.gmra.mxu0 %v605
        %v633 = vpop.f32.mrf.mxu0
        %v634 = vadd.f32 0.0, %v633
        %635 = vmatmul.f32.gmra.mxu0 %v608
        %v636 = vpop.f32.mrf.mxu0
        %v637 = vadd.f32 0.0, %v636
        %638 = vdwg.mxu0
        %v639 = vld [vmem:[%s526] sm:$0xff]
        %v640 = vld [vmem:[#allocation6] sm:$0xff]
        %v641 = vld [vmem:[#allocation6 + $0x8] sm:$0xff]
        %v642 = vld [vmem:[#allocation6 + $0x10] sm:$0xff]
        %v643 = vld [vmem:[#allocation6 + $0x18] sm:$0xff]
        %v645 = vsel %vm597, %v639, 0
        %647 = vmatpush.msra.mxu0 0.0
        %648 = vmatpush.msra.mxu0 0.0
        %649 = vmatpush.msra.mxu0 0.0
        %650 = vmatpush.msra.mxu0 0.0
        %651 = vmatpush.msra.mxu0 0.0
        %652 = vmatpush.msra.mxu0 0.0
        %653 = vmatpush.msra.mxu0 0.0
        %654 = vmatpush.msra.mxu0 0.0
        %655 = vmatpush.msra.mxu0 0.0
        %656 = vmatpush.msra.mxu0 0.0
        %657 = vmatpush.msra.mxu0 0.0
        %658 = vmatpush.msra.mxu0 0.0
        %659 = vmatpush.msra.mxu0 %v643
        %660 = vmatpush.msra.mxu0 %v642
        %661 = vmatpush.msra.mxu0 %v641
        %662 = vmatpush.msra.mxu0 %v640
        %663 = vmatmul.f32.gmra.mxu0 %v645
        %v664 = vpop.f32.mrf.mxu0
        %v665 = vadd.f32 0.0, %v664
        %666 = vdwg.mxu0
        %v667 = vld [vmem:[%s533] sm:$0xff]
        %v668 = vld [vmem:[#allocation2] sm:$0xff]
        %vm669 = vcmask 64512
        %v671 = vsel %vm669, %v668, 0
        %673 = vmatpush.msra.mxu0 0.0
        %674 = vmatpush.msra.mxu0 0.0
        %675 = vmatpush.msra.mxu0 0.0
        %676 = vmatpush.msra.mxu0 0.0
        %677 = vmatpush.msra.mxu0 0.0
        %678 = vmatpush.msra.mxu0 0.0
        %679 = vmatpush.msra.mxu0 0.0
        %680 = vmatpush.msra.mxu0 0.0
        %681 = vmatpush.msra.mxu0 0.0
        %682 = vmatpush.msra.mxu0 0.0
        %683 = vmatpush.msra.mxu0 0.0
        %684 = vmatpush.msra.mxu0 0.0
        %685 = vmatpush.msra.mxu0 0.0
        %686 = vmatpush.msra.mxu0 0.0
        %687 = vmatpush.msra.mxu0 0.0
        %688 = vmatpush.msra.mxu0 %v628
        %689 = vmatmul.f32.gmra.mxu0 %v671
        %v690 = vpop.f32.mrf.mxu0
        %v691 = vadd.f32 %v667, %v690
        %692 = vdwg.mxu0
        %v693 = vld [vmem:[#allocation3] sm:$0xff]
        %v694 = vsel %vm669, %v691, -inf
        %695 = vmax.xlane.f32.xlu0 %v694
        %v696 = vpop.xlane.xlu0 %695
        %v697 = vmax.f32 %v693, %v696
        %v698 = vsub.f32 %v693, %v697
        %v699 = vmul.f32 %v698, 1.442695
        %v700 = vpow.pop %v699
        %702 = vset.pattern.permute.xlu0 0
        %703 = vperm.xlu0 %702, %v697
        %v704 = vpop.permute.xlu0 %703
        %v706 = vsub.f32 %v691, %v704
        %v707 = vmul.f32 %v706, 1.442695
        %v708 = vpow.pop %v707
        %v709 = vld [vmem:[#allocation4] sm:$0xff]
        %v710 = vmul.f32 %v700, %v709
        %v711 = vsel %vm669, %v708, 0.0
        %712 = vadd.xlane.f32.xlu0 %v711
        %v713 = vpop.xlane.xlu0 %712
        %v714 = vadd.f32 %v710, %v713
        %vm715 = vcmask 7168
        %716 = vst.msk [vmem:[#allocation4] sm:$0xff] %vm715, %v714
        %v717 = vld [vmem:[#allocation5] sm:$0xff]
        %719 = vset.pattern.permute.xlu0 0
        %720 = vperm.xlu0 %719, %v700
        %v721 = vpop.permute.xlu0 %720
        %v723 = vmul.f32 %v721, %v717
        %v725 = vsel %vm669, %v708, 0
        %727 = vmatpush.msra.mxu0 0.0
        %728 = vmatpush.msra.mxu0 0.0
        %729 = vmatpush.msra.mxu0 0.0
        %730 = vmatpush.msra.mxu0 0.0
        %731 = vmatpush.msra.mxu0 0.0
        %732 = vmatpush.msra.mxu0 0.0
        %733 = vmatpush.msra.mxu0 0.0
        %734 = vmatpush.msra.mxu0 0.0
        %735 = vmatpush.msra.mxu0 0.0
        %736 = vmatpush.msra.mxu0 0.0
        %737 = vmatpush.msra.mxu0 0.0
        %738 = vmatpush.msra.mxu0 0.0
        %739 = vmatpush.msra.mxu0 0.0
        %740 = vmatpush.msra.mxu0 0.0
        %741 = vmatpush.msra.mxu0 0.0
        %742 = vmatpush.msra.mxu0 %v665
        %743 = vmatmul.f32.gmra.mxu0 %v725
        %v744 = vpop.f32.mrf.mxu0
        %v745 = vadd.f32 0.0, %v744
        %746 = vdwg.mxu0
        %v747 = vadd.f32 %v723, %v745
        %748 = vst.msk [vmem:[#allocation5] sm:$0xff] %vm669, %v747
        %749 = vst.msk [vmem:[#allocation3] sm:$0xff] %vm715, %v697
        %750 = vrot.lane.b32.xlu0 %v668, 120
        %v751 = vpop.permute.xlu0 %750
        %v752 = vsel %vm669, %v751, 0
        %754 = vmatpush.msra.mxu0 0.0
        %755 = vmatpush.msra.mxu0 0.0
        %756 = vmatpush.msra.mxu0 0.0
        %757 = vmatpush.msra.mxu0 0.0
        %758 = vmatpush.msra.mxu0 0.0
        %759 = vmatpush.msra.mxu0 0.0
        %760 = vmatpush.msra.mxu0 0.0
        %761 = vmatpush.msra.mxu0 0.0
        %762 = vmatpush.msra.mxu0 0.0
        %763 = vmatpush.msra.mxu0 0.0
        %764 = vmatpush.msra.mxu0 0.0
        %765 = vmatpush.msra.mxu0 0.0
        %766 = vmatpush.msra.mxu0 0.0
        %767 = vmatpush.msra.mxu0 0.0
        %768 = vmatpush.msra.mxu0 0.0
        %769 = vmatpush.msra.mxu0 %v631
        %770 = vmatmul.f32.gmra.mxu0 %v752
        %v771 = vpop.f32.mrf.mxu0
        %v772 = vadd.f32 %v667, %v771
        %773 = vdwg.mxu0
        %s774 = scalar_lea.vmem [#allocation3], 8
        %v775 = vld [vmem:[%s774] sm:$0xff]
        %v776 = vsel %vm669, %v772, -inf
        %777 = vmax.xlane.f32.xlu0 %v776
        %v778 = vpop.xlane.xlu0 %777
        %v779 = vmax.f32 %v775, %v778
        %v780 = vsub.f32 %v775, %v779
        %v781 = vmul.f32 %v780, 1.442695
        %v782 = vpow.pop %v781
        %784 = vset.pattern.permute.xlu0 0
        %785 = vperm.xlu0 %784, %v779
        %v786 = vpop.permute.xlu0 %785
        %v788 = vsub.f32 %v772, %v786
        %v789 = vmul.f32 %v788, 1.442695
        %v790 = vpow.pop %v789
        %s791 = scalar_lea.vmem [#allocation4], 8
        %v792 = vld [vmem:[%s791] sm:$0xff]
        %v793 = vmul.f32 %v782, %v792
        %v794 = vsel %vm669, %v790, 0.0
        %795 = vadd.xlane.f32.xlu0 %v794
        %v796 = vpop.xlane.xlu0 %795
        %v797 = vadd.f32 %v793, %v796
        %798 = vst.msk [vmem:[%s791] sm:$0xff] %vm715, %v797
        %s799 = scalar_lea.vmem [#allocation5], 8
        %v800 = vld [vmem:[%s799] sm:$0xff]
        %802 = vset.pattern.permute.xlu0 0
        %803 = vperm.xlu0 %802, %v782
        %v804 = vpop.permute.xlu0 %803
        %v806 = vmul.f32 %v804, %v800
        %808 = vrot.lane.b32.xlu0 %v665, 120
        %v809 = vpop.permute.xlu0 %808
        %v812 = vsel %vm669, %v790, 0
        %814 = vmatpush.msra.mxu0 0.0
        %815 = vmatpush.msra.mxu0 0.0
        %816 = vmatpush.msra.mxu0 0.0
        %817 = vmatpush.msra.mxu0 0.0
        %818 = vmatpush.msra.mxu0 0.0
        %819 = vmatpush.msra.mxu0 0.0
        %820 = vmatpush.msra.mxu0 0.0
        %821 = vmatpush.msra.mxu0 0.0
        %822 = vmatpush.msra.mxu0 0.0
        %823 = vmatpush.msra.mxu0 0.0
        %824 = vmatpush.msra.mxu0 0.0
        %825 = vmatpush.msra.mxu0 0.0
        %826 = vmatpush.msra.mxu0 0.0
        %827 = vmatpush.msra.mxu0 0.0
        %828 = vmatpush.msra.mxu0 0.0
        %829 = vmatpush.msra.mxu0 %v809
        %830 = vmatmul.f32.gmra.mxu0 %v812
        %v831 = vpop.f32.mrf.mxu0
        %v832 = vadd.f32 0.0, %v831
        %833 = vdwg.mxu0
        %v834 = vadd.f32 %v806, %v832
        %835 = vst.msk [vmem:[%s799] sm:$0xff] %vm669, %v834
        %836 = vst.msk [vmem:[%s774] sm:$0xff] %vm715, %v779
        %837 = vrot.lane.b32.xlu0 %v668, 112
        %v838 = vpop.permute.xlu0 %837
        %v839 = vsel %vm669, %v838, 0
        %841 = vmatpush.msra.mxu0 0.0
        %842 = vmatpush.msra.mxu0 0.0
        %843 = vmatpush.msra.mxu0 0.0
        %844 = vmatpush.msra.mxu0 0.0
        %845 = vmatpush.msra.mxu0 0.0
        %846 = vmatpush.msra.mxu0 0.0
        %847 = vmatpush.msra.mxu0 0.0
        %848 = vmatpush.msra.mxu0 0.0
        %849 = vmatpush.msra.mxu0 0.0
        %850 = vmatpush.msra.mxu0 0.0
        %851 = vmatpush.msra.mxu0 0.0
        %852 = vmatpush.msra.mxu0 0.0
        %853 = vmatpush.msra.mxu0 0.0
        %854 = vmatpush.msra.mxu0 0.0
        %855 = vmatpush.msra.mxu0 0.0
        %856 = vmatpush.msra.mxu0 %v634
        %857 = vmatmul.f32.gmra.mxu0 %v839
        %v858 = vpop.f32.mrf.mxu0
        %v859 = vadd.f32 %v667, %v858
        %860 = vdwg.mxu0
        %s861 = scalar_lea.vmem [#allocation3], 16
        %v862 = vld [vmem:[%s861] sm:$0xff]
        %v863 = vsel %vm669, %v859, -inf
        %864 = vmax.xlane.f32.xlu0 %v863
        %v865 = vpop.xlane.xlu0 %864
        %v866 = vmax.f32 %v862, %v865
        %v867 = vsub.f32 %v862, %v866
        %v868 = vmul.f32 %v867, 1.442695
        %v869 = vpow.pop %v868
        %871 = vset.pattern.permute.xlu0 0
        %872 = vperm.xlu0 %871, %v866
        %v873 = vpop.permute.xlu0 %872
        %v875 = vsub.f32 %v859, %v873
        %v876 = vmul.f32 %v875, 1.442695
        %v877 = vpow.pop %v876
        %s878 = scalar_lea.vmem [#allocation4], 16
        %v879 = vld [vmem:[%s878] sm:$0xff]
        %v880 = vmul.f32 %v869, %v879
        %v881 = vsel %vm669, %v877, 0.0
        %882 = vadd.xlane.f32.xlu0 %v881
        %v883 = vpop.xlane.xlu0 %882
        %v884 = vadd.f32 %v880, %v883
        %885 = vst.msk [vmem:[%s878] sm:$0xff] %vm715, %v884
        %s886 = scalar_lea.vmem [#allocation5], 16
        %v887 = vld [vmem:[%s886] sm:$0xff]
        %889 = vset.pattern.permute.xlu0 0
        %890 = vperm.xlu0 %889, %v869
        %v891 = vpop.permute.xlu0 %890
        %v893 = vmul.f32 %v891, %v887
        %894 = vrot.lane.b32.xlu0 %v665, 112
        %v895 = vpop.permute.xlu0 %894
        %v898 = vsel %vm669, %v877, 0
        %900 = vmatpush.msra.mxu0 0.0
        %901 = vmatpush.msra.mxu0 0.0
        %902 = vmatpush.msra.mxu0 0.0
        %903 = vmatpush.msra.mxu0 0.0
        %904 = vmatpush.msra.mxu0 0.0
        %905 = vmatpush.msra.mxu0 0.0
        %906 = vmatpush.msra.mxu0 0.0
        %907 = vmatpush.msra.mxu0 0.0
        %908 = vmatpush.msra.mxu0 0.0
        %909 = vmatpush.msra.mxu0 0.0
        %910 = vmatpush.msra.mxu0 0.0
        %911 = vmatpush.msra.mxu0 0.0
        %912 = vmatpush.msra.mxu0 0.0
        %913 = vmatpush.msra.mxu0 0.0
        %914 = vmatpush.msra.mxu0 0.0
        %915 = vmatpush.msra.mxu0 %v895
        %916 = vmatmul.f32.gmra.mxu0 %v898
        %v917 = vpop.f32.mrf.mxu0
        %v918 = vadd.f32 0.0, %v917
        %919 = vdwg.mxu0
        %v920 = vadd.f32 %v893, %v918
        %921 = vst.msk [vmem:[%s886] sm:$0xff] %vm669, %v920
        %922 = vst.msk [vmem:[%s861] sm:$0xff] %vm715, %v866
        %923 = vrot.lane.b32.xlu0 %v668, 104
        %v924 = vpop.permute.xlu0 %923
        %v925 = vsel %vm669, %v924, 0
        %927 = vmatpush.msra.mxu0 0.0
        %928 = vmatpush.msra.mxu0 0.0
        %929 = vmatpush.msra.mxu0 0.0
        %930 = vmatpush.msra.mxu0 0.0
        %931 = vmatpush.msra.mxu0 0.0
        %932 = vmatpush.msra.mxu0 0.0
        %933 = vmatpush.msra.mxu0 0.0
        %934 = vmatpush.msra.mxu0 0.0
        %935 = vmatpush.msra.mxu0 0.0
        %936 = vmatpush.msra.mxu0 0.0
        %937 = vmatpush.msra.mxu0 0.0
        %938 = vmatpush.msra.mxu0 0.0
        %939 = vmatpush.msra.mxu0 0.0
        %940 = vmatpush.msra.mxu0 0.0
        %941 = vmatpush.msra.mxu0 0.0
        %942 = vmatpush.msra.mxu0 %v637
        %943 = vmatmul.f32.gmra.mxu0 %v925
        %v944 = vpop.f32.mrf.mxu0
        %v945 = vadd.f32 %v667, %v944
        %946 = vdwg.mxu0
        %s947 = scalar_lea.vmem [#allocation3], 24
        %v948 = vld [vmem:[%s947] sm:$0xff]
        %v949 = vsel %vm669, %v945, -inf
        %950 = vmax.xlane.f32.xlu0 %v949
        %v951 = vpop.xlane.xlu0 %950
        %v952 = vmax.f32 %v948, %v951
        %v953 = vsub.f32 %v948, %v952
        %v954 = vmul.f32 %v953, 1.442695
        %v955 = vpow.pop %v954
        %957 = vset.pattern.permute.xlu0 0
        %958 = vperm.xlu0 %957, %v952
        %v959 = vpop.permute.xlu0 %958
        %v961 = vsub.f32 %v945, %v959
        %v962 = vmul.f32 %v961, 1.442695
        %v963 = vpow.pop %v962
        %s964 = scalar_lea.vmem [#allocation4], 24
        %v965 = vld [vmem:[%s964] sm:$0xff]
        %v966 = vmul.f32 %v955, %v965
        %v967 = vsel %vm669, %v963, 0.0
        %968 = vadd.xlane.f32.xlu0 %v967
        %v969 = vpop.xlane.xlu0 %968
        %v970 = vadd.f32 %v966, %v969
        %971 = vst.msk [vmem:[%s964] sm:$0xff] %vm715, %v970
        %s972 = scalar_lea.vmem [#allocation5], 24
        %v973 = vld [vmem:[%s972] sm:$0xff]
        %975 = vset.pattern.permute.xlu0 0
        %976 = vperm.xlu0 %975, %v955
        %v977 = vpop.permute.xlu0 %976
        %v979 = vmul.f32 %v977, %v973
        %980 = vrot.lane.b32.xlu0 %v665, 104
        %v981 = vpop.permute.xlu0 %980
        %v984 = vsel %vm669, %v963, 0
        %986 = vmatpush.msra.mxu0 0.0
        %987 = vmatpush.msra.mxu0 0.0
        %988 = vmatpush.msra.mxu0 0.0
        %989 = vmatpush.msra.mxu0 0.0
        %990 = vmatpush.msra.mxu0 0.0
        %991 = vmatpush.msra.mxu0 0.0
        %992 = vmatpush.msra.mxu0 0.0
        %993 = vmatpush.msra.mxu0 0.0
        %994 = vmatpush.msra.mxu0 0.0
        %995 = vmatpush.msra.mxu0 0.0
        %996 = vmatpush.msra.mxu0 0.0
        %997 = vmatpush.msra.mxu0 0.0
        %998 = vmatpush.msra.mxu0 0.0
        %999 = vmatpush.msra.mxu0 0.0
        %1000 = vmatpush.msra.mxu0 0.0
        %1001 = vmatpush.msra.mxu0 %v981
        %1002 = vmatmul.f32.gmra.mxu0 %v984
        %v1003 = vpop.f32.mrf.mxu0
        %v1004 = vadd.f32 0.0, %v1003
        %1005 = vdwg.mxu0
        %v1006 = vadd.f32 %v979, %v1004
        %1007 = vst.msk [vmem:[%s972] sm:$0xff] %vm669, %v1006
        %1008 = vst.msk [vmem:[%s947] sm:$0xff] %vm715, %v952
        // Predicated region
        $region77: #{decoder_block.3} parent=63 // pred_check
          %p1009 = pneg %p541
        $region78: #{decoder_block.3} parent=63 // pred_check_branch
          %1011 = sbr.rel (%p1009) target = $region80
        $region79: #{decoder_block.3} parent=63 // pred_region
          %v1012 = vld [vmem:[%s511] sm:$0xff]
          %v1013 = vld [vmem:[%s8] sm:$0x1]
          %v1015 = vperm.slane %v1013, 0
          %v1017 = vadd.f32 %v1012, %v1015
          %v1018 = vld [vmem:[#allocation8] sm:$0xff]
          %v1019 = vld [vmem:[#allocation8 + $0x8] sm:$0xff]
          %v1020 = vld [vmem:[#allocation8 + $0x10] sm:$0xff]
          %v1021 = vld [vmem:[#allocation8 + $0x18] sm:$0xff]
          %v1022 = vld [vmem:[#allocation5] sm:$0xff]
          %v1023 = vld [vmem:[#allocation4] sm:$0xff]
          %v1024 = vrcp.pop %v1023
          %1026 = vset.pattern.permute.xlu0 0
          %1027 = vperm.xlu0 %1026, %v1024
          %v1028 = vpop.permute.xlu0 %1027
          %v1030 = vmul.f32 %v1022, %v1028
          %v1032 = vsel %vm669, %v1030, 0
          %1034 = vmatpush.msra.mxu0 0.0
          %1035 = vmatpush.msra.mxu0 0.0
          %1036 = vmatpush.msra.mxu0 0.0
          %1037 = vmatpush.msra.mxu0 0.0
          %1038 = vmatpush.msra.mxu0 0.0
          %1039 = vmatpush.msra.mxu0 0.0
          %1040 = vmatpush.msra.mxu0 0.0
          %1041 = vmatpush.msra.mxu0 0.0
          %1042 = vmatpush.msra.mxu0 0.0
          %1043 = vmatpush.msra.mxu0 0.0
          %1044 = vmatpush.msra.mxu0 0.0
          %1045 = vmatpush.msra.mxu0 0.0
          %1046 = vmatpush.msra.mxu0 0.0
          %1047 = vmatpush.msra.mxu0 0.0
          %1048 = vmatpush.msra.mxu0 0.0
          %1049 = vmatpush.msra.mxu0 %v1018
          %1050 = vmatmul.f32.gmra.mxu0 %v1032
          %v1051 = vpop.f32.mrf.mxu0
          %v1052 = vadd.f32 0.0, %v1051
          %1053 = vdwg.mxu0
          %v1054 = vadd.f32 %v1017, %v1052
          %v1055 = vld [vmem:[%s799] sm:$0xff]
          %v1056 = vld [vmem:[%s791] sm:$0xff]
          %v1057 = vrcp.pop %v1056
          %1059 = vset.pattern.permute.xlu0 0
          %1060 = vperm.xlu0 %1059, %v1057
          %v1061 = vpop.permute.xlu0 %1060
          %v1063 = vmul.f32 %v1055, %v1061
          %v1065 = vsel %vm669, %v1063, 0
          %1067 = vmatpush.msra.mxu0 0.0
          %1068 = vmatpush.msra.mxu0 0.0
          %1069 = vmatpush.msra.mxu0 0.0
          %1070 = vmatpush.msra.mxu0 0.0
          %1071 = vmatpush.msra.mxu0 0.0
          %1072 = vmatpush.msra.mxu0 0.0
          %1073 = vmatpush.msra.mxu0 0.0
          %1074 = vmatpush.msra.mxu0 0.0
          %1075 = vmatpush.msra.mxu0 0.0
          %1076 = vmatpush.msra.mxu0 0.0
          %1077 = vmatpush.msra.mxu0 0.0
          %1078 = vmatpush.msra.mxu0 0.0
          %1079 = vmatpush.msra.mxu0 0.0
          %1080 = vmatpush.msra.mxu0 0.0
          %1081 = vmatpush.msra.mxu0 0.0
          %1082 = vmatpush.msra.mxu0 %v1019
          %1083 = vmatmul.f32.gmra.mxu0 %v1065
          %v1084 = vpop.f32.mrf.mxu0
          %v1085 = vadd.f32 0.0, %v1084
          %1086 = vdwg.mxu0
          %v1087 = vadd.f32 %v1054, %v1085
          %v1088 = vld [vmem:[%s886] sm:$0xff]
          %v1089 = vld [vmem:[%s878] sm:$0xff]
          %v1090 = vrcp.pop %v1089
          %1092 = vset.pattern.permute.xlu0 0
          %1093 = vperm.xlu0 %1092, %v1090
          %v1094 = vpop.permute.xlu0 %1093
          %v1096 = vmul.f32 %v1088, %v1094
          %v1098 = vsel %vm669, %v1096, 0
          %1100 = vmatpush.msra.mxu0 0.0
          %1101 = vmatpush.msra.mxu0 0.0
          %1102 = vmatpush.msra.mxu0 0.0
          %1103 = vmatpush.msra.mxu0 0.0
          %1104 = vmatpush.msra.mxu0 0.0
          %1105 = vmatpush.msra.mxu0 0.0
          %1106 = vmatpush.msra.mxu0 0.0
          %1107 = vmatpush.msra.mxu0 0.0
          %1108 = vmatpush.msra.mxu0 0.0
          %1109 = vmatpush.msra.mxu0 0.0
          %1110 = vmatpush.msra.mxu0 0.0
          %1111 = vmatpush.msra.mxu0 0.0
          %1112 = vmatpush.msra.mxu0 0.0
          %1113 = vmatpush.msra.mxu0 0.0
          %1114 = vmatpush.msra.mxu0 0.0
          %1115 = vmatpush.msra.mxu0 %v1020
          %1116 = vmatmul.f32.gmra.mxu0 %v1098
          %v1117 = vpop.f32.mrf.mxu0
          %v1118 = vadd.f32 0.0, %v1117
          %1119 = vdwg.mxu0
          %v1120 = vadd.f32 %v1087, %v1118
          %v1121 = vld [vmem:[%s972] sm:$0xff]
          %v1122 = vld [vmem:[%s964] sm:$0xff]
          %v1123 = vrcp.pop %v1122
          %1125 = vset.pattern.permute.xlu0 0
          %1126 = vperm.xlu0 %1125, %v1123
          %v1127 = vpop.permute.xlu0 %1126
          %v1129 = vmul.f32 %v1121, %v1127
          %v1131 = vsel %vm669, %v1129, 0
          %1133 = vmatpush.msra.mxu0 0.0
          %1134 = vmatpush.msra.mxu0 0.0
          %1135 = vmatpush.msra.mxu0 0.0
          %1136 = vmatpush.msra.mxu0 0.0
          %1137 = vmatpush.msra.mxu0 0.0
          %1138 = vmatpush.msra.mxu0 0.0
          %1139 = vmatpush.msra.mxu0 0.0
          %1140 = vmatpush.msra.mxu0 0.0
          %1141 = vmatpush.msra.mxu0 0.0
          %1142 = vmatpush.msra.mxu0 0.0
          %1143 = vmatpush.msra.mxu0 0.0
          %1144 = vmatpush.msra.mxu0 0.0
          %1145 = vmatpush.msra.mxu0 0.0
          %1146 = vmatpush.msra.mxu0 0.0
          %1147 = vmatpush.msra.mxu0 0.0
          %1148 = vmatpush.msra.mxu0 %v1021
          %1149 = vmatmul.f32.gmra.mxu0 %v1131
          %v1150 = vpop.f32.mrf.mxu0
          %v1151 = vadd.f32 0.0, %v1150
          %1152 = vdwg.mxu0
          %v1153 = vadd.f32 %v1120, %v1151
          %1154 = vst.msk [vmem:[%s540] sm:$0xff] %vm597, %v1153
        $region80: #{decoder_block.3} parent=63 // pred_fallthru
          _
        %p1155 = scmp.lt.s32.totalorder %s29, 1
        %s1156 = scalar_select %p1155, %s29, 1
        %p1157 = scmp.lt.s32.totalorder %s30, 0
        %s1158 = scalar_select %p1157, %s30, 0
        %s1159 = sadd.s32 %s1158, %s1156
        %s1160 = smul.addr %s1159, 8
        %s1161 = scalar_lea.vmem %s11, %s1160
        // Predicated region
        $region81: #{decoder_block.3} parent=63 // pred_check
          %p1162 = pneg %p322
        $region82: #{decoder_block.3} parent=63 // pred_check_branch
          %1164 = sbr.rel (%p1162) target = $region84
        $region83: #{decoder_block.3} parent=63 // pred_region
          _
        $region84: #{decoder_block.3} parent=63 // pred_fallthru
          _
      $region64: #{decoder_block.3} parent=5 // pred_fallthru
        _
      %p1165 = scmp.le.s32.totalorder 2, %s19
      // Predicated region
      $region85: #{decoder_block.3} parent=5 // pred_check
        %p1166 = pneg %p1165
      $region86: #{decoder_block.3} parent=5 // pred_check_branch
        %1168 = sbr.rel (%p1166) target = $region88
      $region87: #{decoder_block.3} parent=5 // pred_region
        %s1169 = ssub.s32 %s19, 2
        // Predicated region
        $region89: #{decoder_block.3} parent=87 // pred_check
          %p1170 = pneg %p328
        $region90: #{decoder_block.3} parent=87 // pred_check_branch
          %1172 = sbr.rel (%p1170) target = $region92
        $region91: #{decoder_block.3} parent=87 // pred_region
          %p1173 = scmp.lt.s32.totalorder %s32, 1
          %s1174 = scalar_select %p1173, %s32, 1
          %p1175 = scmp.lt.s32.totalorder %s33, 0
          %s1176 = scalar_select %p1175, %s33, 0
          %s1177 = sadd.s32 %s1176, %s1174
          %s1178 = smul.addr %s1177, 8
          %s1179 = scalar_lea.vmem %s11, %s1178
        $region92: #{decoder_block.3} parent=87 // pred_fallthru
          _
      $region88: #{decoder_block.3} parent=5 // pred_fallthru
        _
    $region6: #{decoder_block.3} parent=1 // loop_footer
      %s23 = sadd.s32 1, %s19
    $region7: #{decoder_block.3} parent=1 // loop_footer_branch
      %18 = sbr.rel target = $region3
    $region8: #{decoder_block.3} parent=1 // loop_exit
      _
    %1180 = vsyncpa [#allocation7], 1
    %s1181 = scalar_lea.sflag [#allocation7], 1
    %1182 = vsyncpa %s1181, 1
    %1183 = vsyncpa [#allocation9], 1

// kernel: decoder_block.4
$region0: #{decoder_block.4}
  #allocation0 [shape = 'u32[]', space=smem, size = 0x4, offset = 0x4, fixed_abs, tag = 'smem constant byte address 0x4 - core index']
  #allocation1 [shape = 'u32[72,128]{1,0:T(1,128)}', space=vmem, size = 0x9000, scoped, tag = 'internal scratch']
  #allocation2 [shape = 'f32[8,32]{1,0:T(8,128)}', space=vmem, size = 0x1000, scoped, tag = 'scratch operand']
  #allocation3 [shape = 'f32[4,8,1]{2,1,0:T(8,128)}', space=vmem, size = 0x4000, scoped, tag = 'scratch operand']
  #allocation4 [shape = 'f32[4,8,1]{2,1,0:T(8,128)}', space=vmem, size = 0x4000, scoped, tag = 'scratch operand']
  #allocation5 [shape = 'f32[4,8,8]{2,1,0:T(8,128)}', space=vmem, size = 0x4000, scoped, tag = 'scratch operand']
  %s0 = inlined_call_operand.vmem [shape: f32[2,8,32], index: 0, kind: input, shape index: {}]
  %s1 = inlined_call_operand.vmem [shape: f32[2,32,8], index: 1, kind: input, shape index: {}]
  %s2 = inlined_call_operand.vmem [shape: f32[2,8,32], index: 2, kind: input, shape index: {}]
  %s3 = inlined_call_operand.vmem [shape: f32[2,8,8], index: 3, kind: input, shape index: {}]
  %s4 = inlined_call_operand.vmem [shape: f32[32,32], index: 4, kind: input, shape index: {}]
  %s5 = inlined_call_operand.vmem [shape: f32[32,32], index: 5, kind: input, shape index: {}]
  %s6 = inlined_call_operand.hbm [shape: f32[32,32], index: 6, kind: input, shape index: {}]
  %s7 = inlined_call_operand.hbm [shape: f32[32,32], index: 7, kind: input, shape index: {}]
  %s8 = inlined_call_operand.vmem [shape: f32[1,32], index: 8, kind: input, shape index: {}]
  %s9 = inlined_call_operand.vmem [shape: f32[1,32], index: 9, kind: input, shape index: {}]
  %s10 = inlined_call_operand.vmem [shape: f32[1,32], index: 10, kind: input, shape index: {}]
  %s11 = inlined_call_operand.vmem [shape: f32[2,8,32], index: 11, kind: output, shape index: {}]
  %s12 = sld [smem:[#allocation0]]
  $region93: #{decoder_block.4} parent=0
    _
  %s14 = ssub.s32 1, %s12
  %s15 = scalar_select 0, %s14, %s12
  $region1: #{decoder_block.4} parent=0
    #allocation6 [shape = 'u8[16384]{0}', space=vmem, size = 0x4000, scoped, tag = 'input window, operand 6, single buffered']
    #allocation7 [shape = 's32[2]{0}', space=sflag, size = 0x8, scoped, tag = 'scoped memory for decoder_block.4']
    #allocation8 [shape = 'u8[16384]{0}', space=vmem, size = 0x4000, scoped, tag = 'input window, operand 7, single buffered']
    #allocation9 [shape = 's32[1]{0}', space=sflag, size = 0x4, scoped, tag = 'scoped memory for decoder_block.4']
    %16 = vsyncpa [#allocation7], 0
    %17 = vsyncpa [#allocation9], 0
    loop: start=0, step=1, limit=4
    $region2: #{decoder_block.4} parent=1 // loop_pre_header
      _
    $region3: #{decoder_block.4} parent=1 // loop_header
      %s19 = sphi 0, %s23
      %p20 = scmp.ge.s32.totalorder %s19, 4
      %s26 = sphi 0, %s45
      %s27 = sphi 0, %s41
      %s28 = sphi 0, %s37
      %s29 = sphi 0, %s26
      %s30 = sphi 0, %s27
      %s31 = sphi 0, %s28
      %s32 = sphi 0, %s29
      %s33 = sphi 0, %s30
      %s34 = sphi 0, %s31
      %s50 = sphi 0, %s52
      %s53 = sphi 0, %s50
      %s54 = sphi 0, %s53
      %s70 = sphi 0, %s54
      %s78 = sphi 0, %s80
      %s81 = sphi 0, %s78
      %s82 = sphi 0, %s81
      %s98 = sphi 0, %s82
      %s106 = sphi 0, %s108
      %s109 = sphi 0, %s106
      %s110 = sphi 0, %s109
      %s126 = sphi 0, %s110
      %s136 = sphi 0, %s138
      %s139 = sphi 0, %s136
      %s140 = sphi 0, %s139
      %s156 = sphi 0, %s140
      %s160 = sphi 0, %s160
      %s162 = sphi 0, %s160
      %s163 = sphi 0, %s162
      %s177 = sphi 0, %s163
      %s181 = sphi 0, %s181
      %s183 = sphi 0, %s181
      %s184 = sphi 0, %s183
      %s198 = sphi 0, %s184
      %s202 = sphi 0, %s202
      %s204 = sphi 0, %s202
      %s205 = sphi 0, %s204
      %s219 = sphi 0, %s205
      %s223 = sphi 0, %s223
      %s225 = sphi 0, %s223
      %s226 = sphi 0, %s225
      %s240 = sphi 0, %s226
      %s244 = sphi 0, %s244
      %s246 = sphi 0, %s244
      %s247 = sphi 0, %s246
      %s261 = sphi 0, %s247
      %s265 = sphi 0, %s265
      %s267 = sphi 0, %s265
      %s268 = sphi 0, %s267
      %s282 = sphi 0, %s268
      %s286 = sphi 0, %s286
      %s288 = sphi 0, %s286
      %s289 = sphi 0, %s288
      %s303 = sphi 0, %s289
      %s311 = sphi 0, %s313
      %s314 = sphi 0, %s311
      %s315 = sphi 0, %s314
      %s331 = sphi 0, %s315
    $region4: #{decoder_block.4} parent=1 // loop_header_branch
      %22 = sbr.rel (%p20) target = $region8
    $region5: #{decoder_block.4} parent=1 // loop_body
      %s24 = ssub.s32 %s19, 1
      %s25 = ssub.s32 %s19, 2
      %s35 = sadd.s32 1, %s28
      %p36 = scmp.ge.s32.totalorder %s35, 1
      %s37 = scalar_select %p36, 0, %s35
      %s38 = sadd.s32 1, %s27
      %s39 = scalar_select %p36, %s38, %s27
      %p40 = scmp.ge.s32.totalorder %s39, 1
      %s41 = scalar_select %p40, 0, %s39
      %s42 = sadd.s32 1, %s26
      %s43 = scalar_select %p40, %s42, %s26
      %p44 = scmp.ge.s32.totalorder %s43, 2
      %s45 = scalar_select %p44, 0, %s43
      %s46 = ssub.s32 %s26, %s45
      %s47 = ssub.s32 %s27, %s41
      %s48 = sor.u32 %s46, %s47
      %p49 = scmp.eq.s32.totalorder %s48, 0
      %s51 = sadd.s32 %s50, 1
      %s52 = scalar_select %p49, %s50, %s51
      %p55 = pneg %p49
      %p56 = scmp.eq.s32.totalorder %s19, 1
      %p57 = por %p55, %p56
      %p58 = scmp.ne.s32.totalorder %s50, %s53
      %p59 = scmp.eq.s32.totalorder %s19, 0
      %p60 = por %p58, %p59
      %p61 = scmp.ne.s32.totalorder %s50, %s53
      %p62 = scmp.eq.s32.totalorder %s24, 1
      %p63 = por %p61, %p62
      %p64 = scmp.ne.s32.totalorder %s53, %s54
      %p65 = scmp.eq.s32.totalorder %s24, 0
      %p66 = por %p64, %p65
      %p67 = scmp.ne.s32.totalorder %s53, %s54
      %p68 = scmp.eq.s32.totalorder %s25, 1
      %p69 = por %p67, %p68
      %p71 = scmp.ne.s32.totalorder %s54, %s70
      %p72 = scmp.eq.s32.totalorder %s25, 0
      %p73 = por %p71, %p72
      %s74 = ssub.s32 %s26, %s45
      %s75 = ssub.s32 %s28, %s37
      %s76 = sor.u32 %s74, %s75
      %p77 = scmp.eq.s32.totalorder %s76, 0
      %s79 = sadd.s32 %s78, 1
      %s80 = scalar_select %p77, %s78, %s79
      %p83 = pneg %p77
      %p84 = scmp.eq.s32.totalorder %s19, 1
      %p85 = por %p83, %p84
      %p86 = scmp.ne.s32.totalorder %s78, %s81
      %p87 = scmp.eq.s32.totalorder %s19, 0
      %p88 = por %p86, %p87
      %p89 = scmp.ne.s32.totalorder %s78, %s81
      %p90 = scmp.eq.s32.totalorder %s24, 1
      %p91 = por %p89, %p90
      %p92 = scmp.ne.s32.totalorder %s81, %s82
      %p93 = scmp.eq.s32.totalorder %s24, 0
      %p94 = por %p92, %p93
      %p95 = scmp.ne.s32.totalorder %s81, %s82
      %p96 = scmp.eq.s32.totalorder %s25, 1
      %p97 = por %p95, %p96
      %p99 = scmp.ne.s32.totalorder %s82, %s98
      %p100 = scmp.eq.s32.totalorder %s25, 0
      %p101 = por %p99, %p100
      %s102 = ssub.s32 %s26, %s45
      %s103 = ssub.s32 %s28, %s37
      %s104 = sor.u32 %s102, %s103
      %p105 = scmp.eq.s32.totalorder %s104, 0
      %s107 = sadd.s32 %s106, 1
      %s108 = scalar_select %p105, %s106, %s107
      %p111 = pneg %p105
      %p112 = scmp.eq.s32.totalorder %s19, 1
      %p113 = por %p111, %p112
      %p114 = scmp.ne.s32.totalorder %s106, %s109
      %p115 = scmp.eq.s32.totalorder %s19, 0
      %p116 = por %p114, %p115
      %p117 = scmp.ne.s32.totalorder %s106, %s109
      %p118 = scmp.eq.s32.totalorder %s24, 1
      %p119 = por %p117, %p118
      %p120 = scmp.ne.s32.totalorder %s109, %s110
      %p121 = scmp.eq.s32.totalorder %s24, 0
      %p122 = por %p120, %p121
      %p123 = scmp.ne.s32.totalorder %s109, %s110
      %p124 = scmp.eq.s32.totalorder %s25, 1
      %p125 = por %p123, %p124
      %p127 = scmp.ne.s32.totalorder %s110, %s126
      %p128 = scmp.eq.s32.totalorder %s25, 0
      %p129 = por %p127, %p128
      %s130 = ssub.s32 %s26, %s45
      %s131 = ssub.s32 %s27, %s41
      %s132 = sor.u32 %s130, %s131
      %s133 = ssub.s32 %s28, %s37
      %s134 = sor.u32 %s132, %s133
      %p135 = scmp.eq.s32.totalorder %s134, 0
      %s137 = sadd.s32 %s136, 1
      %s138 = scalar_select %p135, %s136, %s137
      %p141 = pneg %p135
      %p142 = scmp.eq.s32.totalorder %s19, 1
      %p143 = por %p141, %p142
      %p144 = scmp.ne.s32.totalorder %s136, %s139
      %p145 = scmp.eq.s32.totalorder %s19, 0
      %p146 = por %p144, %p145
      %p147 = scmp.ne.s32.totalorder %s136, %s139
      %p148 = scmp.eq.s32.totalorder %s24, 1
      %p149 = por %p147, %p148
      %p150 = scmp.ne.s32.totalorder %s139, %s140
      %p151 = scmp.eq.s32.totalorder %s24, 0
      %p152 = por %p150, %p151
      %p153 = scmp.ne.s32.totalorder %s139, %s140
      %p154 = scmp.eq.s32.totalorder %s25, 1
      %p155 = por %p153, %p154
      %p157 = scmp.ne.s32.totalorder %s140, %s156
      %p158 = scmp.eq.s32.totalorder %s25, 0
      %p159 = por %p157, %p158
      %s161 = sadd.s32 %s160, 1
      %p164 = scmp.eq.s32.totalorder %s19, 1
      %p165 = scmp.ne.s32.totalorder %s160, %s162
      %p166 = scmp.eq.s32.totalorder %s19, 0
      %p167 = por %p165, %p166
      %p168 = scmp.ne.s32.totalorder %s160, %s162
      %p169 = scmp.eq.s32.totalorder %s24, 1
      %p170 = por %p168, %p169
      %p171 = scmp.ne.s32.totalorder %s162, %s163
      %p172 = scmp.eq.s32.totalorder %s24, 0
      %p173 = por %p171, %p172
      %p174 = scmp.ne.s32.totalorder %s162, %s163
      %p175 = scmp.eq.s32.totalorder %s25, 1
      %p176 = por %p174, %p175
      %p178 = scmp.ne.s32.totalorder %s163, %s177
      %p179 = scmp.eq.s32.totalorder %s25, 0
      %p180 = por %p178, %p179
      %s182 = sadd.s32 %s181, 1
      %p185 = scmp.eq.s32.totalorder %s19, 1
      %p186 = scmp.ne.s32.totalorder %s181, %s183
      %p187 = scmp.eq.s32.totalorder %s19, 0
      %p188 = por %p186, %p187
      %p189 = scmp.ne.s32.totalorder %s181, %s183
      %p190 = scmp.eq.s32.totalorder %s24, 1
      %p191 = por %p189, %p190
      %p192 = scmp.ne.s32.totalorder %s183, %s184
      %p193 = scmp.eq.s32.totalorder %s24, 0
      %p194 = por %p192, %p193
      %p195 = scmp.ne.s32.totalorder %s183, %s184
      %p196 = scmp.eq.s32.totalorder %s25, 1
      %p197 = por %p195, %p196
      %p199 = scmp.ne.s32.totalorder %s184, %s198
      %p200 = scmp.eq.s32.totalorder %s25, 0
      %p201 = por %p199, %p200
      %s203 = sadd.s32 %s202, 1
      %p206 = scmp.eq.s32.totalorder %s19, 1
      %p207 = scmp.ne.s32.totalorder %s202, %s204
      %p208 = scmp.eq.s32.totalorder %s19, 0
      %p209 = por %p207, %p208
      %p210 = scmp.ne.s32.totalorder %s202, %s204
      %p211 = scmp.eq.s32.totalorder %s24, 1
      %p212 = por %p210, %p211
      %p213 = scmp.ne.s32.totalorder %s204, %s205
      %p214 = scmp.eq.s32.totalorder %s24, 0
      %p215 = por %p213, %p214
      %p216 = scmp.ne.s32.totalorder %s204, %s205
      %p217 = scmp.eq.s32.totalorder %s25, 1
      %p218 = por %p216, %p217
      %p220 = scmp.ne.s32.totalorder %s205, %s219
      %p221 = scmp.eq.s32.totalorder %s25, 0
      %p222 = por %p220, %p221
      %s224 = sadd.s32 %s223, 1
      %p227 = scmp.eq.s32.totalorder %s19, 1
      %p228 = scmp.ne.s32.totalorder %s223, %s225
      %p229 = scmp.eq.s32.totalorder %s19, 0
      %p230 = por %p228, %p229
      %p231 = scmp.ne.s32.totalorder %s223, %s225
      %p232 = scmp.eq.s32.totalorder %s24, 1
      %p233 = por %p231, %p232
      %p234 = scmp.ne.s32.totalorder %s225, %s226
      %p235 = scmp.eq.s32.totalorder %s24, 0
      %p236 = por %p234, %p235
      %p237 = scmp.ne.s32.totalorder %s225, %s226
      %p238 = scmp.eq.s32.totalorder %s25, 1
      %p239 = por %p237, %p238
      %p241 = scmp.ne.s32.totalorder %s226, %s240
      %p242 = scmp.eq.s32.totalorder %s25, 0
      %p243 = por %p241, %p242
      %s245 = sadd.s32 %s244, 1
      %p248 = scmp.eq.s32.totalorder %s19, 1
      %p249 = scmp.ne.s32.totalorder %s244, %s246
      %p250 = scmp.eq.s32.totalorder %s19, 0
      %p251 = por %p249, %p250
      %p252 = scmp.ne.s32.totalorder %s244, %s246
      %p253 = scmp.eq.s32.totalorder %s24, 1
      %p254 = por %p252, %p253
      %p255 = scmp.ne.s32.totalorder %s246, %s247
      %p256 = scmp.eq.s32.totalorder %s24, 0
      %p257 = por %p255, %p256
      %p258 = scmp.ne.s32.totalorder %s246, %s247
      %p259 = scmp.eq.s32.totalorder %s25, 1
      %p260 = por %p258, %p259
      %p262 = scmp.ne.s32.totalorder %s247, %s261
      %p263 = scmp.eq.s32.totalorder %s25, 0
      %p264 = por %p262, %p263
      %s266 = sadd.s32 %s265, 1
      %p269 = scmp.eq.s32.totalorder %s19, 1
      %p270 = scmp.ne.s32.totalorder %s265, %s267
      %p271 = scmp.eq.s32.totalorder %s19, 0
      %p272 = por %p270, %p271
      %p273 = scmp.ne.s32.totalorder %s265, %s267
      %p274 = scmp.eq.s32.totalorder %s24, 1
      %p275 = por %p273, %p274
      %p276 = scmp.ne.s32.totalorder %s267, %s268
      %p277 = scmp.eq.s32.totalorder %s24, 0
      %p278 = por %p276, %p277
      %p279 = scmp.ne.s32.totalorder %s267, %s268
      %p280 = scmp.eq.s32.totalorder %s25, 1
      %p281 = por %p279, %p280
      %p283 = scmp.ne.s32.totalorder %s268, %s282
      %p284 = scmp.eq.s32.totalorder %s25, 0
      %p285 = por %p283, %p284
      %s287 = sadd.s32 %s286, 1
      %p290 = scmp.eq.s32.totalorder %s19, 1
      %p291 = scmp.ne.s32.totalorder %s286, %s288
      %p292 = scmp.eq.s32.totalorder %s19, 0
      %p293 = por %p291, %p292
      %p294 = scmp.ne.s32.totalorder %s286, %s288
      %p295 = scmp.eq.s32.totalorder %s24, 1
      %p296 = por %p294, %p295
      %p297 = scmp.ne.s32.totalorder %s288, %s289
      %p298 = scmp.eq.s32.totalorder %s24, 0
      %p299 = por %p297, %p298
      %p300 = scmp.ne.s32.totalorder %s288, %s289
      %p301 = scmp.eq.s32.totalorder %s25, 1
      %p302 = por %p300, %p301
      %p304 = scmp.ne.s32.totalorder %s289, %s303
      %p305 = scmp.eq.s32.totalorder %s25, 0
      %p306 = por %p304, %p305
      %s307 = ssub.s32 %s26, %s45
      %s308 = ssub.s32 %s27, %s41
      %s309 = sor.u32 %s307, %s308
      %p310 = scmp.eq.s32.totalorder %s309, 0
      %s312 = sadd.s32 %s311, 1
      %s313 = scalar_select %p310, %s311, %s312
      %p316 = pneg %p310
      %p317 = scmp.eq.s32.totalorder %s19, 1
      %p318 = por %p316, %p317
      %p319 = scmp.ne.s32.totalorder %s311, %s314
      %p320 = scmp.eq.s32.totalorder %s19, 0
      %p321 = por %p319, %p320
      %p322 = scmp.ne.s32.totalorder %s311, %s314
      %p323 = scmp.eq.s32.totalorder %s24, 1
      %p324 = por %p322, %p323
      %p325 = scmp.ne.s32.totalorder %s314, %s315
      %p326 = scmp.eq.s32.totalorder %s24, 0
      %p327 = por %p325, %p326
      %p328 = scmp.ne.s32.totalorder %s314, %s315
      %p329 = scmp.eq.s32.totalorder %s25, 1
      %p330 = por %p328, %p329
      %p332 = scmp.ne.s32.totalorder %s315, %s331
      %p333 = scmp.eq.s32.totalorder %s25, 0
      %p334 = por %p332, %p333
      %p335 = scmp.le.s32.totalorder 1, %s19
      %p336 = scmp.lt.s32.totalorder %s19, 3
      %p337 = pnand %p335, %p336
      %p338 = pneg %p337
      // Predicated region
      $region9: #{decoder_block.4} parent=5 // pred_check
        _
      $region10: #{decoder_block.4} parent=5 // pred_check_branch
        %340 = sbr.rel (%p337) target = $region12
      $region11: #{decoder_block.4} parent=5 // pred_region
        %s341 = ssub.s32 %s19, 1
        // Predicated region
        $region13: #{decoder_block.4} parent=11 // pred_check
          %p342 = pneg %p173
        $region14: #{decoder_block.4} parent=11 // pred_check_branch
          %344 = sbr.rel (%p342) target = $region16
        $region15: #{decoder_block.4} parent=11 // pred_region
          _
        $region16: #{decoder_block.4} parent=11 // pred_fallthru
          _
        // Predicated region
        $region17: #{decoder_block.4} parent=11 // pred_check
          %p345 = pneg %p194
        $region18: #{decoder_block.4} parent=11 // pred_check_branch
          %347 = sbr.rel (%p345) target = $region20
        $region19: #{decoder_block.4} parent=11 // pred_region
          _
        $region20: #{decoder_block.4} parent=11 // pred_fallthru
          _
        // Predicated region
        $region21: #{decoder_block.4} parent=11 // pred_check
          %p348 = pneg %p215
        $region22: #{decoder_block.4} parent=11 // pred_check_branch
          %350 = sbr.rel (%p348) target = $region24
        $region23: #{decoder_block.4} parent=11 // pred_region
          %352 = vsyncadd [#allocation7], 0
          %s353 = sshll.u32 %s6, 4
          %s354 = int_to_ptr.hbm [resolvable:$true] %s353
          %s355 = sshll.u32 [#allocation6], 4
          %s356 = int_to_ptr.vmem [resolvable:$true] %s355
          %361 = dma.hbm_to_vmem [thread:$0]  %s354, 512, %s356, [#allocation7], 128, 128, 8
        $region24: #{decoder_block.4} parent=11 // pred_fallthru
          _
        // Predicated region
        $region25: #{decoder_block.4} parent=11 // pred_check
          %p362 = pneg %p236
        $region26: #{decoder_block.4} parent=11 // pred_check_branch
          %364 = sbr.rel (%p362) target = $region28
        $region27: #{decoder_block.4} parent=11 // pred_region
          %366 = vsyncadd [#allocation9], 0
          %s367 = sshll.u32 %s7, 4
          %s368 = int_to_ptr.hbm [resolvable:$true] %s367
          %s369 = sshll.u32 [#allocation8], 4
          %s370 = int_to_ptr.vmem [resolvable:$true] %s369
          %375 = dma.hbm_to_vmem [thread:$0]  %s368, 512, %s370, [#allocation9], 128, 128, 8
        $region28: #{decoder_block.4} parent=11 // pred_fallthru
          _
        // Predicated region
        $region29: #{decoder_block.4} parent=11 // pred_check
          %p376 = pneg %p257
        $region30: #{decoder_block.4} parent=11 // pred_check_branch
          %378 = sbr.rel (%p376) target = $region32
        $region31: #{decoder_block.4} parent=11 // pred_region
          _
        $region32: #{decoder_block.4} parent=11 // pred_fallthru
          _
        // Predicated region
        $region33: #{decoder_block.4} parent=11 // pred_check
          %p379 = pneg %p278
        $region34: #{decoder_block.4} parent=11 // pred_check_branch
          %381 = sbr.rel (%p379) target = $region36
        $region35: #{decoder_block.4} parent=11 // pred_region
          _
        $region36: #{decoder_block.4} parent=11 // pred_fallthru
          _
        // Predicated region
        $region37: #{decoder_block.4} parent=11 // pred_check
          %p382 = pneg %p299
        $region38: #{decoder_block.4} parent=11 // pred_check_branch
          %384 = sbr.rel (%p382) target = $region40
        $region39: #{decoder_block.4} parent=11 // pred_region
          _
        $region40: #{decoder_block.4} parent=11 // pred_fallthru
          _
      $region12: #{decoder_block.4} parent=5 // pred_fallthru
        _
      %p385 = scmp.lt.s32.totalorder %s19, 2
      // Predicated region
      $region41: #{decoder_block.4} parent=5 // pred_check
        %p386 = pneg %p385
      $region42: #{decoder_block.4} parent=5 // pred_check_branch
        %388 = sbr.rel (%p386) target = $region44
      $region43: #{decoder_block.4} parent=5 // pred_region
        // Predicated region
        $region45: #{decoder_block.4} parent=43 // pred_check
          %p389 = pneg %p60
        $region46: #{decoder_block.4} parent=43 // pred_check_branch
          %391 = sbr.rel (%p389) target = $region48
        $region47: #{decoder_block.4} parent=43 // pred_region
          %p392 = scmp.lt.s32.totalorder %s26, 1
          %s393 = scalar_select %p392, %s26, 1
          %p394 = scmp.lt.s32.totalorder %s27, 0
          %s395 = scalar_select %p394, %s27, 0
          %s396 = sadd.s32 %s395, %s393
          %s397 = smul.addr %s396, 8
          %s398 = scalar_lea.vmem %s0, %s397
        $region48: #{decoder_block.4} parent=43 // pred_fallthru
          _
        // Predicated region
        $region49: #{decoder_block.4} parent=43 // pred_check
          %p399 = pneg %p88
        $region50: #{decoder_block.4} parent=43 // pred_check_branch
          %401 = sbr.rel (%p399) target = $region52
        $region51: #{decoder_block.4} parent=43 // pred_region
          %p402 = scmp.lt.s32.totalorder %s26, 1
          %s403 = scalar_select %p402, %s26, 1
          %p404 = scmp.lt.s32.totalorder %s28, 0
          %s405 = scalar_select %p404, %s28, 0
          %s406 = smul.addr %s403, 4
          %s407 = sadd.s32 %s405, %s406
          %s408 = smul.addr %s407, 8
          %s409 = scalar_lea.vmem %s1, %s408
        $region52: #{decoder_block.4} parent=43 // pred_fallthru
          _
        // Predicated region
        $region53: #{decoder_block.4} parent=43 // pred_check
          %p410 = pneg %p116
        $region54: #{decoder_block.4} parent=43 // pred_check_branch
          %412 = sbr.rel (%p410) target = $region56
        $region55: #{decoder_block.4} parent=43 // pred_region
          %p413 = scmp.lt.s32.totalorder %s26, 1
          %s414 = scalar_select %p413, %s26, 1
          %p415 = scmp.lt.s32.totalorder %s28, 0
          %s416 = scalar_select %p415, %s28, 0
          %s417 = sadd.s32 %s416, %s414
          %s418 = smul.addr %s417, 8
          %s419 = scalar_lea.vmem %s2, %s418
        $region56: #{decoder_block.4} parent=43 // pred_fallthru
          _
        // Predicated region
        $region57: #{decoder_block.4} parent=43 // pred_check
          %p420 = pneg %p146
        $region58: #{decoder_block.4} parent=43 // pred_check_branch
          %422 = sbr.rel (%p420) target = $region60
        $region59: #{decoder_block.4} parent=43 // pred_region
          %p423 = scmp.lt.s32.totalorder %s26, 1
          %s424 = scalar_select %p423, %s26, 1
          %p425 = scmp.lt.s32.totalorder %s27, 0
          %s426 = scalar_select %p425, %s27, 0
          %p427 = scmp.lt.s32.totalorder %s28, 0
          %s428 = scalar_select %p427, %s28, 0
          %s429 = sadd.s32 %s428, %s426
          %s430 = sadd.s32 %s429, %s424
          %s431 = smul.addr %s430, 8
          %s432 = scalar_lea.vmem %s3, %s431
        $region60: #{decoder_block.4} parent=43 // pred_fallthru
          _
      $region44: #{decoder_block.4} parent=5 // pred_fallthru
        _
      %p433 = scmp.le.s32.totalorder 1, %s19
      %p434 = scmp.lt.s32.totalorder %s19, 3
      %p435 = pnand %p433, %p434
      %p436 = pneg %p435
      // Predicated region
      $region61: #{decoder_block.4} parent=5 // pred_check
        _
      $region62: #{decoder_block.4} parent=5 // pred_check_branch
        %438 = sbr.rel (%p435) target = $region64
      $region63: #{decoder_block.4} parent=5 // pred_region
        %s439 = ssub.s32 %s19, 1
        // Predicated region
        $region65: #{decoder_block.4} parent=63 // pred_check
          %p440 = pneg %p215
        $region66: #{decoder_block.4} parent=63 // pred_check_branch
          %442 = sbr.rel (%p440) target = $region68
        $region67: #{decoder_block.4} parent=63 // pred_region
          %444 = dma.done [#allocation7], 512
        $region68: #{decoder_block.4} parent=63 // pred_fallthru
          _
        // Predicated region
        $region69: #{decoder_block.4} parent=63 // pred_check
          %p445 = pneg %p236
        $region70: #{decoder_block.4} parent=63 // pred_check_branch
          %447 = sbr.rel (%p445) target = $region72
        $region71: #{decoder_block.4} parent=63 // pred_region
          %449 = dma.done [#allocation9], 512
        $region72: #{decoder_block.4} parent=63 // pred_fallthru
          _
        %p450 = scmp.lt.s32.totalorder %s29, 1
        %s451 = scalar_select %p450, %s29, 1
        %p452 = scmp.lt.s32.totalorder %s30, 0
        %s453 = scalar_select %p452, %s30, 0
        %s454 = sadd.s32 %s453, %s451
        %s455 = smul.addr %s454, 8
        %s456 = scalar_lea.vmem %s0, %s455
        %p457 = pneg %p66
        %p458 = pneg %p63
        %p459 = scmp.lt.s32.totalorder %s29, 1
        %s460 = scalar_select %p459, %s29, 1
        %p461 = scmp.lt.s32.totalorder %s31, 0
        %s462 = scalar_select %p461, %s31, 0
        %s463 = smul.addr %s460, 4
        %s464 = sadd.s32 %s462, %s463
        %s465 = smul.addr %s464, 8
        %s466 = scalar_lea.vmem %s1, %s465
        %p467 = pneg %p94
        %p468 = pneg %p91
        %p469 = scmp.lt.s32.totalorder %s29, 1
        %s470 = scalar_select %p469, %s29, 1
        %p471 = scmp.lt.s32.totalorder %s31, 0
        %s472 = scalar_select %p471, %s31, 0
        %s473 = sadd.s32 %s472, %s470
        %s474 = smul.addr %s473, 8
        %s475 = scalar_lea.vmem %s2, %s474
        %p476 = pneg %p122
        %p477 = pneg %p119
        %p478 = scmp.lt.s32.totalorder %s29, 1
        %s479 = scalar_select %p478, %s29, 1
        %p480 = scmp.lt.s32.totalorder %s30, 0
        %s481 = scalar_select %p480, %s30, 0
        %p482 = scmp.lt.s32.totalorder %s31, 0
        %s483 = scalar_select %p482, %s31, 0
        %s484 = sadd.s32 %s483, %s481
        %s485 = sadd.s32 %s484, %s479
        %s486 = smul.addr %s485, 8
        %s487 = scalar_lea.vmem %s3, %s486
        %p488 = pneg %p152
        %p489 = pneg %p149
        %p490 = pneg %p173
        %p491 = pneg %p170
        %p492 = pneg %p194
        %p493 = pneg %p191
        %p494 = pneg %p215
        %p495 = pneg %p212
        %p496 = pneg %p236
        %p497 = pneg %p233
        %p498 = pneg %p257
        %p499 = pneg %p254
        %p500 = pneg %p278
        %p501 = pneg %p275
        %p502 = pneg %p299
        %p503 = pneg %p296
        %p504 = pneg %p327
        %p505 = pneg %p324
        %p506 = scmp.lt.s32.totalorder %s29, 1
        %s507 = scalar_select %p506, %s29, 1
        %p508 = scmp.lt.s32.totalorder %s30, 0
        %s509 = scalar_select %p508, %s30, 0
        %s510 = sadd.s32 %s509, %s507
        %s511 = smul.addr %s510, 8
        %s512 = scalar_lea.vmem %s11, %s511
        %p513 = scmp.lt.s32.totalorder %s29, 1
        %s514 = scalar_select %p513, %s29, 1
        %p515 = scmp.lt.s32.totalorder %s30, 0
        %s516 = scalar_select %p515, %s30, 0
        %s517 = sadd.s32 %s516, %s514
        %s518 = smul.addr %s517, 8
        %s519 = scalar_lea.vmem %s0, %s518
        %p520 = scmp.lt.s32.totalorder %s29, 1
        %s521 = scalar_select %p520, %s29, 1
        %p522 = scmp.lt.s32.totalorder %s31, 0
        %s523 = scalar_select %p522, %s31, 0
        %s524 = smul.addr %s521, 4
        %s525 = sadd.s32 %s523, %s524
        %s526 = smul.addr %s525, 8
        %s527 = scalar_lea.vmem %s1, %s526
        %p528 = scmp.lt.s32.totalorder %s29, 1
        %s529 = scalar_select %p528, %s29, 1
        %p530 = scmp.lt.s32.totalorder %s31, 0
        %s531 = scalar_select %p530, %s31, 0
        %s532 = sadd.s32 %s531, %s529
        %s533 = smul.addr %s532, 8
        %s534 = scalar_lea.vmem %s2, %s533
        %p535 = scmp.lt.s32.totalorder %s29, 1
        %s536 = scalar_select %p535, %s29, 1
        %p537 = scmp.lt.s32.totalorder %s30, 0
        %s538 = scalar_select %p537, %s30, 0
        %p539 = scmp.lt.s32.totalorder %s31, 0
        %s540 = scalar_select %p539, %s31, 0
        %s541 = sadd.s32 %s540, %s538
        %s542 = sadd.s32 %s541, %s536
        %s543 = smul.addr %s542, 8
        %s544 = scalar_lea.vmem %s3, %s543
        %p545 = scmp.lt.s32.totalorder %s29, 1
        %s546 = scalar_select %p545, %s29, 1
        %p547 = scmp.lt.s32.totalorder %s30, 0
        %s548 = scalar_select %p547, %s30, 0
        %s549 = sadd.s32 %s548, %s546
        %s550 = smul.addr %s549, 8
        %s551 = scalar_lea.vmem %s11, %s550
        %p552 = scmp.eq.s32.totalorder %s31, 0
        // Predicated region
        $region73: #{decoder_block.4} parent=63 // pred_check
          %p553 = pneg %p552
        $region74: #{decoder_block.4} parent=63 // pred_check_branch
          %555 = sbr.rel (%p553) target = $region76
        $region75: #{decoder_block.4} parent=63 // pred_region
          %v556 = vld [vmem:[%s519] sm:$0xff]
          %v557 = vld [vmem:[%s4] sm:$0xff]
          %v558 = vld [vmem:[%s4 + $0x8] sm:$0xff]
          %v559 = vld [vmem:[%s4 + $0x10] sm:$0xff]
          %v560 = vld [vmem:[%s4 + $0x18] sm:$0xff]
          %vm561 = vcmask 261120
          %v563 = vsel %vm561, %v556, 0
          %565 = vmatpush.msra.mxu0 0.0
          %566 = vmatpush.msra.mxu0 0.0
          %567 = vmatpush.msra.mxu0 0.0
          %568 = vmatpush.msra.mxu0 0.0
          %569 = vmatpush.msra.mxu0 0.0
          %570 = vmatpush.msra.mxu0 0.0
          %571 = vmatpush.msra.mxu0 0.0
          %572 = vmatpush.msra.mxu0 0.0
          %573 = vmatpush.msra.mxu0 0.0
          %574 = vmatpush.msra.mxu0 0.0
          %575 = vmatpush.msra.mxu0 0.0
          %576 = vmatpush.msra.mxu0 0.0
          %577 = vmatpush.msra.mxu0 %v560
          %578 = vmatpush.msra.mxu0 %v559
          %579 = vmatpush.msra.mxu0 %v558
          %580 = vmatpush.msra.mxu0 %v557
          %581 = vmatmul.f32.gmra.mxu0 %v563
          %v582 = vpop.f32.mrf.mxu0
          %v583 = vadd.f32 0.0, %v582
          %584 = vdwg.mxu0
          %585 = vst.msk [vmem:[#allocation2] sm:$0xff] %vm561, %v583
          %vm586 = vcmask 7168
          %587 = vst.msk [vmem:[#allocation3] sm:$0xff] %vm586, -inf
          %588 = vst.msk [vmem:[#allocation3 + $0x8] sm:$0xff] %vm586, -inf
          %589 = vst.msk [vmem:[#allocation3 + $0x10] sm:$0xff] %vm586, -inf
          %590 = vst.msk [vmem:[#allocation3 + $0x18] sm:$0xff] %vm586, -inf
          %591 = vst.msk [vmem:[#allocation4] sm:$0xff] %vm586, 0.0
          %592 = vst.msk [vmem:[#allocation4 + $0x8] sm:$0xff] %vm586, 0.0
          %593 = vst.msk [vmem:[#allocation4 + $0x10] sm:$0xff] %vm586, 0.0
          %594 = vst.msk [vmem:[#allocation4 + $0x18] sm:$0xff] %vm586, 0.0
          %vm595 = vcmask 64512
          %596 = vst.msk [vmem:[#allocation5] sm:$0xff] %vm595, 0.0
          %597 = vst.msk [vmem:[#allocation5 + $0x8] sm:$0xff] %vm595, 0.0
          %598 = vst.msk [vmem:[#allocation5 + $0x10] sm:$0xff] %vm595, 0.0
          %599 = vst.msk [vmem:[#allocation5 + $0x18] sm:$0xff] %vm595, 0.0
        $region76: #{decoder_block.4} parent=63 // pred_fallthru
          _
        %v600 = vld [vmem:[%s5] sm:$0xff]
        %v601 = vld [vmem:[%s5 + $0x8] sm:$0xff]
        %v602 = vld [vmem:[%s5 + $0x10] sm:$0xff]
        %v603 = vld [vmem:[%s5 + $0x18] sm:$0xff]
        %v604 = vld [vmem:[%s527] sm:$0xff]
        %v605 = vld [vmem:[%s527 + $0x8] sm:$0xff]
        %v606 = vld [vmem:[%s527 + $0x10] sm:$0xff]
        %v607 = vld [vmem:[%s527 + $0x18] sm:$0xff]
        %vm608 = vcmask 261120
        %v610 = vsel %vm608, %v600, 0
        %v613 = vsel %vm608, %v601, 0
        %v616 = vsel %vm608, %v602, 0
        %v619 = vsel %vm608, %v603, 0
        %621 = vmatpush.msra.mxu0 0.0
        %622 = vmatpush.msra.mxu0 0.0
        %623 = vmatpush.msra.mxu0 0.0
        %624 = vmatpush.msra.mxu0 0.0
        %625 = vmatpush.msra.mxu0 0.0
        %626 = vmatpush.msra.mxu0 0.0
        %627 = vmatpush.msra.mxu0 0.0
        %628 = vmatpush.msra.mxu0 0.0
        %629 = vmatpush.msra.mxu0 0.0
        %630 = vmatpush.msra.mxu0 0.0
        %631 = vmatpush.msra.mxu0 0.0
        %632 = vmatpush.msra.mxu0 0.0
        %633 = vmatpush.msra.mxu0 %v607
        %634 = vmatpush.msra.mxu0 %v606
        %635 = vmatpush.msra.mxu0 %v605
        %636 = vmatpush.msra.mxu0 %v604
        %637 = vmatmul.f32.gmra.mxu0 %v610
        %v638 = vpop.f32.mrf.mxu0
        %v639 = vadd.f32 0.0, %v638
        %640 = vmatmul.f32.gmra.mxu0 %v613
        %v641 = vpop.f32.mrf.mxu0
        %v642 = vadd.f32 0.0, %v641
        %643 = vmatmul.f32.gmra.mxu0 %v616
        %v644 = vpop.f32.mrf.mxu0
        %v645 = vadd.f32 0.0, %v644
        %646 = vmatmul.f32.gmra.mxu0 %v619
        %v647 = vpop.f32.mrf.mxu0
        %v648 = vadd.f32 0.0, %v647
        %649 = vdwg.mxu0
        %v650 = vld [vmem:[%s534] sm:$0xff]
        %v651 = vld [vmem:[#allocation6] sm:$0xff]
        %v652 = vld [vmem:[#allocation6 + $0x8] sm:$0xff]
        %v653 = vld [vmem:[#allocation6 + $0x10] sm:$0xff]
        %v654 = vld [vmem:[#allocation6 + $0x18] sm:$0xff]
        %v656 = vsel %vm608, %v650, 0
        %658 = vmatpush.msra.mxu0 0.0
        %659 = vmatpush.msra.mxu0 0.0
        %660 = vmatpush.msra.mxu0 0.0
        %661 = vmatpush.msra.mxu0 0.0
        %662 = vmatpush.msra.mxu0 0.0
        %663 = vmatpush.msra.mxu0 0.0
        %664 = vmatpush.msra.mxu0 0.0
        %665 = vmatpush.msra.mxu0 0.0
        %666 = vmatpush.msra.mxu0 0.0
        %667 = vmatpush.msra.mxu0 0.0
        %668 = vmatpush.msra.mxu0 0.0
        %669 = vmatpush.msra.mxu0 0.0
        %670 = vmatpush.msra.mxu0 %v654
        %671 = vmatpush.msra.mxu0 %v653
        %672 = vmatpush.msra.mxu0 %v652
        %673 = vmatpush.msra.mxu0 %v651
        %674 = vmatmul.f32.gmra.mxu0 %v656
        %v675 = vpop.f32.mrf.mxu0
        %v676 = vadd.f32 0.0, %v675
        %677 = vdwg.mxu0
        %v678 = vld [vmem:[%s544] sm:$0xff]
        %v679 = vld [vmem:[#allocation2] sm:$0xff]
        %vm680 = vcmask 64512
        %v682 = vsel %vm680, %v679, 0
        %684 = vmatpush.msra.mxu0 0.0
        %685 = vmatpush.msra.mxu0 0.0
        %686 = vmatpush.msra.mxu0 0.0
        %687 = vmatpush.msra.mxu0 0.0
        %688 = vmatpush.msra.mxu0 0.0
        %689 = vmatpush.msra.mxu0 0.0
        %690 = vmatpush.msra.mxu0 0.0
        %691 = vmatpush.msra.mxu0 0.0
        %692 = vmatpush.msra.mxu0 0.0
        %693 = vmatpush.msra.mxu0 0.0
        %694 = vmatpush.msra.mxu0 0.0
        %695 = vmatpush.msra.mxu0 0.0
        %696 = vmatpush.msra.mxu0 0.0
        %697 = vmatpush.msra.mxu0 0.0
        %698 = vmatpush.msra.mxu0 0.0
        %699 = vmatpush.msra.mxu0 %v639
        %700 = vmatmul.f32.gmra.mxu0 %v682
        %v701 = vpop.f32.mrf.mxu0
        %v702 = vadd.f32 %v678, %v701
        %703 = vdwg.mxu0
        %v704 = vld [vmem:[#allocation3] sm:$0xff]
        %v705 = vsel %vm680, %v702, -inf
        %706 = vmax.xlane.f32.xlu0 %v705
        %v707 = vpop.xlane.xlu0 %706
        %v708 = vmax.f32 %v704, %v707
        %v709 = vsub.f32 %v704, %v708
        %v710 = vmul.f32 %v709, 1.442695
        %v711 = vpow.pop %v710
        %713 = vset.pattern.permute.xlu0 0
        %714 = vperm.xlu0 %713, %v708
        %v715 = vpop.permute.xlu0 %714
        %v717 = vsub.f32 %v702, %v715
        %v718 = vmul.f32 %v717, 1.442695
        %v719 = vpow.pop %v718
        %v720 = vld [vmem:[#allocation4] sm:$0xff]
        %v721 = vmul.f32 %v711, %v720
        %v722 = vsel %vm680, %v719, 0.0
        %723 = vadd.xlane.f32.xlu0 %v722
        %v724 = vpop.xlane.xlu0 %723
        %v725 = vadd.f32 %v721, %v724
        %vm726 = vcmask 7168
        %727 = vst.msk [vmem:[#allocation4] sm:$0xff] %vm726, %v725
        %v728 = vld [vmem:[#allocation5] sm:$0xff]
        %730 = vset.pattern.permute.xlu0 0
        %731 = vperm.xlu0 %730, %v711
        %v732 = vpop.permute.xlu0 %731
        %v734 = vmul.f32 %v732, %v728
        %v736 = vsel %vm680, %v719, 0
        %738 = vmatpush.msra.mxu0 0.0
        %739 = vmatpush.msra.mxu0 0.0
        %740 = vmatpush.msra.mxu0 0.0
        %741 = vmatpush.msra.mxu0 0.0
        %742 = vmatpush.msra.mxu0 0.0
        %743 = vmatpush.msra.mxu0 0.0
        %744 = vmatpush.msra.mxu0 0.0
        %745 = vmatpush.msra.mxu0 0.0
        %746 = vmatpush.msra.mxu0 0.0
        %747 = vmatpush.msra.mxu0 0.0
        %748 = vmatpush.msra.mxu0 0.0
        %749 = vmatpush.msra.mxu0 0.0
        %750 = vmatpush.msra.mxu0 0.0
        %751 = vmatpush.msra.mxu0 0.0
        %752 = vmatpush.msra.mxu0 0.0
        %753 = vmatpush.msra.mxu0 %v676
        %754 = vmatmul.f32.gmra.mxu0 %v736
        %v755 = vpop.f32.mrf.mxu0
        %v756 = vadd.f32 0.0, %v755
        %757 = vdwg.mxu0
        %v758 = vadd.f32 %v734, %v756
        %759 = vst.msk [vmem:[#allocation5] sm:$0xff] %vm680, %v758
        %760 = vst.msk [vmem:[#allocation3] sm:$0xff] %vm726, %v708
        %761 = vrot.lane.b32.xlu0 %v679, 120
        %v762 = vpop.permute.xlu0 %761
        %v763 = vsel %vm680, %v762, 0
        %765 = vmatpush.msra.mxu0 0.0
        %766 = vmatpush.msra.mxu0 0.0
        %767 = vmatpush.msra.mxu0 0.0
        %768 = vmatpush.msra.mxu0 0.0
        %769 = vmatpush.msra.mxu0 0.0
        %770 = vmatpush.msra.mxu0 0.0
        %771 = vmatpush.msra.mxu0 0.0
        %772 = vmatpush.msra.mxu0 0.0
        %773 = vmatpush.msra.mxu0 0.0
        %774 = vmatpush.msra.mxu0 0.0
        %775 = vmatpush.msra.mxu0 0.0
        %776 = vmatpush.msra.mxu0 0.0
        %777 = vmatpush.msra.mxu0 0.0
        %778 = vmatpush.msra.mxu0 0.0
        %779 = vmatpush.msra.mxu0 0.0
        %780 = vmatpush.msra.mxu0 %v642
        %781 = vmatmul.f32.gmra.mxu0 %v763
        %v782 = vpop.f32.mrf.mxu0
        %v783 = vadd.f32 %v678, %v782
        %784 = vdwg.mxu0
        %s785 = scalar_lea.vmem [#allocation3], 8
        %v786 = vld [vmem:[%s785] sm:$0xff]
        %v787 = vsel %vm680, %v783, -inf
        %788 = vmax.xlane.f32.xlu0 %v787
        %v789 = vpop.xlane.xlu0 %788
        %v790 = vmax.f32 %v786, %v789
        %v791 = vsub.f32 %v786, %v790
        %v792 = vmul.f32 %v791, 1.442695
        %v793 = vpow.pop %v792
        %795 = vset.pattern.permute.xlu0 0
        %796 = vperm.xlu0 %795, %v790
        %v797 = vpop.permute.xlu0 %796
        %v799 = vsub.f32 %v783, %v797
        %v800 = vmul.f32 %v799, 1.442695
        %v801 = vpow.pop %v800
        %s802 = scalar_lea.vmem [#allocation4], 8
        %v803 = vld [vmem:[%s802] sm:$0xff]
        %v804 = vmul.f32 %v793, %v803
        %v805 = vsel %vm680, %v801, 0.0
        %806 = vadd.xlane.f32.xlu0 %v805
        %v807 = vpop.xlane.xlu0 %806
        %v808 = vadd.f32 %v804, %v807
        %809 = vst.msk [vmem:[%s802] sm:$0xff] %vm726, %v808
        %s810 = scalar_lea.vmem [#allocation5], 8
        %v811 = vld [vmem:[%s810] sm:$0xff]
        %813 = vset.pattern.permute.xlu0 0
        %814 = vperm.xlu0 %813, %v793
        %v815 = vpop.permute.xlu0 %814
        %v817 = vmul.f32 %v815, %v811
        %819 = vrot.lane.b32.xlu0 %v676, 120
        %v820 = vpop.permute.xlu0 %819
        %v823 = vsel %vm680, %v801, 0
        %825 = vmatpush.msra.mxu0 0.0
        %826 = vmatpush.msra.mxu0 0.0
        %827 = vmatpush.msra.mxu0 0.0
        %828 = vmatpush.msra.mxu0 0.0
        %829 = vmatpush.msra.mxu0 0.0
        %830 = vmatpush.msra.mxu0 0.0
        %831 = vmatpush.msra.mxu0 0.0
        %832 = vmatpush.msra.mxu0 0.0
        %833 = vmatpush.msra.mxu0 0.0
        %834 = vmatpush.msra.mxu0 0.0
        %835 = vmatpush.msra.mxu0 0.0
        %836 = vmatpush.msra.mxu0 0.0
        %837 = vmatpush.msra.mxu0 0.0
        %838 = vmatpush.msra.mxu0 0.0
        %839 = vmatpush.msra.mxu0 0.0
        %840 = vmatpush.msra.mxu0 %v820
        %841 = vmatmul.f32.gmra.mxu0 %v823
        %v842 = vpop.f32.mrf.mxu0
        %v843 = vadd.f32 0.0, %v842
        %844 = vdwg.mxu0
        %v845 = vadd.f32 %v817, %v843
        %846 = vst.msk [vmem:[%s810] sm:$0xff] %vm680, %v845
        %847 = vst.msk [vmem:[%s785] sm:$0xff] %vm726, %v790
        %848 = vrot.lane.b32.xlu0 %v679, 112
        %v849 = vpop.permute.xlu0 %848
        %v850 = vsel %vm680, %v849, 0
        %852 = vmatpush.msra.mxu0 0.0
        %853 = vmatpush.msra.mxu0 0.0
        %854 = vmatpush.msra.mxu0 0.0
        %855 = vmatpush.msra.mxu0 0.0
        %856 = vmatpush.msra.mxu0 0.0
        %857 = vmatpush.msra.mxu0 0.0
        %858 = vmatpush.msra.mxu0 0.0
        %859 = vmatpush.msra.mxu0 0.0
        %860 = vmatpush.msra.mxu0 0.0
        %861 = vmatpush.msra.mxu0 0.0
        %862 = vmatpush.msra.mxu0 0.0
        %863 = vmatpush.msra.mxu0 0.0
        %864 = vmatpush.msra.mxu0 0.0
        %865 = vmatpush.msra.mxu0 0.0
        %866 = vmatpush.msra.mxu0 0.0
        %867 = vmatpush.msra.mxu0 %v645
        %868 = vmatmul.f32.gmra.mxu0 %v850
        %v869 = vpop.f32.mrf.mxu0
        %v870 = vadd.f32 %v678, %v869
        %871 = vdwg.mxu0
        %s872 = scalar_lea.vmem [#allocation3], 16
        %v873 = vld [vmem:[%s872] sm:$0xff]
        %v874 = vsel %vm680, %v870, -inf
        %875 = vmax.xlane.f32.xlu0 %v874
        %v876 = vpop.xlane.xlu0 %875
        %v877 = vmax.f32 %v873, %v876
        %v878 = vsub.f32 %v873, %v877
        %v879 = vmul.f32 %v878, 1.442695
        %v880 = vpow.pop %v879
        %882 = vset.pattern.permute.xlu0 0
        %883 = vperm.xlu0 %882, %v877
        %v884 = vpop.permute.xlu0 %883
        %v886 = vsub.f32 %v870, %v884
        %v887 = vmul.f32 %v886, 1.442695
        %v888 = vpow.pop %v887
        %s889 = scalar_lea.vmem [#allocation4], 16
        %v890 = vld [vmem:[%s889] sm:$0xff]
        %v891 = vmul.f32 %v880, %v890
        %v892 = vsel %vm680, %v888, 0.0
        %893 = vadd.xlane.f32.xlu0 %v892
        %v894 = vpop.xlane.xlu0 %893
        %v895 = vadd.f32 %v891, %v894
        %896 = vst.msk [vmem:[%s889] sm:$0xff] %vm726, %v895
        %s897 = scalar_lea.vmem [#allocation5], 16
        %v898 = vld [vmem:[%s897] sm:$0xff]
        %900 = vset.pattern.permute.xlu0 0
        %901 = vperm.xlu0 %900, %v880
        %v902 = vpop.permute.xlu0 %901
        %v904 = vmul.f32 %v902, %v898
        %905 = vrot.lane.b32.xlu0 %v676, 112
        %v906 = vpop.permute.xlu0 %905
        %v909 = vsel %vm680, %v888, 0
        %911 = vmatpush.msra.mxu0 0.0
        %912 = vmatpush.msra.mxu0 0.0
        %913 = vmatpush.msra.mxu0 0.0
        %914 = vmatpush.msra.mxu0 0.0
        %915 = vmatpush.msra.mxu0 0.0
        %916 = vmatpush.msra.mxu0 0.0
        %917 = vmatpush.msra.mxu0 0.0
        %918 = vmatpush.msra.mxu0 0.0
        %919 = vmatpush.msra.mxu0 0.0
        %920 = vmatpush.msra.mxu0 0.0
        %921 = vmatpush.msra.mxu0 0.0
        %922 = vmatpush.msra.mxu0 0.0
        %923 = vmatpush.msra.mxu0 0.0
        %924 = vmatpush.msra.mxu0 0.0
        %925 = vmatpush.msra.mxu0 0.0
        %926 = vmatpush.msra.mxu0 %v906
        %927 = vmatmul.f32.gmra.mxu0 %v909
        %v928 = vpop.f32.mrf.mxu0
        %v929 = vadd.f32 0.0, %v928
        %930 = vdwg.mxu0
        %v931 = vadd.f32 %v904, %v929
        %932 = vst.msk [vmem:[%s897] sm:$0xff] %vm680, %v931
        %933 = vst.msk [vmem:[%s872] sm:$0xff] %vm726, %v877
        %934 = vrot.lane.b32.xlu0 %v679, 104
        %v935 = vpop.permute.xlu0 %934
        %v936 = vsel %vm680, %v935, 0
        %938 = vmatpush.msra.mxu0 0.0
        %939 = vmatpush.msra.mxu0 0.0
        %940 = vmatpush.msra.mxu0 0.0
        %941 = vmatpush.msra.mxu0 0.0
        %942 = vmatpush.msra.mxu0 0.0
        %943 = vmatpush.msra.mxu0 0.0
        %944 = vmatpush.msra.mxu0 0.0
        %945 = vmatpush.msra.mxu0 0.0
        %946 = vmatpush.msra.mxu0 0.0
        %947 = vmatpush.msra.mxu0 0.0
        %948 = vmatpush.msra.mxu0 0.0
        %949 = vmatpush.msra.mxu0 0.0
        %950 = vmatpush.msra.mxu0 0.0
        %951 = vmatpush.msra.mxu0 0.0
        %952 = vmatpush.msra.mxu0 0.0
        %953 = vmatpush.msra.mxu0 %v648
        %954 = vmatmul.f32.gmra.mxu0 %v936
        %v955 = vpop.f32.mrf.mxu0
        %v956 = vadd.f32 %v678, %v955
        %957 = vdwg.mxu0
        %s958 = scalar_lea.vmem [#allocation3], 24
        %v959 = vld [vmem:[%s958] sm:$0xff]
        %v960 = vsel %vm680, %v956, -inf
        %961 = vmax.xlane.f32.xlu0 %v960
        %v962 = vpop.xlane.xlu0 %961
        %v963 = vmax.f32 %v959, %v962
        %v964 = vsub.f32 %v959, %v963
        %v965 = vmul.f32 %v964, 1.442695
        %v966 = vpow.pop %v965
        %968 = vset.pattern.permute.xlu0 0
        %969 = vperm.xlu0 %968, %v963
        %v970 = vpop.permute.xlu0 %969
        %v972 = vsub.f32 %v956, %v970
        %v973 = vmul.f32 %v972, 1.442695
        %v974 = vpow.pop %v973
        %s975 = scalar_lea.vmem [#allocation4], 24
        %v976 = vld [vmem:[%s975] sm:$0xff]
        %v977 = vmul.f32 %v966, %v976
        %v978 = vsel %vm680, %v974, 0.0
        %979 = vadd.xlane.f32.xlu0 %v978
        %v980 = vpop.xlane.xlu0 %979
        %v981 = vadd.f32 %v977, %v980
        %982 = vst.msk [vmem:[%s975] sm:$0xff] %vm726, %v981
        %s983 = scalar_lea.vmem [#allocation5], 24
        %v984 = vld [vmem:[%s983] sm:$0xff]
        %986 = vset.pattern.permute.xlu0 0
        %987 = vperm.xlu0 %986, %v966
        %v988 = vpop.permute.xlu0 %987
        %v990 = vmul.f32 %v988, %v984
        %991 = vrot.lane.b32.xlu0 %v676, 104
        %v992 = vpop.permute.xlu0 %991
        %v995 = vsel %vm680, %v974, 0
        %997 = vmatpush.msra.mxu0 0.0
        %998 = vmatpush.msra.mxu0 0.0
        %999 = vmatpush.msra.mxu0 0.0
        %1000 = vmatpush.msra.mxu0 0.0
        %1001 = vmatpush.msra.mxu0 0.0
        %1002 = vmatpush.msra.mxu0 0.0
        %1003 = vmatpush.msra.mxu0 0.0
        %1004 = vmatpush.msra.mxu0 0.0
        %1005 = vmatpush.msra.mxu0 0.0
        %1006 = vmatpush.msra.mxu0 0.0
        %1007 = vmatpush.msra.mxu0 0.0
        %1008 = vmatpush.msra.mxu0 0.0
        %1009 = vmatpush.msra.mxu0 0.0
        %1010 = vmatpush.msra.mxu0 0.0
        %1011 = vmatpush.msra.mxu0 0.0
        %1012 = vmatpush.msra.mxu0 %v992
        %1013 = vmatmul.f32.gmra.mxu0 %v995
        %v1014 = vpop.f32.mrf.mxu0
        %v1015 = vadd.f32 0.0, %v1014
        %1016 = vdwg.mxu0
        %v1017 = vadd.f32 %v990, %v1015
        %1018 = vst.msk [vmem:[%s983] sm:$0xff] %vm680, %v1017
        %1019 = vst.msk [vmem:[%s958] sm:$0xff] %vm726, %v963
        // Predicated region
        $region77: #{decoder_block.4} parent=63 // pred_check
          %p1020 = pneg %p552
        $region78: #{decoder_block.4} parent=63 // pred_check_branch
          %1022 = sbr.rel (%p1020) target = $region80
        $region79: #{decoder_block.4} parent=63 // pred_region
          %v1023 = vld [vmem:[%s519] sm:$0xff]
          %v1024 = vld [vmem:[%s8] sm:$0x1]
          %v1026 = vperm.slane %v1024, 0
          %v1028 = vadd.f32 %v1023, %v1026
          %v1029 = vld [vmem:[#allocation8] sm:$0xff]
          %v1030 = vld [vmem:[#allocation8 + $0x8] sm:$0xff]
          %v1031 = vld [vmem:[#allocation8 + $0x10] sm:$0xff]
          %v1032 = vld [vmem:[#allocation8 + $0x18] sm:$0xff]
          %v1033 = vld [vmem:[#allocation5] sm:$0xff]
          %v1034 = vld [vmem:[#allocation4] sm:$0xff]
          %v1035 = vrcp.pop %v1034
          %1037 = vset.pattern.permute.xlu0 0
          %1038 = vperm.xlu0 %1037, %v1035
          %v1039 = vpop.permute.xlu0 %1038
          %v1041 = vmul.f32 %v1033, %v1039
          %v1043 = vsel %vm680, %v1041, 0
          %1045 = vmatpush.msra.mxu0 0.0
          %1046 = vmatpush.msra.mxu0 0.0
          %1047 = vmatpush.msra.mxu0 0.0
          %1048 = vmatpush.msra.mxu0 0.0
          %1049 = vmatpush.msra.mxu0 0.0
          %1050 = vmatpush.msra.mxu0 0.0
          %1051 = vmatpush.msra.mxu0 0.0
          %1052 = vmatpush.msra.mxu0 0.0
          %1053 = vmatpush.msra.mxu0 0.0
          %1054 = vmatpush.msra.mxu0 0.0
          %1055 = vmatpush.msra.mxu0 0.0
          %1056 = vmatpush.msra.mxu0 0.0
          %1057 = vmatpush.msra.mxu0 0.0
          %1058 = vmatpush.msra.mxu0 0.0
          %1059 = vmatpush.msra.mxu0 0.0
          %1060 = vmatpush.msra.mxu0 %v1029
          %1061 = vmatmul.f32.gmra.mxu0 %v1043
          %v1062 = vpop.f32.mrf.mxu0
          %v1063 = vadd.f32 0.0, %v1062
          %1064 = vdwg.mxu0
          %v1065 = vadd.f32 %v1028, %v1063
          %v1066 = vld [vmem:[%s810] sm:$0xff]
          %v1067 = vld [vmem:[%s802] sm:$0xff]
          %v1068 = vrcp.pop %v1067
          %1070 = vset.pattern.permute.xlu0 0
          %1071 = vperm.xlu0 %1070, %v1068
          %v1072 = vpop.permute.xlu0 %1071
          %v1074 = vmul.f32 %v1066, %v1072
          %v1076 = vsel %vm680, %v1074, 0
          %1078 = vmatpush.msra.mxu0 0.0
          %1079 = vmatpush.msra.mxu0 0.0
          %1080 = vmatpush.msra.mxu0 0.0
          %1081 = vmatpush.msra.mxu0 0.0
          %1082 = vmatpush.msra.mxu0 0.0
          %1083 = vmatpush.msra.mxu0 0.0
          %1084 = vmatpush.msra.mxu0 0.0
          %1085 = vmatpush.msra.mxu0 0.0
          %1086 = vmatpush.msra.mxu0 0.0
          %1087 = vmatpush.msra.mxu0 0.0
          %1088 = vmatpush.msra.mxu0 0.0
          %1089 = vmatpush.msra.mxu0 0.0
          %1090 = vmatpush.msra.mxu0 0.0
          %1091 = vmatpush.msra.mxu0 0.0
          %1092 = vmatpush.msra.mxu0 0.0
          %1093 = vmatpush.msra.mxu0 %v1030
          %1094 = vmatmul.f32.gmra.mxu0 %v1076
          %v1095 = vpop.f32.mrf.mxu0
          %v1096 = vadd.f32 0.0, %v1095
          %1097 = vdwg.mxu0
          %v1098 = vadd.f32 %v1065, %v1096
          %v1099 = vld [vmem:[%s897] sm:$0xff]
          %v1100 = vld [vmem:[%s889] sm:$0xff]
          %v1101 = vrcp.pop %v1100
          %1103 = vset.pattern.permute.xlu0 0
          %1104 = vperm.xlu0 %1103, %v1101
          %v1105 = vpop.permute.xlu0 %1104
          %v1107 = vmul.f32 %v1099, %v1105
          %v1109 = vsel %vm680, %v1107, 0
          %1111 = vmatpush.msra.mxu0 0.0
          %1112 = vmatpush.msra.mxu0 0.0
          %1113 = vmatpush.msra.mxu0 0.0
          %1114 = vmatpush.msra.mxu0 0.0
          %1115 = vmatpush.msra.mxu0 0.0
          %1116 = vmatpush.msra.mxu0 0.0
          %1117 = vmatpush.msra.mxu0 0.0
          %1118 = vmatpush.msra.mxu0 0.0
          %1119 = vmatpush.msra.mxu0 0.0
          %1120 = vmatpush.msra.mxu0 0.0
          %1121 = vmatpush.msra.mxu0 0.0
          %1122 = vmatpush.msra.mxu0 0.0
          %1123 = vmatpush.msra.mxu0 0.0
          %1124 = vmatpush.msra.mxu0 0.0
          %1125 = vmatpush.msra.mxu0 0.0
          %1126 = vmatpush.msra.mxu0 %v1031
          %1127 = vmatmul.f32.gmra.mxu0 %v1109
          %v1128 = vpop.f32.mrf.mxu0
          %v1129 = vadd.f32 0.0, %v1128
          %1130 = vdwg.mxu0
          %v1131 = vadd.f32 %v1098, %v1129
          %v1132 = vld [vmem:[%s983] sm:$0xff]
          %v1133 = vld [vmem:[%s975] sm:$0xff]
          %v1134 = vrcp.pop %v1133
          %1136 = vset.pattern.permute.xlu0 0
          %1137 = vperm.xlu0 %1136, %v1134
          %v1138 = vpop.permute.xlu0 %1137
          %v1140 = vmul.f32 %v1132, %v1138
          %v1142 = vsel %vm680, %v1140, 0
          %1144 = vmatpush.msra.mxu0 0.0
          %1145 = vmatpush.msra.mxu0 0.0
          %1146 = vmatpush.msra.mxu0 0.0
          %1147 = vmatpush.msra.mxu0 0.0
          %1148 = vmatpush.msra.mxu0 0.0
          %1149 = vmatpush.msra.mxu0 0.0
          %1150 = vmatpush.msra.mxu0 0.0
          %1151 = vmatpush.msra.mxu0 0.0
          %1152 = vmatpush.msra.mxu0 0.0
          %1153 = vmatpush.msra.mxu0 0.0
          %1154 = vmatpush.msra.mxu0 0.0
          %1155 = vmatpush.msra.mxu0 0.0
          %1156 = vmatpush.msra.mxu0 0.0
          %1157 = vmatpush.msra.mxu0 0.0
          %1158 = vmatpush.msra.mxu0 0.0
          %1159 = vmatpush.msra.mxu0 %v1032
          %1160 = vmatmul.f32.gmra.mxu0 %v1142
          %v1161 = vpop.f32.mrf.mxu0
          %v1162 = vadd.f32 0.0, %v1161
          %1163 = vdwg.mxu0
          %v1164 = vadd.f32 %v1131, %v1162
          %v1165 = vsel %vm608, %v1164, 0.0
          %1166 = vadd.xlane.f32.xlu0 %v1165
          %v1167 = vpop.xlane.xlu0 %1166
          %v1168 = vrcp.pop 32.0
          %v1169 = vmul.f32 32.0, %v1168
          %v1170 = vsub.f32 1.0, %v1169
          %v1171 = vmul.f32 %v1168, %v1170
          %v1172 = vadd.f32 %v1168, %v1171
          %vm1173 = vweird.f32 %v1168
          %v1174 = vsel %vm1173, %v1168, %v1172
          %v1175 = vmul.f32 %v1167, %v1174
          %v1176 = vsub.f32 %v1164, %v1175
          %v1177 = vmul.f32 %v1176, %v1176
          %v1178 = vsel %vm608, %v1177, 0.0
          %1179 = vadd.xlane.f32.xlu0 %v1178
          %v1180 = vpop.xlane.xlu0 %1179
          %v1181 = vmul.f32 %v1180, %v1174
          %v1182 = vadd.f32 %v1181, 1e-05
          %v1183 = vrsqrt.pop %v1182
          %v1184 = vmul.f32 %v1183, %v1182
          %v1185 = vmul.f32 %v1184, %v1183
          %v1186 = vmul.f32 0.5, %v1185
          %v1187 = vsub.f32 1.5, %v1186
          %v1188 = vmul.f32 %v1183, %v1187
          %vm1189 = vweird.f32 %v1182
          %vm1190 = vweird.f32 %v1183
          %vm1191 = vmor %vm1189, %vm1190
          %v1192 = vsel %vm1191, %v1183, %v1188
          %v1193 = vmul.f32 %v1176, %v1192
          %v1194 = vld [vmem:[%s9] sm:$0x1]
          %v1196 = vperm.slane %v1194, 0
          %v1198 = vmul.f32 %v1193, %v1196
          %v1199 = vld [vmem:[%s10] sm:$0x1]
          %v1201 = vperm.slane %v1199, 0
          %v1203 = vadd.f32 %v1198, %v1201
          %1204 = vst.msk [vmem:[%s551] sm:$0xff] %vm608, %v1203
        $region80: #{decoder_block.4} parent=63 // pred_fallthru
          _
        %p1205 = scmp.lt.s32.totalorder %s29, 1
        %s1206 = scalar_select %p1205, %s29, 1
        %p1207 = scmp.lt.s32.totalorder %s30, 0
        %s1208 = scalar_select %p1207, %s30, 0
        %s1209 = sadd.s32 %s1208, %s1206
        %s1210 = smul.addr %s1209, 8
        %s1211 = scalar_lea.vmem %s11, %s1210
        // Predicated region
        $region81: #{decoder_block.4} parent=63 // pred_check
          %p1212 = pneg %p324
        $region82: #{decoder_block.4} parent=63 // pred_check_branch
          %1214 = sbr.rel (%p1212) target = $region84
        $region83: #{decoder_block.4} parent=63 // pred_region
          _
        $region84: #{decoder_block.4} parent=63 // pred_fallthru
          _
      $region64: #{decoder_block.4} parent=5 // pred_fallthru
        _
      %p1215 = scmp.le.s32.totalorder 2, %s19
      // Predicated region
      $region85: #{decoder_block.4} parent=5 // pred_check
        %p1216 = pneg %p1215
      $region86: #{decoder_block.4} parent=5 // pred_check_branch
        %1218 = sbr.rel (%p1216) target = $region88
      $region87: #{decoder_block.4} parent=5 // pred_region
        %s1219 = ssub.s32 %s19, 2
        // Predicated region
        $region89: #{decoder_block.4} parent=87 // pred_check
          %p1220 = pneg %p330
        $region90: #{decoder_block.4} parent=87 // pred_check_branch
          %1222 = sbr.rel (%p1220) target = $region92
        $region91: #{decoder_block.4} parent=87 // pred_region
          %p1223 = scmp.lt.s32.totalorder %s32, 1
          %s1224 = scalar_select %p1223, %s32, 1
          %p1225 = scmp.lt.s32.totalorder %s33, 0
          %s1226 = scalar_select %p1225, %s33, 0
          %s1227 = sadd.s32 %s1226, %s1224
          %s1228 = smul.addr %s1227, 8
          %s1229 = scalar_lea.vmem %s11, %s1228
        $region92: #{decoder_block.4} parent=87 // pred_fallthru
          _
      $region88: #{decoder_block.4} parent=5 // pred_fallthru
        _
    $region6: #{decoder_block.4} parent=1 // loop_footer
      %s23 = sadd.s32 1, %s19
    $region7: #{decoder_block.4} parent=1 // loop_footer_branch
      %18 = sbr.rel target = $region3
    $region8: #{decoder_block.4} parent=1 // loop_exit
      _
    %1230 = vsyncpa [#allocation7], 1
    %s1231 = scalar_lea.sflag [#allocation7], 1
    %1232 = vsyncpa %s1231, 1
    %1233 = vsyncpa [#allocation9], 1

</llo_original>
